<compile_context>
chip_gen: v7x
topology: tpu7x:2x2x1
jax: 0.10.0
libtpu: 0.0.40
codegen_flags: <defaults>
</compile_context>

<pallas_src>
import math

import jax
import jax.numpy as jnp
from jax.experimental import pallas as pl
from jax.experimental.pallas import tpu as pltpu


def _make_biasfree_ln_kernel(k: int, c: int):
    """Kernel factory; k rows are packed per lane-row (k*c is the tile's last dim)."""

    def kernel(x_ref, w_ref, o_ref):
        # x_ref: (tm, k*c), w_ref: (1, k*c) f32 (pre-tiled), o_ref: (tm, k*c)
        x = x_ref[...].astype(jnp.float32)
        if k == 1:
            mu = jnp.mean(x, axis=-1, keepdims=True)
            var = jnp.mean((x - mu) * (x - mu), axis=-1, keepdims=True)  # unbiased=False
            inv = jax.lax.rsqrt(var + 1e-5)
            y = x * inv * w_ref[...]
        else:
            tm = x.shape[0]
            x3 = x.reshape(tm, k, c)
            mu = jnp.mean(x3, axis=-1, keepdims=True)
            var = jnp.mean((x3 - mu) * (x3 - mu), axis=-1, keepdims=True)
            inv = jax.lax.rsqrt(var + 1e-5)
            y = (x3 * inv).reshape(tm, k * c) * w_ref[...]
        o_ref[...] = y.astype(o_ref.dtype)

    return kernel


def biasfree_layernorm(x, weight, *, vmem_tile_budget_bytes=16 * 1024 * 1024):
    """x: (..., C) channels-last; weight: (C,). Returns same shape/dtype as x."""
    orig_shape = x.shape
    C = orig_shape[-1]
    M = 1
    for d in orig_shape[:-1]:
        M *= int(d)
    x_flat = x.reshape(M, C)

    # --- lane packing: make the last (lane) dim a multiple of 128 when C < 128 ---
    if C % 128 == 0:
        k = 1
    else:
        k = math.lcm(C, 128) // C
        if k > M or M % k != 0:
            k = 1  # fall back; block last dim then equals the full array dim
    Cw = k * C
    rows = M // k
    x_in = x_flat.reshape(rows, Cw)

    w32 = weight.astype(jnp.float32)
    w_in = (jnp.tile(w32, k) if k > 1 else w32).reshape(1, Cw)

    # --- row tile: fill (part of) the VMEM budget; double-buffered in+out ≈ 4*tm*Cw*B ---
    itemsize = jnp.dtype(x.dtype).itemsize
    bytes_per_row = Cw * itemsize
    tm_cap = max(8, vmem_tile_budget_bytes // (4 * bytes_per_row))
    if rows <= 8:
        tm = rows  # block dim equals full array dim -> always legal
    else:
        tm = min(2048, tm_cap, rows)
        tm = max(8, (tm // 8) * 8)
    grid = pl.cdiv(rows, tm)  # partial last block: masked on store, per-row op

    flops = 7 * M * C
    transcendentals = M
    bytes_accessed = 2 * M * C * itemsize + C * 4

    out = pl.pallas_call(
        _make_biasfree_ln_kernel(k, C),
        out_shape=jax.ShapeDtypeStruct((rows, Cw), x.dtype),
        grid_spec=pltpu.PrefetchScalarGridSpec(
            num_scalar_prefetch=0,
            grid=(grid,),
            in_specs=[
                pl.BlockSpec((tm, Cw), lambda i: (i, 0)),
                pl.BlockSpec((1, Cw), lambda i: (0, 0)),
            ],
            out_specs=pl.BlockSpec((tm, Cw), lambda i: (i, 0)),
        ),
        compiler_params=pltpu.CompilerParams(
            dimension_semantics=("parallel",),
            # Raised above the v5e (16 MiB) / v6e-v7x (32 MiB) defaults, but kept
            # well under v7x's 64 MiB physical VMEM.
            vmem_limit_bytes=48 * 1024 * 1024,
        ),
        cost_estimate=pl.CostEstimate(
            flops=flops,
            transcendentals=transcendentals,
            bytes_accessed=bytes_accessed,
        ),
    )(x_in, w_in)

    return out.reshape(orig_shape)


def _reference(x, weight):
    mu = jnp.mean(x, axis=-1, keepdims=True)
    sigma = jnp.mean((x - mu) ** 2, axis=-1, keepdims=True)
    return x / jnp.sqrt(sigma + 1e-5) * weight


if __name__ == "__main__":
    key = jax.random.PRNGKey(0)

    # Restormer-style usage: NCHW features rearranged to (B, H*W, C), C = normalized_shape.
    B, H, W, C = 2, 16, 16, 32
    N = H * W
    x = jax.random.normal(key, (B, N, C), dtype=jnp.float32)
    weight = jnp.ones((C,), dtype=jnp.float32)  # nn.Parameter(torch.ones(C))

    out = jax.block_until_ready(biasfree_layernorm(x, weight))
    ref = _reference(x, weight)
    assert out.shape == x.shape and out.dtype == x.dtype
    assert jnp.allclose(out, ref, atol=1e-5, rtol=1e-5)

    # Second shape exercising the partial-last-block path (rows not divisible by tm).
    key2 = jax.random.PRNGKey(0)
    x2 = jax.random.normal(key2, (1, 100, C), dtype=jnp.float32)
    out2 = jax.block_until_ready(biasfree_layernorm(x2, weight))
    ref2 = _reference(x2, weight)
    assert out2.shape == x2.shape and out2.dtype == x2.dtype
    assert jnp.allclose(out2, ref2, atol=1e-5, rtol=1e-5)

    print("KERNEL_OK")
</pallas_src>

<mosaic_0001>
module attributes {stable_mosaic.version = 11 : i64} {
  func.func @kernel(%arg0: i32, %arg1: memref<128x128xf32, #tpu.memory_space<vmem>>, %arg2: memref<1x128xf32, #tpu.memory_space<vmem>>, %arg3: memref<128x128xf32, #tpu.memory_space<vmem>>) attributes {dimension_semantics = [#tpu.dimension_semantics<parallel>], iteration_bounds = array<i64: 1>, scalar_prefetch = 0 : i64, scratch_operands = 0 : i64, tpu.core_type = #tpu.core_type<tc>, window_params = [{transform_indices = @transform_0, window_bounds = array<i64: 128, 128>}, {pipeline_mode = #tpu.pipeline_mode<synchronous>, transform_indices = @transform_1, window_bounds = array<i64: 1, 128>}, {transform_indices = @transform_2, window_bounds = array<i64: 128, 128>}]} {
    %c0 = arith.constant 0 : index
    %c0_0 = arith.constant 0 : index
    %0 = vector.load %arg1[%c0, %c0_0] : memref<128x128xf32, #tpu.memory_space<vmem>>, vector<128x128xf32>
    %1 = vector.shape_cast %0 : vector<128x128xf32> to vector<128x4x32xf32>
    %cst = arith.constant dense<0.000000e+00> : vector<128x4xf32>
    %2 = vector.multi_reduction <add>, %1, %cst [2] : vector<128x4x32xf32> to vector<128x4xf32>
    %3 = vector.shape_cast %2 : vector<128x4xf32> to vector<128x4x1xf32>
    %cst_1 = arith.constant 3.200000e+01 : f32
    %4 = vector.broadcast %cst_1 : f32 to vector<128x4x1xf32>
    %5 = arith.divf %3, %4 : vector<128x4x1xf32>
    %6 = vector.broadcast %5 : vector<128x4x1xf32> to vector<128x4x32xf32>
    %7 = arith.subf %1, %6 : vector<128x4x32xf32>
    %8 = vector.broadcast %5 : vector<128x4x1xf32> to vector<128x4x32xf32>
    %9 = arith.subf %1, %8 : vector<128x4x32xf32>
    %10 = arith.mulf %7, %9 : vector<128x4x32xf32>
    %cst_2 = arith.constant dense<0.000000e+00> : vector<128x4xf32>
    %11 = vector.multi_reduction <add>, %10, %cst_2 [2] : vector<128x4x32xf32> to vector<128x4xf32>
    %12 = vector.shape_cast %11 : vector<128x4xf32> to vector<128x4x1xf32>
    %cst_3 = arith.constant 3.200000e+01 : f32
    %13 = vector.broadcast %cst_3 : f32 to vector<128x4x1xf32>
    %14 = arith.divf %12, %13 : vector<128x4x1xf32>
    %cst_4 = arith.constant 9.99999974E-6 : f32
    %15 = vector.broadcast %cst_4 : f32 to vector<128x4x1xf32>
    %16 = arith.addf %14, %15 : vector<128x4x1xf32>
    %17 = math.rsqrt %16 : vector<128x4x1xf32>
    %18 = vector.broadcast %17 : vector<128x4x1xf32> to vector<128x4x32xf32>
    %19 = arith.mulf %1, %18 : vector<128x4x32xf32>
    %20 = vector.shape_cast %19 : vector<128x4x32xf32> to vector<128x128xf32>
    %c0_5 = arith.constant 0 : index
    %c0_6 = arith.constant 0 : index
    %21 = vector.load %arg2[%c0_5, %c0_6] : memref<1x128xf32, #tpu.memory_space<vmem>>, vector<1x128xf32>
    %22 = vector.broadcast %21 : vector<1x128xf32> to vector<128x128xf32>
    %23 = arith.mulf %20, %22 : vector<128x128xf32>
    %c0_7 = arith.constant 0 : index
    %c0_8 = arith.constant 0 : index
    %24 = vector.load %arg3[%c0_7, %c0_8] : memref<128x128xf32, #tpu.memory_space<vmem>>, vector<128x128xf32>
    tpu.vector_store %arg3[%c0_7, %c0_8], %23 {strides = array<i32>} : memref<128x128xf32, #tpu.memory_space<vmem>>, vector<128x128xf32>,
    return
  }
  func.func @transform_0(%arg0: i32) -> (i32, i32) {
    %c0_i32 = arith.constant 0 : i32
    %c0_i32_0 = arith.constant 0 : i32
    return %arg0, %c0_i32 : i32, i32
  }
  func.func @transform_1(%arg0: i32) -> (i32, i32) {
    %c0_i32 = arith.constant 0 : i32
    %c0_i32_0 = arith.constant 0 : i32
    %c0_i32_1 = arith.constant 0 : i32
    return %c0_i32, %c0_i32_0 : i32, i32
  }
  func.func @transform_2(%arg0: i32) -> (i32, i32) {
    %c0_i32 = arith.constant 0 : i32
    %c0_i32_0 = arith.constant 0 : i32
    return %arg0, %c0_i32 : i32, i32
  }
}

</mosaic_0001>

<llo_original>
// kernel: tpu_custom_call.1
$region0: #{tpu_custom_call.1}
  #allocation0 [shape = 'u32[]', space=smem, size = 0x4, offset = 0x4, fixed_abs, tag = 'smem constant byte address 0x4 - core index']
  #allocation1 [shape = 'u32[144,128]{1,0:T(1,128)}', space=vmem, size = 0x12000, scoped, tag = 'internal scratch']
  %s0 = inlined_call_operand.hbm [shape: f32[128,128], index: 0, kind: input, shape index: {}]
  %s1 = inlined_call_operand.vmem [shape: f32[1,128], index: 1, kind: input, shape index: {}]
  %s2 = inlined_call_operand.hbm [shape: f32[128,128], index: 2, kind: output, shape index: {}]
  %s3 = sld [smem:[#allocation0]]
  $region22: #{tpu_custom_call.1} parent=0
    _
  %s5 = ssub.s32 1, %s3
  %s6 = scalar_select 0, %s5, %s3
  $region1: #{tpu_custom_call.1} parent=0
    #allocation2 [shape = 'u8[65536]{0}', space=vmem, size = 0x10000, scoped, tag = 'input window, operand 0, single buffered']
    #allocation3 [shape = 's32[1]{0}', space=sflag, size = 0x4, scoped, tag = 'scoped memory for tpu_custom_call.1']
    #allocation4 [shape = 's32[1]{0}', space=sflag, size = 0x4, scoped, tag = 'scoped memory for tpu_custom_call.1']
    #allocation5 [shape = 'u8[65536]{0}', space=vmem, size = 0x10000, scoped, tag = 'output window, operand 0, single buffered']
    %7 = vsyncpa [#allocation3], 0
    %8 = vsyncpa [#allocation4], 0
    // Predicated region
    $region2: #{tpu_custom_call.1} parent=1 // pred_check
      _
    $region3: #{tpu_custom_call.1} parent=1 // pred_check_branch
      %10 = sbr.rel (0) target = $region5
    $region4: #{tpu_custom_call.1} parent=1 // pred_region
      %s12 = ssub.s32 2048, 2048
      %13 = vsyncadd [#allocation3], %s12
      %s14 = sshll.u32 [#allocation2], 4
      %s15 = int_to_ptr.vmem [resolvable:$true] %s14
      %20 = dma.hbm_to_vmem [thread:$0]  %s0, 2048, %s15, [#allocation3], 128, 128, 8
    $region5: #{tpu_custom_call.1} parent=1 // pred_fallthru
      _
    // Predicated region
    $region6: #{tpu_custom_call.1} parent=1 // pred_check
      _
    $region7: #{tpu_custom_call.1} parent=1 // pred_check_branch
      %22 = sbr.rel (0) target = $region9
    $region8: #{tpu_custom_call.1} parent=1 // pred_region
      _
    $region9: #{tpu_custom_call.1} parent=1 // pred_fallthru
      _
    // Predicated region
    $region10: #{tpu_custom_call.1} parent=1 // pred_check
      _
    $region11: #{tpu_custom_call.1} parent=1 // pred_check_branch
      %24 = sbr.rel (0) target = $region13
    $region12: #{tpu_custom_call.1} parent=1 // pred_region
      %25 = dma.done [#allocation3], 2048
    $region13: #{tpu_custom_call.1} parent=1 // pred_fallthru
      _
    %v26 = vld [vmem:[#allocation2] sm:$0xff]
    %v27 = vld [vmem:[#allocation2 + $0x8] sm:$0xff]
    %v28 = vld [vmem:[#allocation2 + $0x10] sm:$0xff]
    %v29 = vld [vmem:[#allocation2 + $0x18] sm:$0xff]
    %v30 = vld [vmem:[#allocation2 + $0x20] sm:$0xff]
    %v31 = vld [vmem:[#allocation2 + $0x28] sm:$0xff]
    %v32 = vld [vmem:[#allocation2 + $0x30] sm:$0xff]
    %v33 = vld [vmem:[#allocation2 + $0x38] sm:$0xff]
    %v34 = vld [vmem:[#allocation2 + $0x40] sm:$0xff]
    %v35 = vld [vmem:[#allocation2 + $0x48] sm:$0xff]
    %v36 = vld [vmem:[#allocation2 + $0x50] sm:$0xff]
    %v37 = vld [vmem:[#allocation2 + $0x58] sm:$0xff]
    %v38 = vld [vmem:[#allocation2 + $0x60] sm:$0xff]
    %v39 = vld [vmem:[#allocation2 + $0x68] sm:$0xff]
    %v40 = vld [vmem:[#allocation2 + $0x70] sm:$0xff]
    %v41 = vld [vmem:[#allocation2 + $0x78] sm:$0xff]
    %58 = vrot.lane.b32.xlu0 %v26, 96
    %v59 = vpop.permute.xlu0 %58
    %60 = vrot.lane.b32.xlu0 %v27, 96
    %v61 = vpop.permute.xlu0 %60
    %62 = vrot.lane.b32.xlu0 %v28, 96
    %v63 = vpop.permute.xlu0 %62
    %64 = vrot.lane.b32.xlu0 %v29, 96
    %v65 = vpop.permute.xlu0 %64
    %66 = vrot.lane.b32.xlu0 %v30, 96
    %v67 = vpop.permute.xlu0 %66
    %68 = vrot.lane.b32.xlu0 %v31, 96
    %v69 = vpop.permute.xlu0 %68
    %70 = vrot.lane.b32.xlu0 %v32, 96
    %v71 = vpop.permute.xlu0 %70
    %72 = vrot.lane.b32.xlu0 %v33, 96
    %v73 = vpop.permute.xlu0 %72
    %74 = vrot.lane.b32.xlu0 %v34, 96
    %v75 = vpop.permute.xlu0 %74
    %76 = vrot.lane.b32.xlu0 %v35, 96
    %v77 = vpop.permute.xlu0 %76
    %78 = vrot.lane.b32.xlu0 %v36, 96
    %v79 = vpop.permute.xlu0 %78
    %80 = vrot.lane.b32.xlu0 %v37, 96
    %v81 = vpop.permute.xlu0 %80
    %82 = vrot.lane.b32.xlu0 %v38, 96
    %v83 = vpop.permute.xlu0 %82
    %84 = vrot.lane.b32.xlu0 %v39, 96
    %v85 = vpop.permute.xlu0 %84
    %86 = vrot.lane.b32.xlu0 %v40, 96
    %v87 = vpop.permute.xlu0 %86
    %88 = vrot.lane.b32.xlu0 %v41, 96
    %v89 = vpop.permute.xlu0 %88
    %106 = vrot.lane.b32.xlu0 %v26, 64
    %v107 = vpop.permute.xlu0 %106
    %108 = vrot.lane.b32.xlu0 %v27, 64
    %v109 = vpop.permute.xlu0 %108
    %110 = vrot.lane.b32.xlu0 %v28, 64
    %v111 = vpop.permute.xlu0 %110
    %112 = vrot.lane.b32.xlu0 %v29, 64
    %v113 = vpop.permute.xlu0 %112
    %114 = vrot.lane.b32.xlu0 %v30, 64
    %v115 = vpop.permute.xlu0 %114
    %116 = vrot.lane.b32.xlu0 %v31, 64
    %v117 = vpop.permute.xlu0 %116
    %118 = vrot.lane.b32.xlu0 %v32, 64
    %v119 = vpop.permute.xlu0 %118
    %120 = vrot.lane.b32.xlu0 %v33, 64
    %v121 = vpop.permute.xlu0 %120
    %122 = vrot.lane.b32.xlu0 %v34, 64
    %v123 = vpop.permute.xlu0 %122
    %124 = vrot.lane.b32.xlu0 %v35, 64
    %v125 = vpop.permute.xlu0 %124
    %126 = vrot.lane.b32.xlu0 %v36, 64
    %v127 = vpop.permute.xlu0 %126
    %128 = vrot.lane.b32.xlu0 %v37, 64
    %v129 = vpop.permute.xlu0 %128
    %130 = vrot.lane.b32.xlu0 %v38, 64
    %v131 = vpop.permute.xlu0 %130
    %132 = vrot.lane.b32.xlu0 %v39, 64
    %v133 = vpop.permute.xlu0 %132
    %134 = vrot.lane.b32.xlu0 %v40, 64
    %v135 = vpop.permute.xlu0 %134
    %136 = vrot.lane.b32.xlu0 %v41, 64
    %v137 = vpop.permute.xlu0 %136
    %154 = vrot.lane.b32.xlu0 %v26, 32
    %v155 = vpop.permute.xlu0 %154
    %156 = vrot.lane.b32.xlu0 %v27, 32
    %v157 = vpop.permute.xlu0 %156
    %158 = vrot.lane.b32.xlu0 %v28, 32
    %v159 = vpop.permute.xlu0 %158
    %160 = vrot.lane.b32.xlu0 %v29, 32
    %v161 = vpop.permute.xlu0 %160
    %162 = vrot.lane.b32.xlu0 %v30, 32
    %v163 = vpop.permute.xlu0 %162
    %164 = vrot.lane.b32.xlu0 %v31, 32
    %v165 = vpop.permute.xlu0 %164
    %166 = vrot.lane.b32.xlu0 %v32, 32
    %v167 = vpop.permute.xlu0 %166
    %168 = vrot.lane.b32.xlu0 %v33, 32
    %v169 = vpop.permute.xlu0 %168
    %170 = vrot.lane.b32.xlu0 %v34, 32
    %v171 = vpop.permute.xlu0 %170
    %172 = vrot.lane.b32.xlu0 %v35, 32
    %v173 = vpop.permute.xlu0 %172
    %174 = vrot.lane.b32.xlu0 %v36, 32
    %v175 = vpop.permute.xlu0 %174
    %176 = vrot.lane.b32.xlu0 %v37, 32
    %v177 = vpop.permute.xlu0 %176
    %178 = vrot.lane.b32.xlu0 %v38, 32
    %v179 = vpop.permute.xlu0 %178
    %180 = vrot.lane.b32.xlu0 %v39, 32
    %v181 = vpop.permute.xlu0 %180
    %182 = vrot.lane.b32.xlu0 %v40, 32
    %v183 = vpop.permute.xlu0 %182
    %184 = vrot.lane.b32.xlu0 %v41, 32
    %v185 = vpop.permute.xlu0 %184
    %v202 = vcombine.low %v26, %v107
    %v203 = vcombine.high %v26, %v107
    %v205 = vunpack.c.l.s4 1983009808
    %v206 = vunpack.c.0.s8 %v205
    %v207 = vlaneseq
    %v208 = vshrl.u32 %v207, 7
    %v209 = vsub.s32 %v206, %v208
    %v210 = vrot.slane %v202, %v209
    %v212 = vunpack.c.l.s4 1983009808
    %v213 = vunpack.c.0.s8 %v212
    %v214 = vlaneseq
    %v215 = vshrl.u32 %v214, 7
    %v216 = vsub.s32 %v213, %v215
    %v217 = vrot.slane %v203, %v216
    %v218 = vcombine.low %v59, %v155
    %v219 = vcombine.high %v59, %v155
    %v221 = vunpack.c.l.s4 1983009808
    %v222 = vunpack.c.0.s8 %v221
    %v223 = vlaneseq
    %v224 = vshrl.u32 %v223, 7
    %v225 = vsub.s32 %v222, %v224
    %v226 = vrot.slane %v218, %v225
    %v228 = vunpack.c.l.s4 1983009808
    %v229 = vunpack.c.0.s8 %v228
    %v230 = vlaneseq
    %v231 = vshrl.u32 %v230, 7
    %v232 = vsub.s32 %v229, %v231
    %v233 = vrot.slane %v219, %v232
    %v234 = vcombine.low %v210, %v226
    %v235 = vcombine.high %v210, %v226
    %v237 = vunpack.c.l.s4 1934713408
    %v238 = vunpack.c.0.s8 %v237
    %v239 = vlaneseq
    %v240 = vshrl.u32 %v239, 7
    %v241 = vsub.s32 %v238, %v240
    %v242 = vrot.slane %v234, %v241
    %v244 = vunpack.c.l.s4 1934713408
    %v245 = vunpack.c.0.s8 %v244
    %v246 = vlaneseq
    %v247 = vshrl.u32 %v246, 7
    %v248 = vsub.s32 %v245, %v247
    %v249 = vrot.slane %v235, %v248
    %v250 = vcombine.low %v217, %v233
    %v251 = vcombine.high %v217, %v233
    %v253 = vunpack.c.l.s4 1934713408
    %v254 = vunpack.c.0.s8 %v253
    %v255 = vlaneseq
    %v256 = vshrl.u32 %v255, 7
    %v257 = vsub.s32 %v254, %v256
    %v258 = vrot.slane %v250, %v257
    %v260 = vunpack.c.l.s4 1934713408
    %v261 = vunpack.c.0.s8 %v260
    %v262 = vlaneseq
    %v263 = vshrl.u32 %v262, 7
    %v264 = vsub.s32 %v261, %v263
    %v265 = vrot.slane %v251, %v264
    %v266 = vcombine.high %v242, 0.0
    %v267 = vcombine.high %v249, 0.0
    %v268 = vcombine.high %v258, 0.0
    %v269 = vcombine.high %v265, 0.0
    %v270 = vcombine.low %v27, %v109
    %v271 = vcombine.high %v27, %v109
    %v273 = vunpack.c.l.s4 1983009808
    %v274 = vunpack.c.0.s8 %v273
    %v275 = vlaneseq
    %v276 = vshrl.u32 %v275, 7
    %v277 = vsub.s32 %v274, %v276
    %v278 = vrot.slane %v270, %v277
    %v280 = vunpack.c.l.s4 1983009808
    %v281 = vunpack.c.0.s8 %v280
    %v282 = vlaneseq
    %v283 = vshrl.u32 %v282, 7
    %v284 = vsub.s32 %v281, %v283
    %v285 = vrot.slane %v271, %v284
    %v286 = vcombine.low %v61, %v157
    %v287 = vcombine.high %v61, %v157
    %v289 = vunpack.c.l.s4 1983009808
    %v290 = vunpack.c.0.s8 %v289
    %v291 = vlaneseq
    %v292 = vshrl.u32 %v291, 7
    %v293 = vsub.s32 %v290, %v292
    %v294 = vrot.slane %v286, %v293
    %v296 = vunpack.c.l.s4 1983009808
    %v297 = vunpack.c.0.s8 %v296
    %v298 = vlaneseq
    %v299 = vshrl.u32 %v298, 7
    %v300 = vsub.s32 %v297, %v299
    %v301 = vrot.slane %v287, %v300
    %v302 = vcombine.low %v278, %v294
    %v303 = vcombine.high %v278, %v294
    %v305 = vunpack.c.l.s4 1934713408
    %v306 = vunpack.c.0.s8 %v305
    %v307 = vlaneseq
    %v308 = vshrl.u32 %v307, 7
    %v309 = vsub.s32 %v306, %v308
    %v310 = vrot.slane %v302, %v309
    %v312 = vunpack.c.l.s4 1934713408
    %v313 = vunpack.c.0.s8 %v312
    %v314 = vlaneseq
    %v315 = vshrl.u32 %v314, 7
    %v316 = vsub.s32 %v313, %v315
    %v317 = vrot.slane %v303, %v316
    %v318 = vcombine.low %v285, %v301
    %v319 = vcombine.high %v285, %v301
    %v321 = vunpack.c.l.s4 1934713408
    %v322 = vunpack.c.0.s8 %v321
    %v323 = vlaneseq
    %v324 = vshrl.u32 %v323, 7
    %v325 = vsub.s32 %v322, %v324
    %v326 = vrot.slane %v318, %v325
    %v328 = vunpack.c.l.s4 1934713408
    %v329 = vunpack.c.0.s8 %v328
    %v330 = vlaneseq
    %v331 = vshrl.u32 %v330, 7
    %v332 = vsub.s32 %v329, %v331
    %v333 = vrot.slane %v319, %v332
    %v334 = vcombine.high %v310, 0.0
    %v335 = vcombine.high %v317, 0.0
    %v336 = vcombine.high %v326, 0.0
    %v337 = vcombine.high %v333, 0.0
    %v338 = vcombine.low %v28, %v111
    %v339 = vcombine.high %v28, %v111
    %v341 = vunpack.c.l.s4 1983009808
    %v342 = vunpack.c.0.s8 %v341
    %v343 = vlaneseq
    %v344 = vshrl.u32 %v343, 7
    %v345 = vsub.s32 %v342, %v344
    %v346 = vrot.slane %v338, %v345
    %v348 = vunpack.c.l.s4 1983009808
    %v349 = vunpack.c.0.s8 %v348
    %v350 = vlaneseq
    %v351 = vshrl.u32 %v350, 7
    %v352 = vsub.s32 %v349, %v351
    %v353 = vrot.slane %v339, %v352
    %v354 = vcombine.low %v63, %v159
    %v355 = vcombine.high %v63, %v159
    %v357 = vunpack.c.l.s4 1983009808
    %v358 = vunpack.c.0.s8 %v357
    %v359 = vlaneseq
    %v360 = vshrl.u32 %v359, 7
    %v361 = vsub.s32 %v358, %v360
    %v362 = vrot.slane %v354, %v361
    %v364 = vunpack.c.l.s4 1983009808
    %v365 = vunpack.c.0.s8 %v364
    %v366 = vlaneseq
    %v367 = vshrl.u32 %v366, 7
    %v368 = vsub.s32 %v365, %v367
    %v369 = vrot.slane %v355, %v368
    %v370 = vcombine.low %v346, %v362
    %v371 = vcombine.high %v346, %v362
    %v373 = vunpack.c.l.s4 1934713408
    %v374 = vunpack.c.0.s8 %v373
    %v375 = vlaneseq
    %v376 = vshrl.u32 %v375, 7
    %v377 = vsub.s32 %v374, %v376
    %v378 = vrot.slane %v370, %v377
    %v380 = vunpack.c.l.s4 1934713408
    %v381 = vunpack.c.0.s8 %v380
    %v382 = vlaneseq
    %v383 = vshrl.u32 %v382, 7
    %v384 = vsub.s32 %v381, %v383
    %v385 = vrot.slane %v371, %v384
    %v386 = vcombine.low %v353, %v369
    %v387 = vcombine.high %v353, %v369
    %v389 = vunpack.c.l.s4 1934713408
    %v390 = vunpack.c.0.s8 %v389
    %v391 = vlaneseq
    %v392 = vshrl.u32 %v391, 7
    %v393 = vsub.s32 %v390, %v392
    %v394 = vrot.slane %v386, %v393
    %v396 = vunpack.c.l.s4 1934713408
    %v397 = vunpack.c.0.s8 %v396
    %v398 = vlaneseq
    %v399 = vshrl.u32 %v398, 7
    %v400 = vsub.s32 %v397, %v399
    %v401 = vrot.slane %v387, %v400
    %v402 = vcombine.high %v378, 0.0
    %v403 = vcombine.high %v385, 0.0
    %v404 = vcombine.high %v394, 0.0
    %v405 = vcombine.high %v401, 0.0
    %v406 = vcombine.low %v29, %v113
    %v407 = vcombine.high %v29, %v113
    %v409 = vunpack.c.l.s4 1983009808
    %v410 = vunpack.c.0.s8 %v409
    %v411 = vlaneseq
    %v412 = vshrl.u32 %v411, 7
    %v413 = vsub.s32 %v410, %v412
    %v414 = vrot.slane %v406, %v413
    %v416 = vunpack.c.l.s4 1983009808
    %v417 = vunpack.c.0.s8 %v416
    %v418 = vlaneseq
    %v419 = vshrl.u32 %v418, 7
    %v420 = vsub.s32 %v417, %v419
    %v421 = vrot.slane %v407, %v420
    %v422 = vcombine.low %v65, %v161
    %v423 = vcombine.high %v65, %v161
    %v425 = vunpack.c.l.s4 1983009808
    %v426 = vunpack.c.0.s8 %v425
    %v427 = vlaneseq
    %v428 = vshrl.u32 %v427, 7
    %v429 = vsub.s32 %v426, %v428
    %v430 = vrot.slane %v422, %v429
    %v432 = vunpack.c.l.s4 1983009808
    %v433 = vunpack.c.0.s8 %v432
    %v434 = vlaneseq
    %v435 = vshrl.u32 %v434, 7
    %v436 = vsub.s32 %v433, %v435
    %v437 = vrot.slane %v423, %v436
    %v438 = vcombine.low %v414, %v430
    %v439 = vcombine.high %v414, %v430
    %v441 = vunpack.c.l.s4 1934713408
    %v442 = vunpack.c.0.s8 %v441
    %v443 = vlaneseq
    %v444 = vshrl.u32 %v443, 7
    %v445 = vsub.s32 %v442, %v444
    %v446 = vrot.slane %v438, %v445
    %v448 = vunpack.c.l.s4 1934713408
    %v449 = vunpack.c.0.s8 %v448
    %v450 = vlaneseq
    %v451 = vshrl.u32 %v450, 7
    %v452 = vsub.s32 %v449, %v451
    %v453 = vrot.slane %v439, %v452
    %v454 = vcombine.low %v421, %v437
    %v455 = vcombine.high %v421, %v437
    %v457 = vunpack.c.l.s4 1934713408
    %v458 = vunpack.c.0.s8 %v457
    %v459 = vlaneseq
    %v460 = vshrl.u32 %v459, 7
    %v461 = vsub.s32 %v458, %v460
    %v462 = vrot.slane %v454, %v461
    %v464 = vunpack.c.l.s4 1934713408
    %v465 = vunpack.c.0.s8 %v464
    %v466 = vlaneseq
    %v467 = vshrl.u32 %v466, 7
    %v468 = vsub.s32 %v465, %v467
    %v469 = vrot.slane %v455, %v468
    %v470 = vcombine.high %v446, 0.0
    %v471 = vcombine.high %v453, 0.0
    %v472 = vcombine.high %v462, 0.0
    %v473 = vcombine.high %v469, 0.0
    %v474 = vcombine.low %v30, %v115
    %v475 = vcombine.high %v30, %v115
    %v477 = vunpack.c.l.s4 1983009808
    %v478 = vunpack.c.0.s8 %v477
    %v479 = vlaneseq
    %v480 = vshrl.u32 %v479, 7
    %v481 = vsub.s32 %v478, %v480
    %v482 = vrot.slane %v474, %v481
    %v484 = vunpack.c.l.s4 1983009808
    %v485 = vunpack.c.0.s8 %v484
    %v486 = vlaneseq
    %v487 = vshrl.u32 %v486, 7
    %v488 = vsub.s32 %v485, %v487
    %v489 = vrot.slane %v475, %v488
    %v490 = vcombine.low %v67, %v163
    %v491 = vcombine.high %v67, %v163
    %v493 = vunpack.c.l.s4 1983009808
    %v494 = vunpack.c.0.s8 %v493
    %v495 = vlaneseq
    %v496 = vshrl.u32 %v495, 7
    %v497 = vsub.s32 %v494, %v496
    %v498 = vrot.slane %v490, %v497
    %v500 = vunpack.c.l.s4 1983009808
    %v501 = vunpack.c.0.s8 %v500
    %v502 = vlaneseq
    %v503 = vshrl.u32 %v502, 7
    %v504 = vsub.s32 %v501, %v503
    %v505 = vrot.slane %v491, %v504
    %v506 = vcombine.low %v482, %v498
    %v507 = vcombine.high %v482, %v498
    %v509 = vunpack.c.l.s4 1934713408
    %v510 = vunpack.c.0.s8 %v509
    %v511 = vlaneseq
    %v512 = vshrl.u32 %v511, 7
    %v513 = vsub.s32 %v510, %v512
    %v514 = vrot.slane %v506, %v513
    %v516 = vunpack.c.l.s4 1934713408
    %v517 = vunpack.c.0.s8 %v516
    %v518 = vlaneseq
    %v519 = vshrl.u32 %v518, 7
    %v520 = vsub.s32 %v517, %v519
    %v521 = vrot.slane %v507, %v520
    %v522 = vcombine.low %v489, %v505
    %v523 = vcombine.high %v489, %v505
    %v525 = vunpack.c.l.s4 1934713408
    %v526 = vunpack.c.0.s8 %v525
    %v527 = vlaneseq
    %v528 = vshrl.u32 %v527, 7
    %v529 = vsub.s32 %v526, %v528
    %v530 = vrot.slane %v522, %v529
    %v532 = vunpack.c.l.s4 1934713408
    %v533 = vunpack.c.0.s8 %v532
    %v534 = vlaneseq
    %v535 = vshrl.u32 %v534, 7
    %v536 = vsub.s32 %v533, %v535
    %v537 = vrot.slane %v523, %v536
    %v538 = vcombine.high %v514, 0.0
    %v539 = vcombine.high %v521, 0.0
    %v540 = vcombine.high %v530, 0.0
    %v541 = vcombine.high %v537, 0.0
    %v542 = vcombine.low %v31, %v117
    %v543 = vcombine.high %v31, %v117
    %v545 = vunpack.c.l.s4 1983009808
    %v546 = vunpack.c.0.s8 %v545
    %v547 = vlaneseq
    %v548 = vshrl.u32 %v547, 7
    %v549 = vsub.s32 %v546, %v548
    %v550 = vrot.slane %v542, %v549
    %v552 = vunpack.c.l.s4 1983009808
    %v553 = vunpack.c.0.s8 %v552
    %v554 = vlaneseq
    %v555 = vshrl.u32 %v554, 7
    %v556 = vsub.s32 %v553, %v555
    %v557 = vrot.slane %v543, %v556
    %v558 = vcombine.low %v69, %v165
    %v559 = vcombine.high %v69, %v165
    %v561 = vunpack.c.l.s4 1983009808
    %v562 = vunpack.c.0.s8 %v561
    %v563 = vlaneseq
    %v564 = vshrl.u32 %v563, 7
    %v565 = vsub.s32 %v562, %v564
    %v566 = vrot.slane %v558, %v565
    %v568 = vunpack.c.l.s4 1983009808
    %v569 = vunpack.c.0.s8 %v568
    %v570 = vlaneseq
    %v571 = vshrl.u32 %v570, 7
    %v572 = vsub.s32 %v569, %v571
    %v573 = vrot.slane %v559, %v572
    %v574 = vcombine.low %v550, %v566
    %v575 = vcombine.high %v550, %v566
    %v577 = vunpack.c.l.s4 1934713408
    %v578 = vunpack.c.0.s8 %v577
    %v579 = vlaneseq
    %v580 = vshrl.u32 %v579, 7
    %v581 = vsub.s32 %v578, %v580
    %v582 = vrot.slane %v574, %v581
    %v584 = vunpack.c.l.s4 1934713408
    %v585 = vunpack.c.0.s8 %v584
    %v586 = vlaneseq
    %v587 = vshrl.u32 %v586, 7
    %v588 = vsub.s32 %v585, %v587
    %v589 = vrot.slane %v575, %v588
    %v590 = vcombine.low %v557, %v573
    %v591 = vcombine.high %v557, %v573
    %v593 = vunpack.c.l.s4 1934713408
    %v594 = vunpack.c.0.s8 %v593
    %v595 = vlaneseq
    %v596 = vshrl.u32 %v595, 7
    %v597 = vsub.s32 %v594, %v596
    %v598 = vrot.slane %v590, %v597
    %v600 = vunpack.c.l.s4 1934713408
    %v601 = vunpack.c.0.s8 %v600
    %v602 = vlaneseq
    %v603 = vshrl.u32 %v602, 7
    %v604 = vsub.s32 %v601, %v603
    %v605 = vrot.slane %v591, %v604
    %v606 = vcombine.high %v582, 0.0
    %v607 = vcombine.high %v589, 0.0
    %v608 = vcombine.high %v598, 0.0
    %v609 = vcombine.high %v605, 0.0
    %v610 = vcombine.low %v32, %v119
    %v611 = vcombine.high %v32, %v119
    %v613 = vunpack.c.l.s4 1983009808
    %v614 = vunpack.c.0.s8 %v613
    %v615 = vlaneseq
    %v616 = vshrl.u32 %v615, 7
    %v617 = vsub.s32 %v614, %v616
    %v618 = vrot.slane %v610, %v617
    %v620 = vunpack.c.l.s4 1983009808
    %v621 = vunpack.c.0.s8 %v620
    %v622 = vlaneseq
    %v623 = vshrl.u32 %v622, 7
    %v624 = vsub.s32 %v621, %v623
    %v625 = vrot.slane %v611, %v624
    %v626 = vcombine.low %v71, %v167
    %v627 = vcombine.high %v71, %v167
    %v629 = vunpack.c.l.s4 1983009808
    %v630 = vunpack.c.0.s8 %v629
    %v631 = vlaneseq
    %v632 = vshrl.u32 %v631, 7
    %v633 = vsub.s32 %v630, %v632
    %v634 = vrot.slane %v626, %v633
    %v636 = vunpack.c.l.s4 1983009808
    %v637 = vunpack.c.0.s8 %v636
    %v638 = vlaneseq
    %v639 = vshrl.u32 %v638, 7
    %v640 = vsub.s32 %v637, %v639
    %v641 = vrot.slane %v627, %v640
    %v642 = vcombine.low %v618, %v634
    %v643 = vcombine.high %v618, %v634
    %v645 = vunpack.c.l.s4 1934713408
    %v646 = vunpack.c.0.s8 %v645
    %v647 = vlaneseq
    %v648 = vshrl.u32 %v647, 7
    %v649 = vsub.s32 %v646, %v648
    %v650 = vrot.slane %v642, %v649
    %v652 = vunpack.c.l.s4 1934713408
    %v653 = vunpack.c.0.s8 %v652
    %v654 = vlaneseq
    %v655 = vshrl.u32 %v654, 7
    %v656 = vsub.s32 %v653, %v655
    %v657 = vrot.slane %v643, %v656
    %v658 = vcombine.low %v625, %v641
    %v659 = vcombine.high %v625, %v641
    %v661 = vunpack.c.l.s4 1934713408
    %v662 = vunpack.c.0.s8 %v661
    %v663 = vlaneseq
    %v664 = vshrl.u32 %v663, 7
    %v665 = vsub.s32 %v662, %v664
    %v666 = vrot.slane %v658, %v665
    %v668 = vunpack.c.l.s4 1934713408
    %v669 = vunpack.c.0.s8 %v668
    %v670 = vlaneseq
    %v671 = vshrl.u32 %v670, 7
    %v672 = vsub.s32 %v669, %v671
    %v673 = vrot.slane %v659, %v672
    %v674 = vcombine.high %v650, 0.0
    %v675 = vcombine.high %v657, 0.0
    %v676 = vcombine.high %v666, 0.0
    %v677 = vcombine.high %v673, 0.0
    %v678 = vcombine.low %v33, %v121
    %v679 = vcombine.high %v33, %v121
    %v681 = vunpack.c.l.s4 1983009808
    %v682 = vunpack.c.0.s8 %v681
    %v683 = vlaneseq
    %v684 = vshrl.u32 %v683, 7
    %v685 = vsub.s32 %v682, %v684
    %v686 = vrot.slane %v678, %v685
    %v688 = vunpack.c.l.s4 1983009808
    %v689 = vunpack.c.0.s8 %v688
    %v690 = vlaneseq
    %v691 = vshrl.u32 %v690, 7
    %v692 = vsub.s32 %v689, %v691
    %v693 = vrot.slane %v679, %v692
    %v694 = vcombine.low %v73, %v169
    %v695 = vcombine.high %v73, %v169
    %v697 = vunpack.c.l.s4 1983009808
    %v698 = vunpack.c.0.s8 %v697
    %v699 = vlaneseq
    %v700 = vshrl.u32 %v699, 7
    %v701 = vsub.s32 %v698, %v700
    %v702 = vrot.slane %v694, %v701
    %v704 = vunpack.c.l.s4 1983009808
    %v705 = vunpack.c.0.s8 %v704
    %v706 = vlaneseq
    %v707 = vshrl.u32 %v706, 7
    %v708 = vsub.s32 %v705, %v707
    %v709 = vrot.slane %v695, %v708
    %v710 = vcombine.low %v686, %v702
    %v711 = vcombine.high %v686, %v702
    %v713 = vunpack.c.l.s4 1934713408
    %v714 = vunpack.c.0.s8 %v713
    %v715 = vlaneseq
    %v716 = vshrl.u32 %v715, 7
    %v717 = vsub.s32 %v714, %v716
    %v718 = vrot.slane %v710, %v717
    %v720 = vunpack.c.l.s4 1934713408
    %v721 = vunpack.c.0.s8 %v720
    %v722 = vlaneseq
    %v723 = vshrl.u32 %v722, 7
    %v724 = vsub.s32 %v721, %v723
    %v725 = vrot.slane %v711, %v724
    %v726 = vcombine.low %v693, %v709
    %v727 = vcombine.high %v693, %v709
    %v729 = vunpack.c.l.s4 1934713408
    %v730 = vunpack.c.0.s8 %v729
    %v731 = vlaneseq
    %v732 = vshrl.u32 %v731, 7
    %v733 = vsub.s32 %v730, %v732
    %v734 = vrot.slane %v726, %v733
    %v736 = vunpack.c.l.s4 1934713408
    %v737 = vunpack.c.0.s8 %v736
    %v738 = vlaneseq
    %v739 = vshrl.u32 %v738, 7
    %v740 = vsub.s32 %v737, %v739
    %v741 = vrot.slane %v727, %v740
    %v742 = vcombine.high %v718, 0.0
    %v743 = vcombine.high %v725, 0.0
    %v744 = vcombine.high %v734, 0.0
    %v745 = vcombine.high %v741, 0.0
    %v746 = vcombine.low %v34, %v123
    %v747 = vcombine.high %v34, %v123
    %v749 = vunpack.c.l.s4 1983009808
    %v750 = vunpack.c.0.s8 %v749
    %v751 = vlaneseq
    %v752 = vshrl.u32 %v751, 7
    %v753 = vsub.s32 %v750, %v752
    %v754 = vrot.slane %v746, %v753
    %v756 = vunpack.c.l.s4 1983009808
    %v757 = vunpack.c.0.s8 %v756
    %v758 = vlaneseq
    %v759 = vshrl.u32 %v758, 7
    %v760 = vsub.s32 %v757, %v759
    %v761 = vrot.slane %v747, %v760
    %v762 = vcombine.low %v75, %v171
    %v763 = vcombine.high %v75, %v171
    %v765 = vunpack.c.l.s4 1983009808
    %v766 = vunpack.c.0.s8 %v765
    %v767 = vlaneseq
    %v768 = vshrl.u32 %v767, 7
    %v769 = vsub.s32 %v766, %v768
    %v770 = vrot.slane %v762, %v769
    %v772 = vunpack.c.l.s4 1983009808
    %v773 = vunpack.c.0.s8 %v772
    %v774 = vlaneseq
    %v775 = vshrl.u32 %v774, 7
    %v776 = vsub.s32 %v773, %v775
    %v777 = vrot.slane %v763, %v776
    %v778 = vcombine.low %v754, %v770
    %v779 = vcombine.high %v754, %v770
    %v781 = vunpack.c.l.s4 1934713408
    %v782 = vunpack.c.0.s8 %v781
    %v783 = vlaneseq
    %v784 = vshrl.u32 %v783, 7
    %v785 = vsub.s32 %v782, %v784
    %v786 = vrot.slane %v778, %v785
    %v788 = vunpack.c.l.s4 1934713408
    %v789 = vunpack.c.0.s8 %v788
    %v790 = vlaneseq
    %v791 = vshrl.u32 %v790, 7
    %v792 = vsub.s32 %v789, %v791
    %v793 = vrot.slane %v779, %v792
    %v794 = vcombine.low %v761, %v777
    %v795 = vcombine.high %v761, %v777
    %v797 = vunpack.c.l.s4 1934713408
    %v798 = vunpack.c.0.s8 %v797
    %v799 = vlaneseq
    %v800 = vshrl.u32 %v799, 7
    %v801 = vsub.s32 %v798, %v800
    %v802 = vrot.slane %v794, %v801
    %v804 = vunpack.c.l.s4 1934713408
    %v805 = vunpack.c.0.s8 %v804
    %v806 = vlaneseq
    %v807 = vshrl.u32 %v806, 7
    %v808 = vsub.s32 %v805, %v807
    %v809 = vrot.slane %v795, %v808
    %v810 = vcombine.high %v786, 0.0
    %v811 = vcombine.high %v793, 0.0
    %v812 = vcombine.high %v802, 0.0
    %v813 = vcombine.high %v809, 0.0
    %v814 = vcombine.low %v35, %v125
    %v815 = vcombine.high %v35, %v125
    %v817 = vunpack.c.l.s4 1983009808
    %v818 = vunpack.c.0.s8 %v817
    %v819 = vlaneseq
    %v820 = vshrl.u32 %v819, 7
    %v821 = vsub.s32 %v818, %v820
    %v822 = vrot.slane %v814, %v821
    %v824 = vunpack.c.l.s4 1983009808
    %v825 = vunpack.c.0.s8 %v824
    %v826 = vlaneseq
    %v827 = vshrl.u32 %v826, 7
    %v828 = vsub.s32 %v825, %v827
    %v829 = vrot.slane %v815, %v828
    %v830 = vcombine.low %v77, %v173
    %v831 = vcombine.high %v77, %v173
    %v833 = vunpack.c.l.s4 1983009808
    %v834 = vunpack.c.0.s8 %v833
    %v835 = vlaneseq
    %v836 = vshrl.u32 %v835, 7
    %v837 = vsub.s32 %v834, %v836
    %v838 = vrot.slane %v830, %v837
    %v840 = vunpack.c.l.s4 1983009808
    %v841 = vunpack.c.0.s8 %v840
    %v842 = vlaneseq
    %v843 = vshrl.u32 %v842, 7
    %v844 = vsub.s32 %v841, %v843
    %v845 = vrot.slane %v831, %v844
    %v846 = vcombine.low %v822, %v838
    %v847 = vcombine.high %v822, %v838
    %v849 = vunpack.c.l.s4 1934713408
    %v850 = vunpack.c.0.s8 %v849
    %v851 = vlaneseq
    %v852 = vshrl.u32 %v851, 7
    %v853 = vsub.s32 %v850, %v852
    %v854 = vrot.slane %v846, %v853
    %v856 = vunpack.c.l.s4 1934713408
    %v857 = vunpack.c.0.s8 %v856
    %v858 = vlaneseq
    %v859 = vshrl.u32 %v858, 7
    %v860 = vsub.s32 %v857, %v859
    %v861 = vrot.slane %v847, %v860
    %v862 = vcombine.low %v829, %v845
    %v863 = vcombine.high %v829, %v845
    %v865 = vunpack.c.l.s4 1934713408
    %v866 = vunpack.c.0.s8 %v865
    %v867 = vlaneseq
    %v868 = vshrl.u32 %v867, 7
    %v869 = vsub.s32 %v866, %v868
    %v870 = vrot.slane %v862, %v869
    %v872 = vunpack.c.l.s4 1934713408
    %v873 = vunpack.c.0.s8 %v872
    %v874 = vlaneseq
    %v875 = vshrl.u32 %v874, 7
    %v876 = vsub.s32 %v873, %v875
    %v877 = vrot.slane %v863, %v876
    %v878 = vcombine.high %v854, 0.0
    %v879 = vcombine.high %v861, 0.0
    %v880 = vcombine.high %v870, 0.0
    %v881 = vcombine.high %v877, 0.0
    %v882 = vcombine.low %v36, %v127
    %v883 = vcombine.high %v36, %v127
    %v885 = vunpack.c.l.s4 1983009808
    %v886 = vunpack.c.0.s8 %v885
    %v887 = vlaneseq
    %v888 = vshrl.u32 %v887, 7
    %v889 = vsub.s32 %v886, %v888
    %v890 = vrot.slane %v882, %v889
    %v892 = vunpack.c.l.s4 1983009808
    %v893 = vunpack.c.0.s8 %v892
    %v894 = vlaneseq
    %v895 = vshrl.u32 %v894, 7
    %v896 = vsub.s32 %v893, %v895
    %v897 = vrot.slane %v883, %v896
    %v898 = vcombine.low %v79, %v175
    %v899 = vcombine.high %v79, %v175
    %v901 = vunpack.c.l.s4 1983009808
    %v902 = vunpack.c.0.s8 %v901
    %v903 = vlaneseq
    %v904 = vshrl.u32 %v903, 7
    %v905 = vsub.s32 %v902, %v904
    %v906 = vrot.slane %v898, %v905
    %v908 = vunpack.c.l.s4 1983009808
    %v909 = vunpack.c.0.s8 %v908
    %v910 = vlaneseq
    %v911 = vshrl.u32 %v910, 7
    %v912 = vsub.s32 %v909, %v911
    %v913 = vrot.slane %v899, %v912
    %v914 = vcombine.low %v890, %v906
    %v915 = vcombine.high %v890, %v906
    %v917 = vunpack.c.l.s4 1934713408
    %v918 = vunpack.c.0.s8 %v917
    %v919 = vlaneseq
    %v920 = vshrl.u32 %v919, 7
    %v921 = vsub.s32 %v918, %v920
    %v922 = vrot.slane %v914, %v921
    %v924 = vunpack.c.l.s4 1934713408
    %v925 = vunpack.c.0.s8 %v924
    %v926 = vlaneseq
    %v927 = vshrl.u32 %v926, 7
    %v928 = vsub.s32 %v925, %v927
    %v929 = vrot.slane %v915, %v928
    %v930 = vcombine.low %v897, %v913
    %v931 = vcombine.high %v897, %v913
    %v933 = vunpack.c.l.s4 1934713408
    %v934 = vunpack.c.0.s8 %v933
    %v935 = vlaneseq
    %v936 = vshrl.u32 %v935, 7
    %v937 = vsub.s32 %v934, %v936
    %v938 = vrot.slane %v930, %v937
    %v940 = vunpack.c.l.s4 1934713408
    %v941 = vunpack.c.0.s8 %v940
    %v942 = vlaneseq
    %v943 = vshrl.u32 %v942, 7
    %v944 = vsub.s32 %v941, %v943
    %v945 = vrot.slane %v931, %v944
    %v946 = vcombine.high %v922, 0.0
    %v947 = vcombine.high %v929, 0.0
    %v948 = vcombine.high %v938, 0.0
    %v949 = vcombine.high %v945, 0.0
    %v950 = vcombine.low %v37, %v129
    %v951 = vcombine.high %v37, %v129
    %v953 = vunpack.c.l.s4 1983009808
    %v954 = vunpack.c.0.s8 %v953
    %v955 = vlaneseq
    %v956 = vshrl.u32 %v955, 7
    %v957 = vsub.s32 %v954, %v956
    %v958 = vrot.slane %v950, %v957
    %v960 = vunpack.c.l.s4 1983009808
    %v961 = vunpack.c.0.s8 %v960
    %v962 = vlaneseq
    %v963 = vshrl.u32 %v962, 7
    %v964 = vsub.s32 %v961, %v963
    %v965 = vrot.slane %v951, %v964
    %v966 = vcombine.low %v81, %v177
    %v967 = vcombine.high %v81, %v177
    %v969 = vunpack.c.l.s4 1983009808
    %v970 = vunpack.c.0.s8 %v969
    %v971 = vlaneseq
    %v972 = vshrl.u32 %v971, 7
    %v973 = vsub.s32 %v970, %v972
    %v974 = vrot.slane %v966, %v973
    %v976 = vunpack.c.l.s4 1983009808
    %v977 = vunpack.c.0.s8 %v976
    %v978 = vlaneseq
    %v979 = vshrl.u32 %v978, 7
    %v980 = vsub.s32 %v977, %v979
    %v981 = vrot.slane %v967, %v980
    %v982 = vcombine.low %v958, %v974
    %v983 = vcombine.high %v958, %v974
    %v985 = vunpack.c.l.s4 1934713408
    %v986 = vunpack.c.0.s8 %v985
    %v987 = vlaneseq
    %v988 = vshrl.u32 %v987, 7
    %v989 = vsub.s32 %v986, %v988
    %v990 = vrot.slane %v982, %v989
    %v992 = vunpack.c.l.s4 1934713408
    %v993 = vunpack.c.0.s8 %v992
    %v994 = vlaneseq
    %v995 = vshrl.u32 %v994, 7
    %v996 = vsub.s32 %v993, %v995
    %v997 = vrot.slane %v983, %v996
    %v998 = vcombine.low %v965, %v981
    %v999 = vcombine.high %v965, %v981
    %v1001 = vunpack.c.l.s4 1934713408
    %v1002 = vunpack.c.0.s8 %v1001
    %v1003 = vlaneseq
    %v1004 = vshrl.u32 %v1003, 7
    %v1005 = vsub.s32 %v1002, %v1004
    %v1006 = vrot.slane %v998, %v1005
    %v1008 = vunpack.c.l.s4 1934713408
    %v1009 = vunpack.c.0.s8 %v1008
    %v1010 = vlaneseq
    %v1011 = vshrl.u32 %v1010, 7
    %v1012 = vsub.s32 %v1009, %v1011
    %v1013 = vrot.slane %v999, %v1012
    %v1014 = vcombine.high %v990, 0.0
    %v1015 = vcombine.high %v997, 0.0
    %v1016 = vcombine.high %v1006, 0.0
    %v1017 = vcombine.high %v1013, 0.0
    %v1018 = vcombine.low %v38, %v131
    %v1019 = vcombine.high %v38, %v131
    %v1021 = vunpack.c.l.s4 1983009808
    %v1022 = vunpack.c.0.s8 %v1021
    %v1023 = vlaneseq
    %v1024 = vshrl.u32 %v1023, 7
    %v1025 = vsub.s32 %v1022, %v1024
    %v1026 = vrot.slane %v1018, %v1025
    %v1028 = vunpack.c.l.s4 1983009808
    %v1029 = vunpack.c.0.s8 %v1028
    %v1030 = vlaneseq
    %v1031 = vshrl.u32 %v1030, 7
    %v1032 = vsub.s32 %v1029, %v1031
    %v1033 = vrot.slane %v1019, %v1032
    %v1034 = vcombine.low %v83, %v179
    %v1035 = vcombine.high %v83, %v179
    %v1037 = vunpack.c.l.s4 1983009808
    %v1038 = vunpack.c.0.s8 %v1037
    %v1039 = vlaneseq
    %v1040 = vshrl.u32 %v1039, 7
    %v1041 = vsub.s32 %v1038, %v1040
    %v1042 = vrot.slane %v1034, %v1041
    %v1044 = vunpack.c.l.s4 1983009808
    %v1045 = vunpack.c.0.s8 %v1044
    %v1046 = vlaneseq
    %v1047 = vshrl.u32 %v1046, 7
    %v1048 = vsub.s32 %v1045, %v1047
    %v1049 = vrot.slane %v1035, %v1048
    %v1050 = vcombine.low %v1026, %v1042
    %v1051 = vcombine.high %v1026, %v1042
    %v1053 = vunpack.c.l.s4 1934713408
    %v1054 = vunpack.c.0.s8 %v1053
    %v1055 = vlaneseq
    %v1056 = vshrl.u32 %v1055, 7
    %v1057 = vsub.s32 %v1054, %v1056
    %v1058 = vrot.slane %v1050, %v1057
    %v1060 = vunpack.c.l.s4 1934713408
    %v1061 = vunpack.c.0.s8 %v1060
    %v1062 = vlaneseq
    %v1063 = vshrl.u32 %v1062, 7
    %v1064 = vsub.s32 %v1061, %v1063
    %v1065 = vrot.slane %v1051, %v1064
    %v1066 = vcombine.low %v1033, %v1049
    %v1067 = vcombine.high %v1033, %v1049
    %v1069 = vunpack.c.l.s4 1934713408
    %v1070 = vunpack.c.0.s8 %v1069
    %v1071 = vlaneseq
    %v1072 = vshrl.u32 %v1071, 7
    %v1073 = vsub.s32 %v1070, %v1072
    %v1074 = vrot.slane %v1066, %v1073
    %v1076 = vunpack.c.l.s4 1934713408
    %v1077 = vunpack.c.0.s8 %v1076
    %v1078 = vlaneseq
    %v1079 = vshrl.u32 %v1078, 7
    %v1080 = vsub.s32 %v1077, %v1079
    %v1081 = vrot.slane %v1067, %v1080
    %v1082 = vcombine.high %v1058, 0.0
    %v1083 = vcombine.high %v1065, 0.0
    %v1084 = vcombine.high %v1074, 0.0
    %v1085 = vcombine.high %v1081, 0.0
    %v1086 = vcombine.low %v39, %v133
    %v1087 = vcombine.high %v39, %v133
    %v1089 = vunpack.c.l.s4 1983009808
    %v1090 = vunpack.c.0.s8 %v1089
    %v1091 = vlaneseq
    %v1092 = vshrl.u32 %v1091, 7
    %v1093 = vsub.s32 %v1090, %v1092
    %v1094 = vrot.slane %v1086, %v1093
    %v1096 = vunpack.c.l.s4 1983009808
    %v1097 = vunpack.c.0.s8 %v1096
    %v1098 = vlaneseq
    %v1099 = vshrl.u32 %v1098, 7
    %v1100 = vsub.s32 %v1097, %v1099
    %v1101 = vrot.slane %v1087, %v1100
    %v1102 = vcombine.low %v85, %v181
    %v1103 = vcombine.high %v85, %v181
    %v1105 = vunpack.c.l.s4 1983009808
    %v1106 = vunpack.c.0.s8 %v1105
    %v1107 = vlaneseq
    %v1108 = vshrl.u32 %v1107, 7
    %v1109 = vsub.s32 %v1106, %v1108
    %v1110 = vrot.slane %v1102, %v1109
    %v1112 = vunpack.c.l.s4 1983009808
    %v1113 = vunpack.c.0.s8 %v1112
    %v1114 = vlaneseq
    %v1115 = vshrl.u32 %v1114, 7
    %v1116 = vsub.s32 %v1113, %v1115
    %v1117 = vrot.slane %v1103, %v1116
    %v1118 = vcombine.low %v1094, %v1110
    %v1119 = vcombine.high %v1094, %v1110
    %v1121 = vunpack.c.l.s4 1934713408
    %v1122 = vunpack.c.0.s8 %v1121
    %v1123 = vlaneseq
    %v1124 = vshrl.u32 %v1123, 7
    %v1125 = vsub.s32 %v1122, %v1124
    %v1126 = vrot.slane %v1118, %v1125
    %v1128 = vunpack.c.l.s4 1934713408
    %v1129 = vunpack.c.0.s8 %v1128
    %v1130 = vlaneseq
    %v1131 = vshrl.u32 %v1130, 7
    %v1132 = vsub.s32 %v1129, %v1131
    %v1133 = vrot.slane %v1119, %v1132
    %v1134 = vcombine.low %v1101, %v1117
    %v1135 = vcombine.high %v1101, %v1117
    %v1137 = vunpack.c.l.s4 1934713408
    %v1138 = vunpack.c.0.s8 %v1137
    %v1139 = vlaneseq
    %v1140 = vshrl.u32 %v1139, 7
    %v1141 = vsub.s32 %v1138, %v1140
    %v1142 = vrot.slane %v1134, %v1141
    %v1144 = vunpack.c.l.s4 1934713408
    %v1145 = vunpack.c.0.s8 %v1144
    %v1146 = vlaneseq
    %v1147 = vshrl.u32 %v1146, 7
    %v1148 = vsub.s32 %v1145, %v1147
    %v1149 = vrot.slane %v1135, %v1148
    %v1150 = vcombine.high %v1126, 0.0
    %v1151 = vcombine.high %v1133, 0.0
    %v1152 = vcombine.high %v1142, 0.0
    %v1153 = vcombine.high %v1149, 0.0
    %v1154 = vcombine.low %v40, %v135
    %v1155 = vcombine.high %v40, %v135
    %v1157 = vunpack.c.l.s4 1983009808
    %v1158 = vunpack.c.0.s8 %v1157
    %v1159 = vlaneseq
    %v1160 = vshrl.u32 %v1159, 7
    %v1161 = vsub.s32 %v1158, %v1160
    %v1162 = vrot.slane %v1154, %v1161
    %v1164 = vunpack.c.l.s4 1983009808
    %v1165 = vunpack.c.0.s8 %v1164
    %v1166 = vlaneseq
    %v1167 = vshrl.u32 %v1166, 7
    %v1168 = vsub.s32 %v1165, %v1167
    %v1169 = vrot.slane %v1155, %v1168
    %v1170 = vcombine.low %v87, %v183
    %v1171 = vcombine.high %v87, %v183
    %v1173 = vunpack.c.l.s4 1983009808
    %v1174 = vunpack.c.0.s8 %v1173
    %v1175 = vlaneseq
    %v1176 = vshrl.u32 %v1175, 7
    %v1177 = vsub.s32 %v1174, %v1176
    %v1178 = vrot.slane %v1170, %v1177
    %v1180 = vunpack.c.l.s4 1983009808
    %v1181 = vunpack.c.0.s8 %v1180
    %v1182 = vlaneseq
    %v1183 = vshrl.u32 %v1182, 7
    %v1184 = vsub.s32 %v1181, %v1183
    %v1185 = vrot.slane %v1171, %v1184
    %v1186 = vcombine.low %v1162, %v1178
    %v1187 = vcombine.high %v1162, %v1178
    %v1189 = vunpack.c.l.s4 1934713408
    %v1190 = vunpack.c.0.s8 %v1189
    %v1191 = vlaneseq
    %v1192 = vshrl.u32 %v1191, 7
    %v1193 = vsub.s32 %v1190, %v1192
    %v1194 = vrot.slane %v1186, %v1193
    %v1196 = vunpack.c.l.s4 1934713408
    %v1197 = vunpack.c.0.s8 %v1196
    %v1198 = vlaneseq
    %v1199 = vshrl.u32 %v1198, 7
    %v1200 = vsub.s32 %v1197, %v1199
    %v1201 = vrot.slane %v1187, %v1200
    %v1202 = vcombine.low %v1169, %v1185
    %v1203 = vcombine.high %v1169, %v1185
    %v1205 = vunpack.c.l.s4 1934713408
    %v1206 = vunpack.c.0.s8 %v1205
    %v1207 = vlaneseq
    %v1208 = vshrl.u32 %v1207, 7
    %v1209 = vsub.s32 %v1206, %v1208
    %v1210 = vrot.slane %v1202, %v1209
    %v1212 = vunpack.c.l.s4 1934713408
    %v1213 = vunpack.c.0.s8 %v1212
    %v1214 = vlaneseq
    %v1215 = vshrl.u32 %v1214, 7
    %v1216 = vsub.s32 %v1213, %v1215
    %v1217 = vrot.slane %v1203, %v1216
    %v1218 = vcombine.high %v1194, 0.0
    %v1219 = vcombine.high %v1201, 0.0
    %v1220 = vcombine.high %v1210, 0.0
    %v1221 = vcombine.high %v1217, 0.0
    %v1222 = vcombine.low %v41, %v137
    %v1223 = vcombine.high %v41, %v137
    %v1225 = vunpack.c.l.s4 1983009808
    %v1226 = vunpack.c.0.s8 %v1225
    %v1227 = vlaneseq
    %v1228 = vshrl.u32 %v1227, 7
    %v1229 = vsub.s32 %v1226, %v1228
    %v1230 = vrot.slane %v1222, %v1229
    %v1232 = vunpack.c.l.s4 1983009808
    %v1233 = vunpack.c.0.s8 %v1232
    %v1234 = vlaneseq
    %v1235 = vshrl.u32 %v1234, 7
    %v1236 = vsub.s32 %v1233, %v1235
    %v1237 = vrot.slane %v1223, %v1236
    %v1238 = vcombine.low %v89, %v185
    %v1239 = vcombine.high %v89, %v185
    %v1241 = vunpack.c.l.s4 1983009808
    %v1242 = vunpack.c.0.s8 %v1241
    %v1243 = vlaneseq
    %v1244 = vshrl.u32 %v1243, 7
    %v1245 = vsub.s32 %v1242, %v1244
    %v1246 = vrot.slane %v1238, %v1245
    %v1248 = vunpack.c.l.s4 1983009808
    %v1249 = vunpack.c.0.s8 %v1248
    %v1250 = vlaneseq
    %v1251 = vshrl.u32 %v1250, 7
    %v1252 = vsub.s32 %v1249, %v1251
    %v1253 = vrot.slane %v1239, %v1252
    %v1254 = vcombine.low %v1230, %v1246
    %v1255 = vcombine.high %v1230, %v1246
    %v1257 = vunpack.c.l.s4 1934713408
    %v1258 = vunpack.c.0.s8 %v1257
    %v1259 = vlaneseq
    %v1260 = vshrl.u32 %v1259, 7
    %v1261 = vsub.s32 %v1258, %v1260
    %v1262 = vrot.slane %v1254, %v1261
    %v1264 = vunpack.c.l.s4 1934713408
    %v1265 = vunpack.c.0.s8 %v1264
    %v1266 = vlaneseq
    %v1267 = vshrl.u32 %v1266, 7
    %v1268 = vsub.s32 %v1265, %v1267
    %v1269 = vrot.slane %v1255, %v1268
    %v1270 = vcombine.low %v1237, %v1253
    %v1271 = vcombine.high %v1237, %v1253
    %v1273 = vunpack.c.l.s4 1934713408
    %v1274 = vunpack.c.0.s8 %v1273
    %v1275 = vlaneseq
    %v1276 = vshrl.u32 %v1275, 7
    %v1277 = vsub.s32 %v1274, %v1276
    %v1278 = vrot.slane %v1270, %v1277
    %v1280 = vunpack.c.l.s4 1934713408
    %v1281 = vunpack.c.0.s8 %v1280
    %v1282 = vlaneseq
    %v1283 = vshrl.u32 %v1282, 7
    %v1284 = vsub.s32 %v1281, %v1283
    %v1285 = vrot.slane %v1271, %v1284
    %v1286 = vcombine.high %v1262, 0.0
    %v1287 = vcombine.high %v1269, 0.0
    %v1288 = vcombine.high %v1278, 0.0
    %v1289 = vcombine.high %v1285, 0.0
    %vm1290 = vcmask 257024
    %v1291 = vsel %vm1290, %v242, 0.0
    %1292 = vadd.xlane.f32.xlu0 %v1291
    %v1293 = vpop.xlane.xlu0 %1292
    %v1294 = vsel %vm1290, %v266, 0.0
    %1295 = vadd.xlane.f32.xlu0 %v1294
    %v1296 = vpop.xlane.xlu0 %1295
    %v1297 = vsel %vm1290, %v249, 0.0
    %1298 = vadd.xlane.f32.xlu0 %v1297
    %v1299 = vpop.xlane.xlu0 %1298
    %v1300 = vsel %vm1290, %v267, 0.0
    %1301 = vadd.xlane.f32.xlu0 %v1300
    %v1302 = vpop.xlane.xlu0 %1301
    %v1303 = vsel %vm1290, %v258, 0.0
    %1304 = vadd.xlane.f32.xlu0 %v1303
    %v1305 = vpop.xlane.xlu0 %1304
    %v1306 = vsel %vm1290, %v268, 0.0
    %1307 = vadd.xlane.f32.xlu0 %v1306
    %v1308 = vpop.xlane.xlu0 %1307
    %v1309 = vsel %vm1290, %v265, 0.0
    %1310 = vadd.xlane.f32.xlu0 %v1309
    %v1311 = vpop.xlane.xlu0 %1310
    %v1312 = vsel %vm1290, %v269, 0.0
    %1313 = vadd.xlane.f32.xlu0 %v1312
    %v1314 = vpop.xlane.xlu0 %1313
    %v1315 = vsel %vm1290, %v310, 0.0
    %1316 = vadd.xlane.f32.xlu0 %v1315
    %v1317 = vpop.xlane.xlu0 %1316
    %v1318 = vsel %vm1290, %v334, 0.0
    %1319 = vadd.xlane.f32.xlu0 %v1318
    %v1320 = vpop.xlane.xlu0 %1319
    %v1321 = vsel %vm1290, %v317, 0.0
    %1322 = vadd.xlane.f32.xlu0 %v1321
    %v1323 = vpop.xlane.xlu0 %1322
    %v1324 = vsel %vm1290, %v335, 0.0
    %1325 = vadd.xlane.f32.xlu0 %v1324
    %v1326 = vpop.xlane.xlu0 %1325
    %v1327 = vsel %vm1290, %v326, 0.0
    %1328 = vadd.xlane.f32.xlu0 %v1327
    %v1329 = vpop.xlane.xlu0 %1328
    %v1330 = vsel %vm1290, %v336, 0.0
    %1331 = vadd.xlane.f32.xlu0 %v1330
    %v1332 = vpop.xlane.xlu0 %1331
    %v1333 = vsel %vm1290, %v333, 0.0
    %1334 = vadd.xlane.f32.xlu0 %v1333
    %v1335 = vpop.xlane.xlu0 %1334
    %v1336 = vsel %vm1290, %v337, 0.0
    %1337 = vadd.xlane.f32.xlu0 %v1336
    %v1338 = vpop.xlane.xlu0 %1337
    %v1339 = vsel %vm1290, %v378, 0.0
    %1340 = vadd.xlane.f32.xlu0 %v1339
    %v1341 = vpop.xlane.xlu0 %1340
    %v1342 = vsel %vm1290, %v402, 0.0
    %1343 = vadd.xlane.f32.xlu0 %v1342
    %v1344 = vpop.xlane.xlu0 %1343
    %v1345 = vsel %vm1290, %v385, 0.0
    %1346 = vadd.xlane.f32.xlu0 %v1345
    %v1347 = vpop.xlane.xlu0 %1346
    %v1348 = vsel %vm1290, %v403, 0.0
    %1349 = vadd.xlane.f32.xlu0 %v1348
    %v1350 = vpop.xlane.xlu0 %1349
    %v1351 = vsel %vm1290, %v394, 0.0
    %1352 = vadd.xlane.f32.xlu0 %v1351
    %v1353 = vpop.xlane.xlu0 %1352
    %v1354 = vsel %vm1290, %v404, 0.0
    %1355 = vadd.xlane.f32.xlu0 %v1354
    %v1356 = vpop.xlane.xlu0 %1355
    %v1357 = vsel %vm1290, %v401, 0.0
    %1358 = vadd.xlane.f32.xlu0 %v1357
    %v1359 = vpop.xlane.xlu0 %1358
    %v1360 = vsel %vm1290, %v405, 0.0
    %1361 = vadd.xlane.f32.xlu0 %v1360
    %v1362 = vpop.xlane.xlu0 %1361
    %v1363 = vsel %vm1290, %v446, 0.0
    %1364 = vadd.xlane.f32.xlu0 %v1363
    %v1365 = vpop.xlane.xlu0 %1364
    %v1366 = vsel %vm1290, %v470, 0.0
    %1367 = vadd.xlane.f32.xlu0 %v1366
    %v1368 = vpop.xlane.xlu0 %1367
    %v1369 = vsel %vm1290, %v453, 0.0
    %1370 = vadd.xlane.f32.xlu0 %v1369
    %v1371 = vpop.xlane.xlu0 %1370
    %v1372 = vsel %vm1290, %v471, 0.0
    %1373 = vadd.xlane.f32.xlu0 %v1372
    %v1374 = vpop.xlane.xlu0 %1373
    %v1375 = vsel %vm1290, %v462, 0.0
    %1376 = vadd.xlane.f32.xlu0 %v1375
    %v1377 = vpop.xlane.xlu0 %1376
    %v1378 = vsel %vm1290, %v472, 0.0
    %1379 = vadd.xlane.f32.xlu0 %v1378
    %v1380 = vpop.xlane.xlu0 %1379
    %v1381 = vsel %vm1290, %v469, 0.0
    %1382 = vadd.xlane.f32.xlu0 %v1381
    %v1383 = vpop.xlane.xlu0 %1382
    %v1384 = vsel %vm1290, %v473, 0.0
    %1385 = vadd.xlane.f32.xlu0 %v1384
    %v1386 = vpop.xlane.xlu0 %1385
    %v1387 = vsel %vm1290, %v514, 0.0
    %1388 = vadd.xlane.f32.xlu0 %v1387
    %v1389 = vpop.xlane.xlu0 %1388
    %v1390 = vsel %vm1290, %v538, 0.0
    %1391 = vadd.xlane.f32.xlu0 %v1390
    %v1392 = vpop.xlane.xlu0 %1391
    %v1393 = vsel %vm1290, %v521, 0.0
    %1394 = vadd.xlane.f32.xlu0 %v1393
    %v1395 = vpop.xlane.xlu0 %1394
    %v1396 = vsel %vm1290, %v539, 0.0
    %1397 = vadd.xlane.f32.xlu0 %v1396
    %v1398 = vpop.xlane.xlu0 %1397
    %v1399 = vsel %vm1290, %v530, 0.0
    %1400 = vadd.xlane.f32.xlu0 %v1399
    %v1401 = vpop.xlane.xlu0 %1400
    %v1402 = vsel %vm1290, %v540, 0.0
    %1403 = vadd.xlane.f32.xlu0 %v1402
    %v1404 = vpop.xlane.xlu0 %1403
    %v1405 = vsel %vm1290, %v537, 0.0
    %1406 = vadd.xlane.f32.xlu0 %v1405
    %v1407 = vpop.xlane.xlu0 %1406
    %v1408 = vsel %vm1290, %v541, 0.0
    %1409 = vadd.xlane.f32.xlu0 %v1408
    %v1410 = vpop.xlane.xlu0 %1409
    %v1411 = vsel %vm1290, %v582, 0.0
    %1412 = vadd.xlane.f32.xlu0 %v1411
    %v1413 = vpop.xlane.xlu0 %1412
    %v1414 = vsel %vm1290, %v606, 0.0
    %1415 = vadd.xlane.f32.xlu0 %v1414
    %v1416 = vpop.xlane.xlu0 %1415
    %v1417 = vsel %vm1290, %v589, 0.0
    %1418 = vadd.xlane.f32.xlu0 %v1417
    %v1419 = vpop.xlane.xlu0 %1418
    %v1420 = vsel %vm1290, %v607, 0.0
    %1421 = vadd.xlane.f32.xlu0 %v1420
    %v1422 = vpop.xlane.xlu0 %1421
    %v1423 = vsel %vm1290, %v598, 0.0
    %1424 = vadd.xlane.f32.xlu0 %v1423
    %v1425 = vpop.xlane.xlu0 %1424
    %v1426 = vsel %vm1290, %v608, 0.0
    %1427 = vadd.xlane.f32.xlu0 %v1426
    %v1428 = vpop.xlane.xlu0 %1427
    %v1429 = vsel %vm1290, %v605, 0.0
    %1430 = vadd.xlane.f32.xlu0 %v1429
    %v1431 = vpop.xlane.xlu0 %1430
    %v1432 = vsel %vm1290, %v609, 0.0
    %1433 = vadd.xlane.f32.xlu0 %v1432
    %v1434 = vpop.xlane.xlu0 %1433
    %v1435 = vsel %vm1290, %v650, 0.0
    %1436 = vadd.xlane.f32.xlu0 %v1435
    %v1437 = vpop.xlane.xlu0 %1436
    %v1438 = vsel %vm1290, %v674, 0.0
    %1439 = vadd.xlane.f32.xlu0 %v1438
    %v1440 = vpop.xlane.xlu0 %1439
    %v1441 = vsel %vm1290, %v657, 0.0
    %1442 = vadd.xlane.f32.xlu0 %v1441
    %v1443 = vpop.xlane.xlu0 %1442
    %v1444 = vsel %vm1290, %v675, 0.0
    %1445 = vadd.xlane.f32.xlu0 %v1444
    %v1446 = vpop.xlane.xlu0 %1445
    %v1447 = vsel %vm1290, %v666, 0.0
    %1448 = vadd.xlane.f32.xlu0 %v1447
    %v1449 = vpop.xlane.xlu0 %1448
    %v1450 = vsel %vm1290, %v676, 0.0
    %1451 = vadd.xlane.f32.xlu0 %v1450
    %v1452 = vpop.xlane.xlu0 %1451
    %v1453 = vsel %vm1290, %v673, 0.0
    %1454 = vadd.xlane.f32.xlu0 %v1453
    %v1455 = vpop.xlane.xlu0 %1454
    %v1456 = vsel %vm1290, %v677, 0.0
    %1457 = vadd.xlane.f32.xlu0 %v1456
    %v1458 = vpop.xlane.xlu0 %1457
    %v1459 = vsel %vm1290, %v718, 0.0
    %1460 = vadd.xlane.f32.xlu0 %v1459
    %v1461 = vpop.xlane.xlu0 %1460
    %v1462 = vsel %vm1290, %v742, 0.0
    %1463 = vadd.xlane.f32.xlu0 %v1462
    %v1464 = vpop.xlane.xlu0 %1463
    %v1465 = vsel %vm1290, %v725, 0.0
    %1466 = vadd.xlane.f32.xlu0 %v1465
    %v1467 = vpop.xlane.xlu0 %1466
    %v1468 = vsel %vm1290, %v743, 0.0
    %1469 = vadd.xlane.f32.xlu0 %v1468
    %v1470 = vpop.xlane.xlu0 %1469
    %v1471 = vsel %vm1290, %v734, 0.0
    %1472 = vadd.xlane.f32.xlu0 %v1471
    %v1473 = vpop.xlane.xlu0 %1472
    %v1474 = vsel %vm1290, %v744, 0.0
    %1475 = vadd.xlane.f32.xlu0 %v1474
    %v1476 = vpop.xlane.xlu0 %1475
    %v1477 = vsel %vm1290, %v741, 0.0
    %1478 = vadd.xlane.f32.xlu0 %v1477
    %v1479 = vpop.xlane.xlu0 %1478
    %v1480 = vsel %vm1290, %v745, 0.0
    %1481 = vadd.xlane.f32.xlu0 %v1480
    %v1482 = vpop.xlane.xlu0 %1481
    %v1483 = vsel %vm1290, %v786, 0.0
    %1484 = vadd.xlane.f32.xlu0 %v1483
    %v1485 = vpop.xlane.xlu0 %1484
    %v1486 = vsel %vm1290, %v810, 0.0
    %1487 = vadd.xlane.f32.xlu0 %v1486
    %v1488 = vpop.xlane.xlu0 %1487
    %v1489 = vsel %vm1290, %v793, 0.0
    %1490 = vadd.xlane.f32.xlu0 %v1489
    %v1491 = vpop.xlane.xlu0 %1490
    %v1492 = vsel %vm1290, %v811, 0.0
    %1493 = vadd.xlane.f32.xlu0 %v1492
    %v1494 = vpop.xlane.xlu0 %1493
    %v1495 = vsel %vm1290, %v802, 0.0
    %1496 = vadd.xlane.f32.xlu0 %v1495
    %v1497 = vpop.xlane.xlu0 %1496
    %v1498 = vsel %vm1290, %v812, 0.0
    %1499 = vadd.xlane.f32.xlu0 %v1498
    %v1500 = vpop.xlane.xlu0 %1499
    %v1501 = vsel %vm1290, %v809, 0.0
    %1502 = vadd.xlane.f32.xlu0 %v1501
    %v1503 = vpop.xlane.xlu0 %1502
    %v1504 = vsel %vm1290, %v813, 0.0
    %1505 = vadd.xlane.f32.xlu0 %v1504
    %v1506 = vpop.xlane.xlu0 %1505
    %v1507 = vsel %vm1290, %v854, 0.0
    %1508 = vadd.xlane.f32.xlu0 %v1507
    %v1509 = vpop.xlane.xlu0 %1508
    %v1510 = vsel %vm1290, %v878, 0.0
    %1511 = vadd.xlane.f32.xlu0 %v1510
    %v1512 = vpop.xlane.xlu0 %1511
    %v1513 = vsel %vm1290, %v861, 0.0
    %1514 = vadd.xlane.f32.xlu0 %v1513
    %v1515 = vpop.xlane.xlu0 %1514
    %v1516 = vsel %vm1290, %v879, 0.0
    %1517 = vadd.xlane.f32.xlu0 %v1516
    %v1518 = vpop.xlane.xlu0 %1517
    %v1519 = vsel %vm1290, %v870, 0.0
    %1520 = vadd.xlane.f32.xlu0 %v1519
    %v1521 = vpop.xlane.xlu0 %1520
    %v1522 = vsel %vm1290, %v880, 0.0
    %1523 = vadd.xlane.f32.xlu0 %v1522
    %v1524 = vpop.xlane.xlu0 %1523
    %v1525 = vsel %vm1290, %v877, 0.0
    %1526 = vadd.xlane.f32.xlu0 %v1525
    %v1527 = vpop.xlane.xlu0 %1526
    %v1528 = vsel %vm1290, %v881, 0.0
    %1529 = vadd.xlane.f32.xlu0 %v1528
    %v1530 = vpop.xlane.xlu0 %1529
    %v1531 = vsel %vm1290, %v922, 0.0
    %1532 = vadd.xlane.f32.xlu0 %v1531
    %v1533 = vpop.xlane.xlu0 %1532
    %v1534 = vsel %vm1290, %v946, 0.0
    %1535 = vadd.xlane.f32.xlu0 %v1534
    %v1536 = vpop.xlane.xlu0 %1535
    %v1537 = vsel %vm1290, %v929, 0.0
    %1538 = vadd.xlane.f32.xlu0 %v1537
    %v1539 = vpop.xlane.xlu0 %1538
    %v1540 = vsel %vm1290, %v947, 0.0
    %1541 = vadd.xlane.f32.xlu0 %v1540
    %v1542 = vpop.xlane.xlu0 %1541
    %v1543 = vsel %vm1290, %v938, 0.0
    %1544 = vadd.xlane.f32.xlu0 %v1543
    %v1545 = vpop.xlane.xlu0 %1544
    %v1546 = vsel %vm1290, %v948, 0.0
    %1547 = vadd.xlane.f32.xlu0 %v1546
    %v1548 = vpop.xlane.xlu0 %1547
    %v1549 = vsel %vm1290, %v945, 0.0
    %1550 = vadd.xlane.f32.xlu0 %v1549
    %v1551 = vpop.xlane.xlu0 %1550
    %v1552 = vsel %vm1290, %v949, 0.0
    %1553 = vadd.xlane.f32.xlu0 %v1552
    %v1554 = vpop.xlane.xlu0 %1553
    %v1555 = vsel %vm1290, %v990, 0.0
    %1556 = vadd.xlane.f32.xlu0 %v1555
    %v1557 = vpop.xlane.xlu0 %1556
    %v1558 = vsel %vm1290, %v1014, 0.0
    %1559 = vadd.xlane.f32.xlu0 %v1558
    %v1560 = vpop.xlane.xlu0 %1559
    %v1561 = vsel %vm1290, %v997, 0.0
    %1562 = vadd.xlane.f32.xlu0 %v1561
    %v1563 = vpop.xlane.xlu0 %1562
    %v1564 = vsel %vm1290, %v1015, 0.0
    %1565 = vadd.xlane.f32.xlu0 %v1564
    %v1566 = vpop.xlane.xlu0 %1565
    %v1567 = vsel %vm1290, %v1006, 0.0
    %1568 = vadd.xlane.f32.xlu0 %v1567
    %v1569 = vpop.xlane.xlu0 %1568
    %v1570 = vsel %vm1290, %v1016, 0.0
    %1571 = vadd.xlane.f32.xlu0 %v1570
    %v1572 = vpop.xlane.xlu0 %1571
    %v1573 = vsel %vm1290, %v1013, 0.0
    %1574 = vadd.xlane.f32.xlu0 %v1573
    %v1575 = vpop.xlane.xlu0 %1574
    %v1576 = vsel %vm1290, %v1017, 0.0
    %1577 = vadd.xlane.f32.xlu0 %v1576
    %v1578 = vpop.xlane.xlu0 %1577
    %v1579 = vsel %vm1290, %v1058, 0.0
    %1580 = vadd.xlane.f32.xlu0 %v1579
    %v1581 = vpop.xlane.xlu0 %1580
    %v1582 = vsel %vm1290, %v1082, 0.0
    %1583 = vadd.xlane.f32.xlu0 %v1582
    %v1584 = vpop.xlane.xlu0 %1583
    %v1585 = vsel %vm1290, %v1065, 0.0
    %1586 = vadd.xlane.f32.xlu0 %v1585
    %v1587 = vpop.xlane.xlu0 %1586
    %v1588 = vsel %vm1290, %v1083, 0.0
    %1589 = vadd.xlane.f32.xlu0 %v1588
    %v1590 = vpop.xlane.xlu0 %1589
    %v1591 = vsel %vm1290, %v1074, 0.0
    %1592 = vadd.xlane.f32.xlu0 %v1591
    %v1593 = vpop.xlane.xlu0 %1592
    %v1594 = vsel %vm1290, %v1084, 0.0
    %1595 = vadd.xlane.f32.xlu0 %v1594
    %v1596 = vpop.xlane.xlu0 %1595
    %v1597 = vsel %vm1290, %v1081, 0.0
    %1598 = vadd.xlane.f32.xlu0 %v1597
    %v1599 = vpop.xlane.xlu0 %1598
    %v1600 = vsel %vm1290, %v1085, 0.0
    %1601 = vadd.xlane.f32.xlu0 %v1600
    %v1602 = vpop.xlane.xlu0 %1601
    %v1603 = vsel %vm1290, %v1126, 0.0
    %1604 = vadd.xlane.f32.xlu0 %v1603
    %v1605 = vpop.xlane.xlu0 %1604
    %v1606 = vsel %vm1290, %v1150, 0.0
    %1607 = vadd.xlane.f32.xlu0 %v1606
    %v1608 = vpop.xlane.xlu0 %1607
    %v1609 = vsel %vm1290, %v1133, 0.0
    %1610 = vadd.xlane.f32.xlu0 %v1609
    %v1611 = vpop.xlane.xlu0 %1610
    %v1612 = vsel %vm1290, %v1151, 0.0
    %1613 = vadd.xlane.f32.xlu0 %v1612
    %v1614 = vpop.xlane.xlu0 %1613
    %v1615 = vsel %vm1290, %v1142, 0.0
    %1616 = vadd.xlane.f32.xlu0 %v1615
    %v1617 = vpop.xlane.xlu0 %1616
    %v1618 = vsel %vm1290, %v1152, 0.0
    %1619 = vadd.xlane.f32.xlu0 %v1618
    %v1620 = vpop.xlane.xlu0 %1619
    %v1621 = vsel %vm1290, %v1149, 0.0
    %1622 = vadd.xlane.f32.xlu0 %v1621
    %v1623 = vpop.xlane.xlu0 %1622
    %v1624 = vsel %vm1290, %v1153, 0.0
    %1625 = vadd.xlane.f32.xlu0 %v1624
    %v1626 = vpop.xlane.xlu0 %1625
    %v1627 = vsel %vm1290, %v1194, 0.0
    %1628 = vadd.xlane.f32.xlu0 %v1627
    %v1629 = vpop.xlane.xlu0 %1628
    %v1630 = vsel %vm1290, %v1218, 0.0
    %1631 = vadd.xlane.f32.xlu0 %v1630
    %v1632 = vpop.xlane.xlu0 %1631
    %v1633 = vsel %vm1290, %v1201, 0.0
    %1634 = vadd.xlane.f32.xlu0 %v1633
    %v1635 = vpop.xlane.xlu0 %1634
    %v1636 = vsel %vm1290, %v1219, 0.0
    %1637 = vadd.xlane.f32.xlu0 %v1636
    %v1638 = vpop.xlane.xlu0 %1637
    %v1639 = vsel %vm1290, %v1210, 0.0
    %1640 = vadd.xlane.f32.xlu0 %v1639
    %v1641 = vpop.xlane.xlu0 %1640
    %v1642 = vsel %vm1290, %v1220, 0.0
    %1643 = vadd.xlane.f32.xlu0 %v1642
    %v1644 = vpop.xlane.xlu0 %1643
    %v1645 = vsel %vm1290, %v1217, 0.0
    %1646 = vadd.xlane.f32.xlu0 %v1645
    %v1647 = vpop.xlane.xlu0 %1646
    %v1648 = vsel %vm1290, %v1221, 0.0
    %1649 = vadd.xlane.f32.xlu0 %v1648
    %v1650 = vpop.xlane.xlu0 %1649
    %v1651 = vsel %vm1290, %v1262, 0.0
    %1652 = vadd.xlane.f32.xlu0 %v1651
    %v1653 = vpop.xlane.xlu0 %1652
    %v1654 = vsel %vm1290, %v1286, 0.0
    %1655 = vadd.xlane.f32.xlu0 %v1654
    %v1656 = vpop.xlane.xlu0 %1655
    %v1657 = vsel %vm1290, %v1269, 0.0
    %1658 = vadd.xlane.f32.xlu0 %v1657
    %v1659 = vpop.xlane.xlu0 %1658
    %v1660 = vsel %vm1290, %v1287, 0.0
    %1661 = vadd.xlane.f32.xlu0 %v1660
    %v1662 = vpop.xlane.xlu0 %1661
    %v1663 = vsel %vm1290, %v1278, 0.0
    %1664 = vadd.xlane.f32.xlu0 %v1663
    %v1665 = vpop.xlane.xlu0 %1664
    %v1666 = vsel %vm1290, %v1288, 0.0
    %1667 = vadd.xlane.f32.xlu0 %v1666
    %v1668 = vpop.xlane.xlu0 %1667
    %v1669 = vsel %vm1290, %v1285, 0.0
    %1670 = vadd.xlane.f32.xlu0 %v1669
    %v1671 = vpop.xlane.xlu0 %1670
    %v1672 = vsel %vm1290, %v1289, 0.0
    %1673 = vadd.xlane.f32.xlu0 %v1672
    %v1674 = vpop.xlane.xlu0 %1673
    %v1675 = vrcp.pop 32.0
    %v1676 = vmul.f32 %v1293, %v1675
    %v1677 = vmul.f32 %v1296, %v1675
    %v1678 = vmul.f32 %v1299, %v1675
    %v1679 = vmul.f32 %v1302, %v1675
    %v1680 = vmul.f32 %v1305, %v1675
    %v1681 = vmul.f32 %v1308, %v1675
    %v1682 = vmul.f32 %v1311, %v1675
    %v1683 = vmul.f32 %v1314, %v1675
    %v1684 = vmul.f32 %v1317, %v1675
    %v1685 = vmul.f32 %v1320, %v1675
    %v1686 = vmul.f32 %v1323, %v1675
    %v1687 = vmul.f32 %v1326, %v1675
    %v1688 = vmul.f32 %v1329, %v1675
    %v1689 = vmul.f32 %v1332, %v1675
    %v1690 = vmul.f32 %v1335, %v1675
    %v1691 = vmul.f32 %v1338, %v1675
    %v1692 = vmul.f32 %v1341, %v1675
    %v1693 = vmul.f32 %v1344, %v1675
    %v1694 = vmul.f32 %v1347, %v1675
    %v1695 = vmul.f32 %v1350, %v1675
    %v1696 = vmul.f32 %v1353, %v1675
    %v1697 = vmul.f32 %v1356, %v1675
    %v1698 = vmul.f32 %v1359, %v1675
    %v1699 = vmul.f32 %v1362, %v1675
    %v1700 = vmul.f32 %v1365, %v1675
    %v1701 = vmul.f32 %v1368, %v1675
    %v1702 = vmul.f32 %v1371, %v1675
    %v1703 = vmul.f32 %v1374, %v1675
    %v1704 = vmul.f32 %v1377, %v1675
    %v1705 = vmul.f32 %v1380, %v1675
    %v1706 = vmul.f32 %v1383, %v1675
    %v1707 = vmul.f32 %v1386, %v1675
    %v1708 = vmul.f32 %v1389, %v1675
    %v1709 = vmul.f32 %v1392, %v1675
    %v1710 = vmul.f32 %v1395, %v1675
    %v1711 = vmul.f32 %v1398, %v1675
    %v1712 = vmul.f32 %v1401, %v1675
    %v1713 = vmul.f32 %v1404, %v1675
    %v1714 = vmul.f32 %v1407, %v1675
    %v1715 = vmul.f32 %v1410, %v1675
    %v1716 = vmul.f32 %v1413, %v1675
    %v1717 = vmul.f32 %v1416, %v1675
    %v1718 = vmul.f32 %v1419, %v1675
    %v1719 = vmul.f32 %v1422, %v1675
    %v1720 = vmul.f32 %v1425, %v1675
    %v1721 = vmul.f32 %v1428, %v1675
    %v1722 = vmul.f32 %v1431, %v1675
    %v1723 = vmul.f32 %v1434, %v1675
    %v1724 = vmul.f32 %v1437, %v1675
    %v1725 = vmul.f32 %v1440, %v1675
    %v1726 = vmul.f32 %v1443, %v1675
    %v1727 = vmul.f32 %v1446, %v1675
    %v1728 = vmul.f32 %v1449, %v1675
    %v1729 = vmul.f32 %v1452, %v1675
    %v1730 = vmul.f32 %v1455, %v1675
    %v1731 = vmul.f32 %v1458, %v1675
    %v1732 = vmul.f32 %v1461, %v1675
    %v1733 = vmul.f32 %v1464, %v1675
    %v1734 = vmul.f32 %v1467, %v1675
    %v1735 = vmul.f32 %v1470, %v1675
    %v1736 = vmul.f32 %v1473, %v1675
    %v1737 = vmul.f32 %v1476, %v1675
    %v1738 = vmul.f32 %v1479, %v1675
    %v1739 = vmul.f32 %v1482, %v1675
    %v1740 = vmul.f32 %v1485, %v1675
    %v1741 = vmul.f32 %v1488, %v1675
    %v1742 = vmul.f32 %v1491, %v1675
    %v1743 = vmul.f32 %v1494, %v1675
    %v1744 = vmul.f32 %v1497, %v1675
    %v1745 = vmul.f32 %v1500, %v1675
    %v1746 = vmul.f32 %v1503, %v1675
    %v1747 = vmul.f32 %v1506, %v1675
    %v1748 = vmul.f32 %v1509, %v1675
    %v1749 = vmul.f32 %v1512, %v1675
    %v1750 = vmul.f32 %v1515, %v1675
    %v1751 = vmul.f32 %v1518, %v1675
    %v1752 = vmul.f32 %v1521, %v1675
    %v1753 = vmul.f32 %v1524, %v1675
    %v1754 = vmul.f32 %v1527, %v1675
    %v1755 = vmul.f32 %v1530, %v1675
    %v1756 = vmul.f32 %v1533, %v1675
    %v1757 = vmul.f32 %v1536, %v1675
    %v1758 = vmul.f32 %v1539, %v1675
    %v1759 = vmul.f32 %v1542, %v1675
    %v1760 = vmul.f32 %v1545, %v1675
    %v1761 = vmul.f32 %v1548, %v1675
    %v1762 = vmul.f32 %v1551, %v1675
    %v1763 = vmul.f32 %v1554, %v1675
    %v1764 = vmul.f32 %v1557, %v1675
    %v1765 = vmul.f32 %v1560, %v1675
    %v1766 = vmul.f32 %v1563, %v1675
    %v1767 = vmul.f32 %v1566, %v1675
    %v1768 = vmul.f32 %v1569, %v1675
    %v1769 = vmul.f32 %v1572, %v1675
    %v1770 = vmul.f32 %v1575, %v1675
    %v1771 = vmul.f32 %v1578, %v1675
    %v1772 = vmul.f32 %v1581, %v1675
    %v1773 = vmul.f32 %v1584, %v1675
    %v1774 = vmul.f32 %v1587, %v1675
    %v1775 = vmul.f32 %v1590, %v1675
    %v1776 = vmul.f32 %v1593, %v1675
    %v1777 = vmul.f32 %v1596, %v1675
    %v1778 = vmul.f32 %v1599, %v1675
    %v1779 = vmul.f32 %v1602, %v1675
    %v1780 = vmul.f32 %v1605, %v1675
    %v1781 = vmul.f32 %v1608, %v1675
    %v1782 = vmul.f32 %v1611, %v1675
    %v1783 = vmul.f32 %v1614, %v1675
    %v1784 = vmul.f32 %v1617, %v1675
    %v1785 = vmul.f32 %v1620, %v1675
    %v1786 = vmul.f32 %v1623, %v1675
    %v1787 = vmul.f32 %v1626, %v1675
    %v1788 = vmul.f32 %v1629, %v1675
    %v1789 = vmul.f32 %v1632, %v1675
    %v1790 = vmul.f32 %v1635, %v1675
    %v1791 = vmul.f32 %v1638, %v1675
    %v1792 = vmul.f32 %v1641, %v1675
    %v1793 = vmul.f32 %v1644, %v1675
    %v1794 = vmul.f32 %v1647, %v1675
    %v1795 = vmul.f32 %v1650, %v1675
    %v1796 = vmul.f32 %v1653, %v1675
    %v1797 = vmul.f32 %v1656, %v1675
    %v1798 = vmul.f32 %v1659, %v1675
    %v1799 = vmul.f32 %v1662, %v1675
    %v1800 = vmul.f32 %v1665, %v1675
    %v1801 = vmul.f32 %v1668, %v1675
    %v1802 = vmul.f32 %v1671, %v1675
    %v1803 = vmul.f32 %v1674, %v1675
    %v1804 = vsub.f32 %v242, %v1676
    %v1805 = vsub.f32 %v266, %v1677
    %v1806 = vsub.f32 %v249, %v1678
    %v1807 = vsub.f32 %v267, %v1679
    %v1808 = vsub.f32 %v258, %v1680
    %v1809 = vsub.f32 %v268, %v1681
    %v1810 = vsub.f32 %v265, %v1682
    %v1811 = vsub.f32 %v269, %v1683
    %v1812 = vsub.f32 %v310, %v1684
    %v1813 = vsub.f32 %v334, %v1685
    %v1814 = vsub.f32 %v317, %v1686
    %v1815 = vsub.f32 %v335, %v1687
    %v1816 = vsub.f32 %v326, %v1688
    %v1817 = vsub.f32 %v336, %v1689
    %v1818 = vsub.f32 %v333, %v1690
    %v1819 = vsub.f32 %v337, %v1691
    %v1820 = vsub.f32 %v378, %v1692
    %v1821 = vsub.f32 %v402, %v1693
    %v1822 = vsub.f32 %v385, %v1694
    %v1823 = vsub.f32 %v403, %v1695
    %v1824 = vsub.f32 %v394, %v1696
    %v1825 = vsub.f32 %v404, %v1697
    %v1826 = vsub.f32 %v401, %v1698
    %v1827 = vsub.f32 %v405, %v1699
    %v1828 = vsub.f32 %v446, %v1700
    %v1829 = vsub.f32 %v470, %v1701
    %v1830 = vsub.f32 %v453, %v1702
    %v1831 = vsub.f32 %v471, %v1703
    %v1832 = vsub.f32 %v462, %v1704
    %v1833 = vsub.f32 %v472, %v1705
    %v1834 = vsub.f32 %v469, %v1706
    %v1835 = vsub.f32 %v473, %v1707
    %v1836 = vsub.f32 %v514, %v1708
    %v1837 = vsub.f32 %v538, %v1709
    %v1838 = vsub.f32 %v521, %v1710
    %v1839 = vsub.f32 %v539, %v1711
    %v1840 = vsub.f32 %v530, %v1712
    %v1841 = vsub.f32 %v540, %v1713
    %v1842 = vsub.f32 %v537, %v1714
    %v1843 = vsub.f32 %v541, %v1715
    %v1844 = vsub.f32 %v582, %v1716
    %v1845 = vsub.f32 %v606, %v1717
    %v1846 = vsub.f32 %v589, %v1718
    %v1847 = vsub.f32 %v607, %v1719
    %v1848 = vsub.f32 %v598, %v1720
    %v1849 = vsub.f32 %v608, %v1721
    %v1850 = vsub.f32 %v605, %v1722
    %v1851 = vsub.f32 %v609, %v1723
    %v1852 = vsub.f32 %v650, %v1724
    %v1853 = vsub.f32 %v674, %v1725
    %v1854 = vsub.f32 %v657, %v1726
    %v1855 = vsub.f32 %v675, %v1727
    %v1856 = vsub.f32 %v666, %v1728
    %v1857 = vsub.f32 %v676, %v1729
    %v1858 = vsub.f32 %v673, %v1730
    %v1859 = vsub.f32 %v677, %v1731
    %v1860 = vsub.f32 %v718, %v1732
    %v1861 = vsub.f32 %v742, %v1733
    %v1862 = vsub.f32 %v725, %v1734
    %v1863 = vsub.f32 %v743, %v1735
    %v1864 = vsub.f32 %v734, %v1736
    %v1865 = vsub.f32 %v744, %v1737
    %v1866 = vsub.f32 %v741, %v1738
    %v1867 = vsub.f32 %v745, %v1739
    %v1868 = vsub.f32 %v786, %v1740
    %v1869 = vsub.f32 %v810, %v1741
    %v1870 = vsub.f32 %v793, %v1742
    %v1871 = vsub.f32 %v811, %v1743
    %v1872 = vsub.f32 %v802, %v1744
    %v1873 = vsub.f32 %v812, %v1745
    %v1874 = vsub.f32 %v809, %v1746
    %v1875 = vsub.f32 %v813, %v1747
    %v1876 = vsub.f32 %v854, %v1748
    %v1877 = vsub.f32 %v878, %v1749
    %v1878 = vsub.f32 %v861, %v1750
    %v1879 = vsub.f32 %v879, %v1751
    %v1880 = vsub.f32 %v870, %v1752
    %v1881 = vsub.f32 %v880, %v1753
    %v1882 = vsub.f32 %v877, %v1754
    %v1883 = vsub.f32 %v881, %v1755
    %v1884 = vsub.f32 %v922, %v1756
    %v1885 = vsub.f32 %v946, %v1757
    %v1886 = vsub.f32 %v929, %v1758
    %v1887 = vsub.f32 %v947, %v1759
    %v1888 = vsub.f32 %v938, %v1760
    %v1889 = vsub.f32 %v948, %v1761
    %v1890 = vsub.f32 %v945, %v1762
    %v1891 = vsub.f32 %v949, %v1763
    %v1892 = vsub.f32 %v990, %v1764
    %v1893 = vsub.f32 %v1014, %v1765
    %v1894 = vsub.f32 %v997, %v1766
    %v1895 = vsub.f32 %v1015, %v1767
    %v1896 = vsub.f32 %v1006, %v1768
    %v1897 = vsub.f32 %v1016, %v1769
    %v1898 = vsub.f32 %v1013, %v1770
    %v1899 = vsub.f32 %v1017, %v1771
    %v1900 = vsub.f32 %v1058, %v1772
    %v1901 = vsub.f32 %v1082, %v1773
    %v1902 = vsub.f32 %v1065, %v1774
    %v1903 = vsub.f32 %v1083, %v1775
    %v1904 = vsub.f32 %v1074, %v1776
    %v1905 = vsub.f32 %v1084, %v1777
    %v1906 = vsub.f32 %v1081, %v1778
    %v1907 = vsub.f32 %v1085, %v1779
    %v1908 = vsub.f32 %v1126, %v1780
    %v1909 = vsub.f32 %v1150, %v1781
    %v1910 = vsub.f32 %v1133, %v1782
    %v1911 = vsub.f32 %v1151, %v1783
    %v1912 = vsub.f32 %v1142, %v1784
    %v1913 = vsub.f32 %v1152, %v1785
    %v1914 = vsub.f32 %v1149, %v1786
    %v1915 = vsub.f32 %v1153, %v1787
    %v1916 = vsub.f32 %v1194, %v1788
    %v1917 = vsub.f32 %v1218, %v1789
    %v1918 = vsub.f32 %v1201, %v1790
    %v1919 = vsub.f32 %v1219, %v1791
    %v1920 = vsub.f32 %v1210, %v1792
    %v1921 = vsub.f32 %v1220, %v1793
    %v1922 = vsub.f32 %v1217, %v1794
    %v1923 = vsub.f32 %v1221, %v1795
    %v1924 = vsub.f32 %v1262, %v1796
    %v1925 = vsub.f32 %v1286, %v1797
    %v1926 = vsub.f32 %v1269, %v1798
    %v1927 = vsub.f32 %v1287, %v1799
    %v1928 = vsub.f32 %v1278, %v1800
    %v1929 = vsub.f32 %v1288, %v1801
    %v1930 = vsub.f32 %v1285, %v1802
    %v1931 = vsub.f32 %v1289, %v1803
    %v1932 = vmul.f32 %v1804, %v1804
    %v1933 = vmul.f32 %v1805, %v1805
    %v1934 = vmul.f32 %v1806, %v1806
    %v1935 = vmul.f32 %v1807, %v1807
    %v1936 = vmul.f32 %v1808, %v1808
    %v1937 = vmul.f32 %v1809, %v1809
    %v1938 = vmul.f32 %v1810, %v1810
    %v1939 = vmul.f32 %v1811, %v1811
    %v1940 = vmul.f32 %v1812, %v1812
    %v1941 = vmul.f32 %v1813, %v1813
    %v1942 = vmul.f32 %v1814, %v1814
    %v1943 = vmul.f32 %v1815, %v1815
    %v1944 = vmul.f32 %v1816, %v1816
    %v1945 = vmul.f32 %v1817, %v1817
    %v1946 = vmul.f32 %v1818, %v1818
    %v1947 = vmul.f32 %v1819, %v1819
    %v1948 = vmul.f32 %v1820, %v1820
    %v1949 = vmul.f32 %v1821, %v1821
    %v1950 = vmul.f32 %v1822, %v1822
    %v1951 = vmul.f32 %v1823, %v1823
    %v1952 = vmul.f32 %v1824, %v1824
    %v1953 = vmul.f32 %v1825, %v1825
    %v1954 = vmul.f32 %v1826, %v1826
    %v1955 = vmul.f32 %v1827, %v1827
    %v1956 = vmul.f32 %v1828, %v1828
    %v1957 = vmul.f32 %v1829, %v1829
    %v1958 = vmul.f32 %v1830, %v1830
    %v1959 = vmul.f32 %v1831, %v1831
    %v1960 = vmul.f32 %v1832, %v1832
    %v1961 = vmul.f32 %v1833, %v1833
    %v1962 = vmul.f32 %v1834, %v1834
    %v1963 = vmul.f32 %v1835, %v1835
    %v1964 = vmul.f32 %v1836, %v1836
    %v1965 = vmul.f32 %v1837, %v1837
    %v1966 = vmul.f32 %v1838, %v1838
    %v1967 = vmul.f32 %v1839, %v1839
    %v1968 = vmul.f32 %v1840, %v1840
    %v1969 = vmul.f32 %v1841, %v1841
    %v1970 = vmul.f32 %v1842, %v1842
    %v1971 = vmul.f32 %v1843, %v1843
    %v1972 = vmul.f32 %v1844, %v1844
    %v1973 = vmul.f32 %v1845, %v1845
    %v1974 = vmul.f32 %v1846, %v1846
    %v1975 = vmul.f32 %v1847, %v1847
    %v1976 = vmul.f32 %v1848, %v1848
    %v1977 = vmul.f32 %v1849, %v1849
    %v1978 = vmul.f32 %v1850, %v1850
    %v1979 = vmul.f32 %v1851, %v1851
    %v1980 = vmul.f32 %v1852, %v1852
    %v1981 = vmul.f32 %v1853, %v1853
    %v1982 = vmul.f32 %v1854, %v1854
    %v1983 = vmul.f32 %v1855, %v1855
    %v1984 = vmul.f32 %v1856, %v1856
    %v1985 = vmul.f32 %v1857, %v1857
    %v1986 = vmul.f32 %v1858, %v1858
    %v1987 = vmul.f32 %v1859, %v1859
    %v1988 = vmul.f32 %v1860, %v1860
    %v1989 = vmul.f32 %v1861, %v1861
    %v1990 = vmul.f32 %v1862, %v1862
    %v1991 = vmul.f32 %v1863, %v1863
    %v1992 = vmul.f32 %v1864, %v1864
    %v1993 = vmul.f32 %v1865, %v1865
    %v1994 = vmul.f32 %v1866, %v1866
    %v1995 = vmul.f32 %v1867, %v1867
    %v1996 = vmul.f32 %v1868, %v1868
    %v1997 = vmul.f32 %v1869, %v1869
    %v1998 = vmul.f32 %v1870, %v1870
    %v1999 = vmul.f32 %v1871, %v1871
    %v2000 = vmul.f32 %v1872, %v1872
    %v2001 = vmul.f32 %v1873, %v1873
    %v2002 = vmul.f32 %v1874, %v1874
    %v2003 = vmul.f32 %v1875, %v1875
    %v2004 = vmul.f32 %v1876, %v1876
    %v2005 = vmul.f32 %v1877, %v1877
    %v2006 = vmul.f32 %v1878, %v1878
    %v2007 = vmul.f32 %v1879, %v1879
    %v2008 = vmul.f32 %v1880, %v1880
    %v2009 = vmul.f32 %v1881, %v1881
    %v2010 = vmul.f32 %v1882, %v1882
    %v2011 = vmul.f32 %v1883, %v1883
    %v2012 = vmul.f32 %v1884, %v1884
    %v2013 = vmul.f32 %v1885, %v1885
    %v2014 = vmul.f32 %v1886, %v1886
    %v2015 = vmul.f32 %v1887, %v1887
    %v2016 = vmul.f32 %v1888, %v1888
    %v2017 = vmul.f32 %v1889, %v1889
    %v2018 = vmul.f32 %v1890, %v1890
    %v2019 = vmul.f32 %v1891, %v1891
    %v2020 = vmul.f32 %v1892, %v1892
    %v2021 = vmul.f32 %v1893, %v1893
    %v2022 = vmul.f32 %v1894, %v1894
    %v2023 = vmul.f32 %v1895, %v1895
    %v2024 = vmul.f32 %v1896, %v1896
    %v2025 = vmul.f32 %v1897, %v1897
    %v2026 = vmul.f32 %v1898, %v1898
    %v2027 = vmul.f32 %v1899, %v1899
    %v2028 = vmul.f32 %v1900, %v1900
    %v2029 = vmul.f32 %v1901, %v1901
    %v2030 = vmul.f32 %v1902, %v1902
    %v2031 = vmul.f32 %v1903, %v1903
    %v2032 = vmul.f32 %v1904, %v1904
    %v2033 = vmul.f32 %v1905, %v1905
    %v2034 = vmul.f32 %v1906, %v1906
    %v2035 = vmul.f32 %v1907, %v1907
    %v2036 = vmul.f32 %v1908, %v1908
    %v2037 = vmul.f32 %v1909, %v1909
    %v2038 = vmul.f32 %v1910, %v1910
    %v2039 = vmul.f32 %v1911, %v1911
    %v2040 = vmul.f32 %v1912, %v1912
    %v2041 = vmul.f32 %v1913, %v1913
    %v2042 = vmul.f32 %v1914, %v1914
    %v2043 = vmul.f32 %v1915, %v1915
    %v2044 = vmul.f32 %v1916, %v1916
    %v2045 = vmul.f32 %v1917, %v1917
    %v2046 = vmul.f32 %v1918, %v1918
    %v2047 = vmul.f32 %v1919, %v1919
    %v2048 = vmul.f32 %v1920, %v1920
    %v2049 = vmul.f32 %v1921, %v1921
    %v2050 = vmul.f32 %v1922, %v1922
    %v2051 = vmul.f32 %v1923, %v1923
    %v2052 = vmul.f32 %v1924, %v1924
    %v2053 = vmul.f32 %v1925, %v1925
    %v2054 = vmul.f32 %v1926, %v1926
    %v2055 = vmul.f32 %v1927, %v1927
    %v2056 = vmul.f32 %v1928, %v1928
    %v2057 = vmul.f32 %v1929, %v1929
    %v2058 = vmul.f32 %v1930, %v1930
    %v2059 = vmul.f32 %v1931, %v1931
    %v2060 = vsel %vm1290, %v1932, 0.0
    %2061 = vadd.xlane.f32.xlu0 %v2060
    %v2062 = vpop.xlane.xlu0 %2061
    %v2063 = vsel %vm1290, %v1933, 0.0
    %2064 = vadd.xlane.f32.xlu0 %v2063
    %v2065 = vpop.xlane.xlu0 %2064
    %v2066 = vsel %vm1290, %v1934, 0.0
    %2067 = vadd.xlane.f32.xlu0 %v2066
    %v2068 = vpop.xlane.xlu0 %2067
    %v2069 = vsel %vm1290, %v1935, 0.0
    %2070 = vadd.xlane.f32.xlu0 %v2069
    %v2071 = vpop.xlane.xlu0 %2070
    %v2072 = vsel %vm1290, %v1936, 0.0
    %2073 = vadd.xlane.f32.xlu0 %v2072
    %v2074 = vpop.xlane.xlu0 %2073
    %v2075 = vsel %vm1290, %v1937, 0.0
    %2076 = vadd.xlane.f32.xlu0 %v2075
    %v2077 = vpop.xlane.xlu0 %2076
    %v2078 = vsel %vm1290, %v1938, 0.0
    %2079 = vadd.xlane.f32.xlu0 %v2078
    %v2080 = vpop.xlane.xlu0 %2079
    %v2081 = vsel %vm1290, %v1939, 0.0
    %2082 = vadd.xlane.f32.xlu0 %v2081
    %v2083 = vpop.xlane.xlu0 %2082
    %v2084 = vsel %vm1290, %v1940, 0.0
    %2085 = vadd.xlane.f32.xlu0 %v2084
    %v2086 = vpop.xlane.xlu0 %2085
    %v2087 = vsel %vm1290, %v1941, 0.0
    %2088 = vadd.xlane.f32.xlu0 %v2087
    %v2089 = vpop.xlane.xlu0 %2088
    %v2090 = vsel %vm1290, %v1942, 0.0
    %2091 = vadd.xlane.f32.xlu0 %v2090
    %v2092 = vpop.xlane.xlu0 %2091
    %v2093 = vsel %vm1290, %v1943, 0.0
    %2094 = vadd.xlane.f32.xlu0 %v2093
    %v2095 = vpop.xlane.xlu0 %2094
    %v2096 = vsel %vm1290, %v1944, 0.0
    %2097 = vadd.xlane.f32.xlu0 %v2096
    %v2098 = vpop.xlane.xlu0 %2097
    %v2099 = vsel %vm1290, %v1945, 0.0
    %2100 = vadd.xlane.f32.xlu0 %v2099
    %v2101 = vpop.xlane.xlu0 %2100
    %v2102 = vsel %vm1290, %v1946, 0.0
    %2103 = vadd.xlane.f32.xlu0 %v2102
    %v2104 = vpop.xlane.xlu0 %2103
    %v2105 = vsel %vm1290, %v1947, 0.0
    %2106 = vadd.xlane.f32.xlu0 %v2105
    %v2107 = vpop.xlane.xlu0 %2106
    %v2108 = vsel %vm1290, %v1948, 0.0
    %2109 = vadd.xlane.f32.xlu0 %v2108
    %v2110 = vpop.xlane.xlu0 %2109
    %v2111 = vsel %vm1290, %v1949, 0.0
    %2112 = vadd.xlane.f32.xlu0 %v2111
    %v2113 = vpop.xlane.xlu0 %2112
    %v2114 = vsel %vm1290, %v1950, 0.0
    %2115 = vadd.xlane.f32.xlu0 %v2114
    %v2116 = vpop.xlane.xlu0 %2115
    %v2117 = vsel %vm1290, %v1951, 0.0
    %2118 = vadd.xlane.f32.xlu0 %v2117
    %v2119 = vpop.xlane.xlu0 %2118
    %v2120 = vsel %vm1290, %v1952, 0.0
    %2121 = vadd.xlane.f32.xlu0 %v2120
    %v2122 = vpop.xlane.xlu0 %2121
    %v2123 = vsel %vm1290, %v1953, 0.0
    %2124 = vadd.xlane.f32.xlu0 %v2123
    %v2125 = vpop.xlane.xlu0 %2124
    %v2126 = vsel %vm1290, %v1954, 0.0
    %2127 = vadd.xlane.f32.xlu0 %v2126
    %v2128 = vpop.xlane.xlu0 %2127
    %v2129 = vsel %vm1290, %v1955, 0.0
    %2130 = vadd.xlane.f32.xlu0 %v2129
    %v2131 = vpop.xlane.xlu0 %2130
    %v2132 = vsel %vm1290, %v1956, 0.0
    %2133 = vadd.xlane.f32.xlu0 %v2132
    %v2134 = vpop.xlane.xlu0 %2133
    %v2135 = vsel %vm1290, %v1957, 0.0
    %2136 = vadd.xlane.f32.xlu0 %v2135
    %v2137 = vpop.xlane.xlu0 %2136
    %v2138 = vsel %vm1290, %v1958, 0.0
    %2139 = vadd.xlane.f32.xlu0 %v2138
    %v2140 = vpop.xlane.xlu0 %2139
    %v2141 = vsel %vm1290, %v1959, 0.0
    %2142 = vadd.xlane.f32.xlu0 %v2141
    %v2143 = vpop.xlane.xlu0 %2142
    %v2144 = vsel %vm1290, %v1960, 0.0
    %2145 = vadd.xlane.f32.xlu0 %v2144
    %v2146 = vpop.xlane.xlu0 %2145
    %v2147 = vsel %vm1290, %v1961, 0.0
    %2148 = vadd.xlane.f32.xlu0 %v2147
    %v2149 = vpop.xlane.xlu0 %2148
    %v2150 = vsel %vm1290, %v1962, 0.0
    %2151 = vadd.xlane.f32.xlu0 %v2150
    %v2152 = vpop.xlane.xlu0 %2151
    %v2153 = vsel %vm1290, %v1963, 0.0
    %2154 = vadd.xlane.f32.xlu0 %v2153
    %v2155 = vpop.xlane.xlu0 %2154
    %v2156 = vsel %vm1290, %v1964, 0.0
    %2157 = vadd.xlane.f32.xlu0 %v2156
    %v2158 = vpop.xlane.xlu0 %2157
    %v2159 = vsel %vm1290, %v1965, 0.0
    %2160 = vadd.xlane.f32.xlu0 %v2159
    %v2161 = vpop.xlane.xlu0 %2160
    %v2162 = vsel %vm1290, %v1966, 0.0
    %2163 = vadd.xlane.f32.xlu0 %v2162
    %v2164 = vpop.xlane.xlu0 %2163
    %v2165 = vsel %vm1290, %v1967, 0.0
    %2166 = vadd.xlane.f32.xlu0 %v2165
    %v2167 = vpop.xlane.xlu0 %2166
    %v2168 = vsel %vm1290, %v1968, 0.0
    %2169 = vadd.xlane.f32.xlu0 %v2168
    %v2170 = vpop.xlane.xlu0 %2169
    %v2171 = vsel %vm1290, %v1969, 0.0
    %2172 = vadd.xlane.f32.xlu0 %v2171
    %v2173 = vpop.xlane.xlu0 %2172
    %v2174 = vsel %vm1290, %v1970, 0.0
    %2175 = vadd.xlane.f32.xlu0 %v2174
    %v2176 = vpop.xlane.xlu0 %2175
    %v2177 = vsel %vm1290, %v1971, 0.0
    %2178 = vadd.xlane.f32.xlu0 %v2177
    %v2179 = vpop.xlane.xlu0 %2178
    %v2180 = vsel %vm1290, %v1972, 0.0
    %2181 = vadd.xlane.f32.xlu0 %v2180
    %v2182 = vpop.xlane.xlu0 %2181
    %v2183 = vsel %vm1290, %v1973, 0.0
    %2184 = vadd.xlane.f32.xlu0 %v2183
    %v2185 = vpop.xlane.xlu0 %2184
    %v2186 = vsel %vm1290, %v1974, 0.0
    %2187 = vadd.xlane.f32.xlu0 %v2186
    %v2188 = vpop.xlane.xlu0 %2187
    %v2189 = vsel %vm1290, %v1975, 0.0
    %2190 = vadd.xlane.f32.xlu0 %v2189
    %v2191 = vpop.xlane.xlu0 %2190
    %v2192 = vsel %vm1290, %v1976, 0.0
    %2193 = vadd.xlane.f32.xlu0 %v2192
    %v2194 = vpop.xlane.xlu0 %2193
    %v2195 = vsel %vm1290, %v1977, 0.0
    %2196 = vadd.xlane.f32.xlu0 %v2195
    %v2197 = vpop.xlane.xlu0 %2196
    %v2198 = vsel %vm1290, %v1978, 0.0
    %2199 = vadd.xlane.f32.xlu0 %v2198
    %v2200 = vpop.xlane.xlu0 %2199
    %v2201 = vsel %vm1290, %v1979, 0.0
    %2202 = vadd.xlane.f32.xlu0 %v2201
    %v2203 = vpop.xlane.xlu0 %2202
    %v2204 = vsel %vm1290, %v1980, 0.0
    %2205 = vadd.xlane.f32.xlu0 %v2204
    %v2206 = vpop.xlane.xlu0 %2205
    %v2207 = vsel %vm1290, %v1981, 0.0
    %2208 = vadd.xlane.f32.xlu0 %v2207
    %v2209 = vpop.xlane.xlu0 %2208
    %v2210 = vsel %vm1290, %v1982, 0.0
    %2211 = vadd.xlane.f32.xlu0 %v2210
    %v2212 = vpop.xlane.xlu0 %2211
    %v2213 = vsel %vm1290, %v1983, 0.0
    %2214 = vadd.xlane.f32.xlu0 %v2213
    %v2215 = vpop.xlane.xlu0 %2214
    %v2216 = vsel %vm1290, %v1984, 0.0
    %2217 = vadd.xlane.f32.xlu0 %v2216
    %v2218 = vpop.xlane.xlu0 %2217
    %v2219 = vsel %vm1290, %v1985, 0.0
    %2220 = vadd.xlane.f32.xlu0 %v2219
    %v2221 = vpop.xlane.xlu0 %2220
    %v2222 = vsel %vm1290, %v1986, 0.0
    %2223 = vadd.xlane.f32.xlu0 %v2222
    %v2224 = vpop.xlane.xlu0 %2223
    %v2225 = vsel %vm1290, %v1987, 0.0
    %2226 = vadd.xlane.f32.xlu0 %v2225
    %v2227 = vpop.xlane.xlu0 %2226
    %v2228 = vsel %vm1290, %v1988, 0.0
    %2229 = vadd.xlane.f32.xlu0 %v2228
    %v2230 = vpop.xlane.xlu0 %2229
    %v2231 = vsel %vm1290, %v1989, 0.0
    %2232 = vadd.xlane.f32.xlu0 %v2231
    %v2233 = vpop.xlane.xlu0 %2232
    %v2234 = vsel %vm1290, %v1990, 0.0
    %2235 = vadd.xlane.f32.xlu0 %v2234
    %v2236 = vpop.xlane.xlu0 %2235
    %v2237 = vsel %vm1290, %v1991, 0.0
    %2238 = vadd.xlane.f32.xlu0 %v2237
    %v2239 = vpop.xlane.xlu0 %2238
    %v2240 = vsel %vm1290, %v1992, 0.0
    %2241 = vadd.xlane.f32.xlu0 %v2240
    %v2242 = vpop.xlane.xlu0 %2241
    %v2243 = vsel %vm1290, %v1993, 0.0
    %2244 = vadd.xlane.f32.xlu0 %v2243
    %v2245 = vpop.xlane.xlu0 %2244
    %v2246 = vsel %vm1290, %v1994, 0.0
    %2247 = vadd.xlane.f32.xlu0 %v2246
    %v2248 = vpop.xlane.xlu0 %2247
    %v2249 = vsel %vm1290, %v1995, 0.0
    %2250 = vadd.xlane.f32.xlu0 %v2249
    %v2251 = vpop.xlane.xlu0 %2250
    %v2252 = vsel %vm1290, %v1996, 0.0
    %2253 = vadd.xlane.f32.xlu0 %v2252
    %v2254 = vpop.xlane.xlu0 %2253
    %v2255 = vsel %vm1290, %v1997, 0.0
    %2256 = vadd.xlane.f32.xlu0 %v2255
    %v2257 = vpop.xlane.xlu0 %2256
    %v2258 = vsel %vm1290, %v1998, 0.0
    %2259 = vadd.xlane.f32.xlu0 %v2258
    %v2260 = vpop.xlane.xlu0 %2259
    %v2261 = vsel %vm1290, %v1999, 0.0
    %2262 = vadd.xlane.f32.xlu0 %v2261
    %v2263 = vpop.xlane.xlu0 %2262
    %v2264 = vsel %vm1290, %v2000, 0.0
    %2265 = vadd.xlane.f32.xlu0 %v2264
    %v2266 = vpop.xlane.xlu0 %2265
    %v2267 = vsel %vm1290, %v2001, 0.0
    %2268 = vadd.xlane.f32.xlu0 %v2267
    %v2269 = vpop.xlane.xlu0 %2268
    %v2270 = vsel %vm1290, %v2002, 0.0
    %2271 = vadd.xlane.f32.xlu0 %v2270
    %v2272 = vpop.xlane.xlu0 %2271
    %v2273 = vsel %vm1290, %v2003, 0.0
    %2274 = vadd.xlane.f32.xlu0 %v2273
    %v2275 = vpop.xlane.xlu0 %2274
    %v2276 = vsel %vm1290, %v2004, 0.0
    %2277 = vadd.xlane.f32.xlu0 %v2276
    %v2278 = vpop.xlane.xlu0 %2277
    %v2279 = vsel %vm1290, %v2005, 0.0
    %2280 = vadd.xlane.f32.xlu0 %v2279
    %v2281 = vpop.xlane.xlu0 %2280
    %v2282 = vsel %vm1290, %v2006, 0.0
    %2283 = vadd.xlane.f32.xlu0 %v2282
    %v2284 = vpop.xlane.xlu0 %2283
    %v2285 = vsel %vm1290, %v2007, 0.0
    %2286 = vadd.xlane.f32.xlu0 %v2285
    %v2287 = vpop.xlane.xlu0 %2286
    %v2288 = vsel %vm1290, %v2008, 0.0
    %2289 = vadd.xlane.f32.xlu0 %v2288
    %v2290 = vpop.xlane.xlu0 %2289
    %v2291 = vsel %vm1290, %v2009, 0.0
    %2292 = vadd.xlane.f32.xlu0 %v2291
    %v2293 = vpop.xlane.xlu0 %2292
    %v2294 = vsel %vm1290, %v2010, 0.0
    %2295 = vadd.xlane.f32.xlu0 %v2294
    %v2296 = vpop.xlane.xlu0 %2295
    %v2297 = vsel %vm1290, %v2011, 0.0
    %2298 = vadd.xlane.f32.xlu0 %v2297
    %v2299 = vpop.xlane.xlu0 %2298
    %v2300 = vsel %vm1290, %v2012, 0.0
    %2301 = vadd.xlane.f32.xlu0 %v2300
    %v2302 = vpop.xlane.xlu0 %2301
    %v2303 = vsel %vm1290, %v2013, 0.0
    %2304 = vadd.xlane.f32.xlu0 %v2303
    %v2305 = vpop.xlane.xlu0 %2304
    %v2306 = vsel %vm1290, %v2014, 0.0
    %2307 = vadd.xlane.f32.xlu0 %v2306
    %v2308 = vpop.xlane.xlu0 %2307
    %v2309 = vsel %vm1290, %v2015, 0.0
    %2310 = vadd.xlane.f32.xlu0 %v2309
    %v2311 = vpop.xlane.xlu0 %2310
    %v2312 = vsel %vm1290, %v2016, 0.0
    %2313 = vadd.xlane.f32.xlu0 %v2312
    %v2314 = vpop.xlane.xlu0 %2313
    %v2315 = vsel %vm1290, %v2017, 0.0
    %2316 = vadd.xlane.f32.xlu0 %v2315
    %v2317 = vpop.xlane.xlu0 %2316
    %v2318 = vsel %vm1290, %v2018, 0.0
    %2319 = vadd.xlane.f32.xlu0 %v2318
    %v2320 = vpop.xlane.xlu0 %2319
    %v2321 = vsel %vm1290, %v2019, 0.0
    %2322 = vadd.xlane.f32.xlu0 %v2321
    %v2323 = vpop.xlane.xlu0 %2322
    %v2324 = vsel %vm1290, %v2020, 0.0
    %2325 = vadd.xlane.f32.xlu0 %v2324
    %v2326 = vpop.xlane.xlu0 %2325
    %v2327 = vsel %vm1290, %v2021, 0.0
    %2328 = vadd.xlane.f32.xlu0 %v2327
    %v2329 = vpop.xlane.xlu0 %2328
    %v2330 = vsel %vm1290, %v2022, 0.0
    %2331 = vadd.xlane.f32.xlu0 %v2330
    %v2332 = vpop.xlane.xlu0 %2331
    %v2333 = vsel %vm1290, %v2023, 0.0
    %2334 = vadd.xlane.f32.xlu0 %v2333
    %v2335 = vpop.xlane.xlu0 %2334
    %v2336 = vsel %vm1290, %v2024, 0.0
    %2337 = vadd.xlane.f32.xlu0 %v2336
    %v2338 = vpop.xlane.xlu0 %2337
    %v2339 = vsel %vm1290, %v2025, 0.0
    %2340 = vadd.xlane.f32.xlu0 %v2339
    %v2341 = vpop.xlane.xlu0 %2340
    %v2342 = vsel %vm1290, %v2026, 0.0
    %2343 = vadd.xlane.f32.xlu0 %v2342
    %v2344 = vpop.xlane.xlu0 %2343
    %v2345 = vsel %vm1290, %v2027, 0.0
    %2346 = vadd.xlane.f32.xlu0 %v2345
    %v2347 = vpop.xlane.xlu0 %2346
    %v2348 = vsel %vm1290, %v2028, 0.0
    %2349 = vadd.xlane.f32.xlu0 %v2348
    %v2350 = vpop.xlane.xlu0 %2349
    %v2351 = vsel %vm1290, %v2029, 0.0
    %2352 = vadd.xlane.f32.xlu0 %v2351
    %v2353 = vpop.xlane.xlu0 %2352
    %v2354 = vsel %vm1290, %v2030, 0.0
    %2355 = vadd.xlane.f32.xlu0 %v2354
    %v2356 = vpop.xlane.xlu0 %2355
    %v2357 = vsel %vm1290, %v2031, 0.0
    %2358 = vadd.xlane.f32.xlu0 %v2357
    %v2359 = vpop.xlane.xlu0 %2358
    %v2360 = vsel %vm1290, %v2032, 0.0
    %2361 = vadd.xlane.f32.xlu0 %v2360
    %v2362 = vpop.xlane.xlu0 %2361
    %v2363 = vsel %vm1290, %v2033, 0.0
    %2364 = vadd.xlane.f32.xlu0 %v2363
    %v2365 = vpop.xlane.xlu0 %2364
    %v2366 = vsel %vm1290, %v2034, 0.0
    %2367 = vadd.xlane.f32.xlu0 %v2366
    %v2368 = vpop.xlane.xlu0 %2367
    %v2369 = vsel %vm1290, %v2035, 0.0
    %2370 = vadd.xlane.f32.xlu0 %v2369
    %v2371 = vpop.xlane.xlu0 %2370
    %v2372 = vsel %vm1290, %v2036, 0.0
    %2373 = vadd.xlane.f32.xlu0 %v2372
    %v2374 = vpop.xlane.xlu0 %2373
    %v2375 = vsel %vm1290, %v2037, 0.0
    %2376 = vadd.xlane.f32.xlu0 %v2375
    %v2377 = vpop.xlane.xlu0 %2376
    %v2378 = vsel %vm1290, %v2038, 0.0
    %2379 = vadd.xlane.f32.xlu0 %v2378
    %v2380 = vpop.xlane.xlu0 %2379
    %v2381 = vsel %vm1290, %v2039, 0.0
    %2382 = vadd.xlane.f32.xlu0 %v2381
    %v2383 = vpop.xlane.xlu0 %2382
    %v2384 = vsel %vm1290, %v2040, 0.0
    %2385 = vadd.xlane.f32.xlu0 %v2384
    %v2386 = vpop.xlane.xlu0 %2385
    %v2387 = vsel %vm1290, %v2041, 0.0
    %2388 = vadd.xlane.f32.xlu0 %v2387
    %v2389 = vpop.xlane.xlu0 %2388
    %v2390 = vsel %vm1290, %v2042, 0.0
    %2391 = vadd.xlane.f32.xlu0 %v2390
    %v2392 = vpop.xlane.xlu0 %2391
    %v2393 = vsel %vm1290, %v2043, 0.0
    %2394 = vadd.xlane.f32.xlu0 %v2393
    %v2395 = vpop.xlane.xlu0 %2394
    %v2396 = vsel %vm1290, %v2044, 0.0
    %2397 = vadd.xlane.f32.xlu0 %v2396
    %v2398 = vpop.xlane.xlu0 %2397
    %v2399 = vsel %vm1290, %v2045, 0.0
    %2400 = vadd.xlane.f32.xlu0 %v2399
    %v2401 = vpop.xlane.xlu0 %2400
    %v2402 = vsel %vm1290, %v2046, 0.0
    %2403 = vadd.xlane.f32.xlu0 %v2402
    %v2404 = vpop.xlane.xlu0 %2403
    %v2405 = vsel %vm1290, %v2047, 0.0
    %2406 = vadd.xlane.f32.xlu0 %v2405
    %v2407 = vpop.xlane.xlu0 %2406
    %v2408 = vsel %vm1290, %v2048, 0.0
    %2409 = vadd.xlane.f32.xlu0 %v2408
    %v2410 = vpop.xlane.xlu0 %2409
    %v2411 = vsel %vm1290, %v2049, 0.0
    %2412 = vadd.xlane.f32.xlu0 %v2411
    %v2413 = vpop.xlane.xlu0 %2412
    %v2414 = vsel %vm1290, %v2050, 0.0
    %2415 = vadd.xlane.f32.xlu0 %v2414
    %v2416 = vpop.xlane.xlu0 %2415
    %v2417 = vsel %vm1290, %v2051, 0.0
    %2418 = vadd.xlane.f32.xlu0 %v2417
    %v2419 = vpop.xlane.xlu0 %2418
    %v2420 = vsel %vm1290, %v2052, 0.0
    %2421 = vadd.xlane.f32.xlu0 %v2420
    %v2422 = vpop.xlane.xlu0 %2421
    %v2423 = vsel %vm1290, %v2053, 0.0
    %2424 = vadd.xlane.f32.xlu0 %v2423
    %v2425 = vpop.xlane.xlu0 %2424
    %v2426 = vsel %vm1290, %v2054, 0.0
    %2427 = vadd.xlane.f32.xlu0 %v2426
    %v2428 = vpop.xlane.xlu0 %2427
    %v2429 = vsel %vm1290, %v2055, 0.0
    %2430 = vadd.xlane.f32.xlu0 %v2429
    %v2431 = vpop.xlane.xlu0 %2430
    %v2432 = vsel %vm1290, %v2056, 0.0
    %2433 = vadd.xlane.f32.xlu0 %v2432
    %v2434 = vpop.xlane.xlu0 %2433
    %v2435 = vsel %vm1290, %v2057, 0.0
    %2436 = vadd.xlane.f32.xlu0 %v2435
    %v2437 = vpop.xlane.xlu0 %2436
    %v2438 = vsel %vm1290, %v2058, 0.0
    %2439 = vadd.xlane.f32.xlu0 %v2438
    %v2440 = vpop.xlane.xlu0 %2439
    %v2441 = vsel %vm1290, %v2059, 0.0
    %2442 = vadd.xlane.f32.xlu0 %v2441
    %v2443 = vpop.xlane.xlu0 %2442
    %v2444 = vmul.f32 %v2062, %v1675
    %v2445 = vmul.f32 %v2065, %v1675
    %v2446 = vmul.f32 %v2068, %v1675
    %v2447 = vmul.f32 %v2071, %v1675
    %v2448 = vmul.f32 %v2074, %v1675
    %v2449 = vmul.f32 %v2077, %v1675
    %v2450 = vmul.f32 %v2080, %v1675
    %v2451 = vmul.f32 %v2083, %v1675
    %v2452 = vmul.f32 %v2086, %v1675
    %v2453 = vmul.f32 %v2089, %v1675
    %v2454 = vmul.f32 %v2092, %v1675
    %v2455 = vmul.f32 %v2095, %v1675
    %v2456 = vmul.f32 %v2098, %v1675
    %v2457 = vmul.f32 %v2101, %v1675
    %v2458 = vmul.f32 %v2104, %v1675
    %v2459 = vmul.f32 %v2107, %v1675
    %v2460 = vmul.f32 %v2110, %v1675
    %v2461 = vmul.f32 %v2113, %v1675
    %v2462 = vmul.f32 %v2116, %v1675
    %v2463 = vmul.f32 %v2119, %v1675
    %v2464 = vmul.f32 %v2122, %v1675
    %v2465 = vmul.f32 %v2125, %v1675
    %v2466 = vmul.f32 %v2128, %v1675
    %v2467 = vmul.f32 %v2131, %v1675
    %v2468 = vmul.f32 %v2134, %v1675
    %v2469 = vmul.f32 %v2137, %v1675
    %v2470 = vmul.f32 %v2140, %v1675
    %v2471 = vmul.f32 %v2143, %v1675
    %v2472 = vmul.f32 %v2146, %v1675
    %v2473 = vmul.f32 %v2149, %v1675
    %v2474 = vmul.f32 %v2152, %v1675
    %v2475 = vmul.f32 %v2155, %v1675
    %v2476 = vmul.f32 %v2158, %v1675
    %v2477 = vmul.f32 %v2161, %v1675
    %v2478 = vmul.f32 %v2164, %v1675
    %v2479 = vmul.f32 %v2167, %v1675
    %v2480 = vmul.f32 %v2170, %v1675
    %v2481 = vmul.f32 %v2173, %v1675
    %v2482 = vmul.f32 %v2176, %v1675
    %v2483 = vmul.f32 %v2179, %v1675
    %v2484 = vmul.f32 %v2182, %v1675
    %v2485 = vmul.f32 %v2185, %v1675
    %v2486 = vmul.f32 %v2188, %v1675
    %v2487 = vmul.f32 %v2191, %v1675
    %v2488 = vmul.f32 %v2194, %v1675
    %v2489 = vmul.f32 %v2197, %v1675
    %v2490 = vmul.f32 %v2200, %v1675
    %v2491 = vmul.f32 %v2203, %v1675
    %v2492 = vmul.f32 %v2206, %v1675
    %v2493 = vmul.f32 %v2209, %v1675
    %v2494 = vmul.f32 %v2212, %v1675
    %v2495 = vmul.f32 %v2215, %v1675
    %v2496 = vmul.f32 %v2218, %v1675
    %v2497 = vmul.f32 %v2221, %v1675
    %v2498 = vmul.f32 %v2224, %v1675
    %v2499 = vmul.f32 %v2227, %v1675
    %v2500 = vmul.f32 %v2230, %v1675
    %v2501 = vmul.f32 %v2233, %v1675
    %v2502 = vmul.f32 %v2236, %v1675
    %v2503 = vmul.f32 %v2239, %v1675
    %v2504 = vmul.f32 %v2242, %v1675
    %v2505 = vmul.f32 %v2245, %v1675
    %v2506 = vmul.f32 %v2248, %v1675
    %v2507 = vmul.f32 %v2251, %v1675
    %v2508 = vmul.f32 %v2254, %v1675
    %v2509 = vmul.f32 %v2257, %v1675
    %v2510 = vmul.f32 %v2260, %v1675
    %v2511 = vmul.f32 %v2263, %v1675
    %v2512 = vmul.f32 %v2266, %v1675
    %v2513 = vmul.f32 %v2269, %v1675
    %v2514 = vmul.f32 %v2272, %v1675
    %v2515 = vmul.f32 %v2275, %v1675
    %v2516 = vmul.f32 %v2278, %v1675
    %v2517 = vmul.f32 %v2281, %v1675
    %v2518 = vmul.f32 %v2284, %v1675
    %v2519 = vmul.f32 %v2287, %v1675
    %v2520 = vmul.f32 %v2290, %v1675
    %v2521 = vmul.f32 %v2293, %v1675
    %v2522 = vmul.f32 %v2296, %v1675
    %v2523 = vmul.f32 %v2299, %v1675
    %v2524 = vmul.f32 %v2302, %v1675
    %v2525 = vmul.f32 %v2305, %v1675
    %v2526 = vmul.f32 %v2308, %v1675
    %v2527 = vmul.f32 %v2311, %v1675
    %v2528 = vmul.f32 %v2314, %v1675
    %v2529 = vmul.f32 %v2317, %v1675
    %v2530 = vmul.f32 %v2320, %v1675
    %v2531 = vmul.f32 %v2323, %v1675
    %v2532 = vmul.f32 %v2326, %v1675
    %v2533 = vmul.f32 %v2329, %v1675
    %v2534 = vmul.f32 %v2332, %v1675
    %v2535 = vmul.f32 %v2335, %v1675
    %v2536 = vmul.f32 %v2338, %v1675
    %v2537 = vmul.f32 %v2341, %v1675
    %v2538 = vmul.f32 %v2344, %v1675
    %v2539 = vmul.f32 %v2347, %v1675
    %v2540 = vmul.f32 %v2350, %v1675
    %v2541 = vmul.f32 %v2353, %v1675
    %v2542 = vmul.f32 %v2356, %v1675
    %v2543 = vmul.f32 %v2359, %v1675
    %v2544 = vmul.f32 %v2362, %v1675
    %v2545 = vmul.f32 %v2365, %v1675
    %v2546 = vmul.f32 %v2368, %v1675
    %v2547 = vmul.f32 %v2371, %v1675
    %v2548 = vmul.f32 %v2374, %v1675
    %v2549 = vmul.f32 %v2377, %v1675
    %v2550 = vmul.f32 %v2380, %v1675
    %v2551 = vmul.f32 %v2383, %v1675
    %v2552 = vmul.f32 %v2386, %v1675
    %v2553 = vmul.f32 %v2389, %v1675
    %v2554 = vmul.f32 %v2392, %v1675
    %v2555 = vmul.f32 %v2395, %v1675
    %v2556 = vmul.f32 %v2398, %v1675
    %v2557 = vmul.f32 %v2401, %v1675
    %v2558 = vmul.f32 %v2404, %v1675
    %v2559 = vmul.f32 %v2407, %v1675
    %v2560 = vmul.f32 %v2410, %v1675
    %v2561 = vmul.f32 %v2413, %v1675
    %v2562 = vmul.f32 %v2416, %v1675
    %v2563 = vmul.f32 %v2419, %v1675
    %v2564 = vmul.f32 %v2422, %v1675
    %v2565 = vmul.f32 %v2425, %v1675
    %v2566 = vmul.f32 %v2428, %v1675
    %v2567 = vmul.f32 %v2431, %v1675
    %v2568 = vmul.f32 %v2434, %v1675
    %v2569 = vmul.f32 %v2437, %v1675
    %v2570 = vmul.f32 %v2440, %v1675
    %v2571 = vmul.f32 %v2443, %v1675
    %v2572 = vadd.f32 %v2444, 1e-05
    %v2573 = vadd.f32 %v2445, 1e-05
    %v2574 = vadd.f32 %v2446, 1e-05
    %v2575 = vadd.f32 %v2447, 1e-05
    %v2576 = vadd.f32 %v2448, 1e-05
    %v2577 = vadd.f32 %v2449, 1e-05
    %v2578 = vadd.f32 %v2450, 1e-05
    %v2579 = vadd.f32 %v2451, 1e-05
    %v2580 = vadd.f32 %v2452, 1e-05
    %v2581 = vadd.f32 %v2453, 1e-05
    %v2582 = vadd.f32 %v2454, 1e-05
    %v2583 = vadd.f32 %v2455, 1e-05
    %v2584 = vadd.f32 %v2456, 1e-05
    %v2585 = vadd.f32 %v2457, 1e-05
    %v2586 = vadd.f32 %v2458, 1e-05
    %v2587 = vadd.f32 %v2459, 1e-05
    %v2588 = vadd.f32 %v2460, 1e-05
    %v2589 = vadd.f32 %v2461, 1e-05
    %v2590 = vadd.f32 %v2462, 1e-05
    %v2591 = vadd.f32 %v2463, 1e-05
    %v2592 = vadd.f32 %v2464, 1e-05
    %v2593 = vadd.f32 %v2465, 1e-05
    %v2594 = vadd.f32 %v2466, 1e-05
    %v2595 = vadd.f32 %v2467, 1e-05
    %v2596 = vadd.f32 %v2468, 1e-05
    %v2597 = vadd.f32 %v2469, 1e-05
    %v2598 = vadd.f32 %v2470, 1e-05
    %v2599 = vadd.f32 %v2471, 1e-05
    %v2600 = vadd.f32 %v2472, 1e-05
    %v2601 = vadd.f32 %v2473, 1e-05
    %v2602 = vadd.f32 %v2474, 1e-05
    %v2603 = vadd.f32 %v2475, 1e-05
    %v2604 = vadd.f32 %v2476, 1e-05
    %v2605 = vadd.f32 %v2477, 1e-05
    %v2606 = vadd.f32 %v2478, 1e-05
    %v2607 = vadd.f32 %v2479, 1e-05
    %v2608 = vadd.f32 %v2480, 1e-05
    %v2609 = vadd.f32 %v2481, 1e-05
    %v2610 = vadd.f32 %v2482, 1e-05
    %v2611 = vadd.f32 %v2483, 1e-05
    %v2612 = vadd.f32 %v2484, 1e-05
    %v2613 = vadd.f32 %v2485, 1e-05
    %v2614 = vadd.f32 %v2486, 1e-05
    %v2615 = vadd.f32 %v2487, 1e-05
    %v2616 = vadd.f32 %v2488, 1e-05
    %v2617 = vadd.f32 %v2489, 1e-05
    %v2618 = vadd.f32 %v2490, 1e-05
    %v2619 = vadd.f32 %v2491, 1e-05
    %v2620 = vadd.f32 %v2492, 1e-05
    %v2621 = vadd.f32 %v2493, 1e-05
    %v2622 = vadd.f32 %v2494, 1e-05
    %v2623 = vadd.f32 %v2495, 1e-05
    %v2624 = vadd.f32 %v2496, 1e-05
    %v2625 = vadd.f32 %v2497, 1e-05
    %v2626 = vadd.f32 %v2498, 1e-05
    %v2627 = vadd.f32 %v2499, 1e-05
    %v2628 = vadd.f32 %v2500, 1e-05
    %v2629 = vadd.f32 %v2501, 1e-05
    %v2630 = vadd.f32 %v2502, 1e-05
    %v2631 = vadd.f32 %v2503, 1e-05
    %v2632 = vadd.f32 %v2504, 1e-05
    %v2633 = vadd.f32 %v2505, 1e-05
    %v2634 = vadd.f32 %v2506, 1e-05
    %v2635 = vadd.f32 %v2507, 1e-05
    %v2636 = vadd.f32 %v2508, 1e-05
    %v2637 = vadd.f32 %v2509, 1e-05
    %v2638 = vadd.f32 %v2510, 1e-05
    %v2639 = vadd.f32 %v2511, 1e-05
    %v2640 = vadd.f32 %v2512, 1e-05
    %v2641 = vadd.f32 %v2513, 1e-05
    %v2642 = vadd.f32 %v2514, 1e-05
    %v2643 = vadd.f32 %v2515, 1e-05
    %v2644 = vadd.f32 %v2516, 1e-05
    %v2645 = vadd.f32 %v2517, 1e-05
    %v2646 = vadd.f32 %v2518, 1e-05
    %v2647 = vadd.f32 %v2519, 1e-05
    %v2648 = vadd.f32 %v2520, 1e-05
    %v2649 = vadd.f32 %v2521, 1e-05
    %v2650 = vadd.f32 %v2522, 1e-05
    %v2651 = vadd.f32 %v2523, 1e-05
    %v2652 = vadd.f32 %v2524, 1e-05
    %v2653 = vadd.f32 %v2525, 1e-05
    %v2654 = vadd.f32 %v2526, 1e-05
    %v2655 = vadd.f32 %v2527, 1e-05
    %v2656 = vadd.f32 %v2528, 1e-05
    %v2657 = vadd.f32 %v2529, 1e-05
    %v2658 = vadd.f32 %v2530, 1e-05
    %v2659 = vadd.f32 %v2531, 1e-05
    %v2660 = vadd.f32 %v2532, 1e-05
    %v2661 = vadd.f32 %v2533, 1e-05
    %v2662 = vadd.f32 %v2534, 1e-05
    %v2663 = vadd.f32 %v2535, 1e-05
    %v2664 = vadd.f32 %v2536, 1e-05
    %v2665 = vadd.f32 %v2537, 1e-05
    %v2666 = vadd.f32 %v2538, 1e-05
    %v2667 = vadd.f32 %v2539, 1e-05
    %v2668 = vadd.f32 %v2540, 1e-05
    %v2669 = vadd.f32 %v2541, 1e-05
    %v2670 = vadd.f32 %v2542, 1e-05
    %v2671 = vadd.f32 %v2543, 1e-05
    %v2672 = vadd.f32 %v2544, 1e-05
    %v2673 = vadd.f32 %v2545, 1e-05
    %v2674 = vadd.f32 %v2546, 1e-05
    %v2675 = vadd.f32 %v2547, 1e-05
    %v2676 = vadd.f32 %v2548, 1e-05
    %v2677 = vadd.f32 %v2549, 1e-05
    %v2678 = vadd.f32 %v2550, 1e-05
    %v2679 = vadd.f32 %v2551, 1e-05
    %v2680 = vadd.f32 %v2552, 1e-05
    %v2681 = vadd.f32 %v2553, 1e-05
    %v2682 = vadd.f32 %v2554, 1e-05
    %v2683 = vadd.f32 %v2555, 1e-05
    %v2684 = vadd.f32 %v2556, 1e-05
    %v2685 = vadd.f32 %v2557, 1e-05
    %v2686 = vadd.f32 %v2558, 1e-05
    %v2687 = vadd.f32 %v2559, 1e-05
    %v2688 = vadd.f32 %v2560, 1e-05
    %v2689 = vadd.f32 %v2561, 1e-05
    %v2690 = vadd.f32 %v2562, 1e-05
    %v2691 = vadd.f32 %v2563, 1e-05
    %v2692 = vadd.f32 %v2564, 1e-05
    %v2693 = vadd.f32 %v2565, 1e-05
    %v2694 = vadd.f32 %v2566, 1e-05
    %v2695 = vadd.f32 %v2567, 1e-05
    %v2696 = vadd.f32 %v2568, 1e-05
    %v2697 = vadd.f32 %v2569, 1e-05
    %v2698 = vadd.f32 %v2570, 1e-05
    %v2699 = vadd.f32 %v2571, 1e-05
    %v2700 = vrsqrt.pop %v2572
    %v2701 = vrsqrt.pop %v2573
    %v2702 = vrsqrt.pop %v2574
    %v2703 = vrsqrt.pop %v2575
    %v2704 = vrsqrt.pop %v2576
    %v2705 = vrsqrt.pop %v2577
    %v2706 = vrsqrt.pop %v2578
    %v2707 = vrsqrt.pop %v2579
    %v2708 = vrsqrt.pop %v2580
    %v2709 = vrsqrt.pop %v2581
    %v2710 = vrsqrt.pop %v2582
    %v2711 = vrsqrt.pop %v2583
    %v2712 = vrsqrt.pop %v2584
    %v2713 = vrsqrt.pop %v2585
    %v2714 = vrsqrt.pop %v2586
    %v2715 = vrsqrt.pop %v2587
    %v2716 = vrsqrt.pop %v2588
    %v2717 = vrsqrt.pop %v2589
    %v2718 = vrsqrt.pop %v2590
    %v2719 = vrsqrt.pop %v2591
    %v2720 = vrsqrt.pop %v2592
    %v2721 = vrsqrt.pop %v2593
    %v2722 = vrsqrt.pop %v2594
    %v2723 = vrsqrt.pop %v2595
    %v2724 = vrsqrt.pop %v2596
    %v2725 = vrsqrt.pop %v2597
    %v2726 = vrsqrt.pop %v2598
    %v2727 = vrsqrt.pop %v2599
    %v2728 = vrsqrt.pop %v2600
    %v2729 = vrsqrt.pop %v2601
    %v2730 = vrsqrt.pop %v2602
    %v2731 = vrsqrt.pop %v2603
    %v2732 = vrsqrt.pop %v2604
    %v2733 = vrsqrt.pop %v2605
    %v2734 = vrsqrt.pop %v2606
    %v2735 = vrsqrt.pop %v2607
    %v2736 = vrsqrt.pop %v2608
    %v2737 = vrsqrt.pop %v2609
    %v2738 = vrsqrt.pop %v2610
    %v2739 = vrsqrt.pop %v2611
    %v2740 = vrsqrt.pop %v2612
    %v2741 = vrsqrt.pop %v2613
    %v2742 = vrsqrt.pop %v2614
    %v2743 = vrsqrt.pop %v2615
    %v2744 = vrsqrt.pop %v2616
    %v2745 = vrsqrt.pop %v2617
    %v2746 = vrsqrt.pop %v2618
    %v2747 = vrsqrt.pop %v2619
    %v2748 = vrsqrt.pop %v2620
    %v2749 = vrsqrt.pop %v2621
    %v2750 = vrsqrt.pop %v2622
    %v2751 = vrsqrt.pop %v2623
    %v2752 = vrsqrt.pop %v2624
    %v2753 = vrsqrt.pop %v2625
    %v2754 = vrsqrt.pop %v2626
    %v2755 = vrsqrt.pop %v2627
    %v2756 = vrsqrt.pop %v2628
    %v2757 = vrsqrt.pop %v2629
    %v2758 = vrsqrt.pop %v2630
    %v2759 = vrsqrt.pop %v2631
    %v2760 = vrsqrt.pop %v2632
    %v2761 = vrsqrt.pop %v2633
    %v2762 = vrsqrt.pop %v2634
    %v2763 = vrsqrt.pop %v2635
    %v2764 = vrsqrt.pop %v2636
    %v2765 = vrsqrt.pop %v2637
    %v2766 = vrsqrt.pop %v2638
    %v2767 = vrsqrt.pop %v2639
    %v2768 = vrsqrt.pop %v2640
    %v2769 = vrsqrt.pop %v2641
    %v2770 = vrsqrt.pop %v2642
    %v2771 = vrsqrt.pop %v2643
    %v2772 = vrsqrt.pop %v2644
    %v2773 = vrsqrt.pop %v2645
    %v2774 = vrsqrt.pop %v2646
    %v2775 = vrsqrt.pop %v2647
    %v2776 = vrsqrt.pop %v2648
    %v2777 = vrsqrt.pop %v2649
    %v2778 = vrsqrt.pop %v2650
    %v2779 = vrsqrt.pop %v2651
    %v2780 = vrsqrt.pop %v2652
    %v2781 = vrsqrt.pop %v2653
    %v2782 = vrsqrt.pop %v2654
    %v2783 = vrsqrt.pop %v2655
    %v2784 = vrsqrt.pop %v2656
    %v2785 = vrsqrt.pop %v2657
    %v2786 = vrsqrt.pop %v2658
    %v2787 = vrsqrt.pop %v2659
    %v2788 = vrsqrt.pop %v2660
    %v2789 = vrsqrt.pop %v2661
    %v2790 = vrsqrt.pop %v2662
    %v2791 = vrsqrt.pop %v2663
    %v2792 = vrsqrt.pop %v2664
    %v2793 = vrsqrt.pop %v2665
    %v2794 = vrsqrt.pop %v2666
    %v2795 = vrsqrt.pop %v2667
    %v2796 = vrsqrt.pop %v2668
    %v2797 = vrsqrt.pop %v2669
    %v2798 = vrsqrt.pop %v2670
    %v2799 = vrsqrt.pop %v2671
    %v2800 = vrsqrt.pop %v2672
    %v2801 = vrsqrt.pop %v2673
    %v2802 = vrsqrt.pop %v2674
    %v2803 = vrsqrt.pop %v2675
    %v2804 = vrsqrt.pop %v2676
    %v2805 = vrsqrt.pop %v2677
    %v2806 = vrsqrt.pop %v2678
    %v2807 = vrsqrt.pop %v2679
    %v2808 = vrsqrt.pop %v2680
    %v2809 = vrsqrt.pop %v2681
    %v2810 = vrsqrt.pop %v2682
    %v2811 = vrsqrt.pop %v2683
    %v2812 = vrsqrt.pop %v2684
    %v2813 = vrsqrt.pop %v2685
    %v2814 = vrsqrt.pop %v2686
    %v2815 = vrsqrt.pop %v2687
    %v2816 = vrsqrt.pop %v2688
    %v2817 = vrsqrt.pop %v2689
    %v2818 = vrsqrt.pop %v2690
    %v2819 = vrsqrt.pop %v2691
    %v2820 = vrsqrt.pop %v2692
    %v2821 = vrsqrt.pop %v2693
    %v2822 = vrsqrt.pop %v2694
    %v2823 = vrsqrt.pop %v2695
    %v2824 = vrsqrt.pop %v2696
    %v2825 = vrsqrt.pop %v2697
    %v2826 = vrsqrt.pop %v2698
    %v2827 = vrsqrt.pop %v2699
    %v2828 = vmul.f32 %v242, %v2700
    %v2829 = vmul.f32 %v266, %v2701
    %v2830 = vmul.f32 %v249, %v2702
    %v2831 = vmul.f32 %v267, %v2703
    %v2832 = vmul.f32 %v258, %v2704
    %v2833 = vmul.f32 %v268, %v2705
    %v2834 = vmul.f32 %v265, %v2706
    %v2835 = vmul.f32 %v269, %v2707
    %v2836 = vmul.f32 %v310, %v2708
    %v2837 = vmul.f32 %v334, %v2709
    %v2838 = vmul.f32 %v317, %v2710
    %v2839 = vmul.f32 %v335, %v2711
    %v2840 = vmul.f32 %v326, %v2712
    %v2841 = vmul.f32 %v336, %v2713
    %v2842 = vmul.f32 %v333, %v2714
    %v2843 = vmul.f32 %v337, %v2715
    %v2844 = vmul.f32 %v378, %v2716
    %v2845 = vmul.f32 %v402, %v2717
    %v2846 = vmul.f32 %v385, %v2718
    %v2847 = vmul.f32 %v403, %v2719
    %v2848 = vmul.f32 %v394, %v2720
    %v2849 = vmul.f32 %v404, %v2721
    %v2850 = vmul.f32 %v401, %v2722
    %v2851 = vmul.f32 %v405, %v2723
    %v2852 = vmul.f32 %v446, %v2724
    %v2853 = vmul.f32 %v470, %v2725
    %v2854 = vmul.f32 %v453, %v2726
    %v2855 = vmul.f32 %v471, %v2727
    %v2856 = vmul.f32 %v462, %v2728
    %v2857 = vmul.f32 %v472, %v2729
    %v2858 = vmul.f32 %v469, %v2730
    %v2859 = vmul.f32 %v473, %v2731
    %v2860 = vmul.f32 %v514, %v2732
    %v2861 = vmul.f32 %v538, %v2733
    %v2862 = vmul.f32 %v521, %v2734
    %v2863 = vmul.f32 %v539, %v2735
    %v2864 = vmul.f32 %v530, %v2736
    %v2865 = vmul.f32 %v540, %v2737
    %v2866 = vmul.f32 %v537, %v2738
    %v2867 = vmul.f32 %v541, %v2739
    %v2868 = vmul.f32 %v582, %v2740
    %v2869 = vmul.f32 %v606, %v2741
    %v2870 = vmul.f32 %v589, %v2742
    %v2871 = vmul.f32 %v607, %v2743
    %v2872 = vmul.f32 %v598, %v2744
    %v2873 = vmul.f32 %v608, %v2745
    %v2874 = vmul.f32 %v605, %v2746
    %v2875 = vmul.f32 %v609, %v2747
    %v2876 = vmul.f32 %v650, %v2748
    %v2877 = vmul.f32 %v674, %v2749
    %v2878 = vmul.f32 %v657, %v2750
    %v2879 = vmul.f32 %v675, %v2751
    %v2880 = vmul.f32 %v666, %v2752
    %v2881 = vmul.f32 %v676, %v2753
    %v2882 = vmul.f32 %v673, %v2754
    %v2883 = vmul.f32 %v677, %v2755
    %v2884 = vmul.f32 %v718, %v2756
    %v2885 = vmul.f32 %v742, %v2757
    %v2886 = vmul.f32 %v725, %v2758
    %v2887 = vmul.f32 %v743, %v2759
    %v2888 = vmul.f32 %v734, %v2760
    %v2889 = vmul.f32 %v744, %v2761
    %v2890 = vmul.f32 %v741, %v2762
    %v2891 = vmul.f32 %v745, %v2763
    %v2892 = vmul.f32 %v786, %v2764
    %v2893 = vmul.f32 %v810, %v2765
    %v2894 = vmul.f32 %v793, %v2766
    %v2895 = vmul.f32 %v811, %v2767
    %v2896 = vmul.f32 %v802, %v2768
    %v2897 = vmul.f32 %v812, %v2769
    %v2898 = vmul.f32 %v809, %v2770
    %v2899 = vmul.f32 %v813, %v2771
    %v2900 = vmul.f32 %v854, %v2772
    %v2901 = vmul.f32 %v878, %v2773
    %v2902 = vmul.f32 %v861, %v2774
    %v2903 = vmul.f32 %v879, %v2775
    %v2904 = vmul.f32 %v870, %v2776
    %v2905 = vmul.f32 %v880, %v2777
    %v2906 = vmul.f32 %v877, %v2778
    %v2907 = vmul.f32 %v881, %v2779
    %v2908 = vmul.f32 %v922, %v2780
    %v2909 = vmul.f32 %v946, %v2781
    %v2910 = vmul.f32 %v929, %v2782
    %v2911 = vmul.f32 %v947, %v2783
    %v2912 = vmul.f32 %v938, %v2784
    %v2913 = vmul.f32 %v948, %v2785
    %v2914 = vmul.f32 %v945, %v2786
    %v2915 = vmul.f32 %v949, %v2787
    %v2916 = vmul.f32 %v990, %v2788
    %v2917 = vmul.f32 %v1014, %v2789
    %v2918 = vmul.f32 %v997, %v2790
    %v2919 = vmul.f32 %v1015, %v2791
    %v2920 = vmul.f32 %v1006, %v2792
    %v2921 = vmul.f32 %v1016, %v2793
    %v2922 = vmul.f32 %v1013, %v2794
    %v2923 = vmul.f32 %v1017, %v2795
    %v2924 = vmul.f32 %v1058, %v2796
    %v2925 = vmul.f32 %v1082, %v2797
    %v2926 = vmul.f32 %v1065, %v2798
    %v2927 = vmul.f32 %v1083, %v2799
    %v2928 = vmul.f32 %v1074, %v2800
    %v2929 = vmul.f32 %v1084, %v2801
    %v2930 = vmul.f32 %v1081, %v2802
    %v2931 = vmul.f32 %v1085, %v2803
    %v2932 = vmul.f32 %v1126, %v2804
    %v2933 = vmul.f32 %v1150, %v2805
    %v2934 = vmul.f32 %v1133, %v2806
    %v2935 = vmul.f32 %v1151, %v2807
    %v2936 = vmul.f32 %v1142, %v2808
    %v2937 = vmul.f32 %v1152, %v2809
    %v2938 = vmul.f32 %v1149, %v2810
    %v2939 = vmul.f32 %v1153, %v2811
    %v2940 = vmul.f32 %v1194, %v2812
    %v2941 = vmul.f32 %v1218, %v2813
    %v2942 = vmul.f32 %v1201, %v2814
    %v2943 = vmul.f32 %v1219, %v2815
    %v2944 = vmul.f32 %v1210, %v2816
    %v2945 = vmul.f32 %v1220, %v2817
    %v2946 = vmul.f32 %v1217, %v2818
    %v2947 = vmul.f32 %v1221, %v2819
    %v2948 = vmul.f32 %v1262, %v2820
    %v2949 = vmul.f32 %v1286, %v2821
    %v2950 = vmul.f32 %v1269, %v2822
    %v2951 = vmul.f32 %v1287, %v2823
    %v2952 = vmul.f32 %v1278, %v2824
    %v2953 = vmul.f32 %v1288, %v2825
    %v2954 = vmul.f32 %v1285, %v2826
    %v2955 = vmul.f32 %v1289, %v2827
    %v2956 = vcombine.low %v2828, %v2830
    %v2958 = vunpack.c.l.s4 1983009808
    %v2959 = vunpack.c.0.s8 %v2958
    %v2960 = vlaneseq
    %v2961 = vshrl.u32 %v2960, 7
    %v2962 = vsub.s32 %v2959, %v2961
    %v2963 = vrot.slane %v2956, %v2962
    %v2964 = vcombine.low %v2829, %v2831
    %v2966 = vunpack.c.l.s4 1983009808
    %v2967 = vunpack.c.0.s8 %v2966
    %v2968 = vlaneseq
    %v2969 = vshrl.u32 %v2968, 7
    %v2970 = vsub.s32 %v2967, %v2969
    %v2971 = vrot.slane %v2964, %v2970
    %v2972 = vcombine.low %v2832, %v2834
    %v2974 = vunpack.c.l.s4 1983009808
    %v2975 = vunpack.c.0.s8 %v2974
    %v2976 = vlaneseq
    %v2977 = vshrl.u32 %v2976, 7
    %v2978 = vsub.s32 %v2975, %v2977
    %v2979 = vrot.slane %v2972, %v2978
    %v2980 = vcombine.low %v2833, %v2835
    %v2982 = vunpack.c.l.s4 1983009808
    %v2983 = vunpack.c.0.s8 %v2982
    %v2984 = vlaneseq
    %v2985 = vshrl.u32 %v2984, 7
    %v2986 = vsub.s32 %v2983, %v2985
    %v2987 = vrot.slane %v2980, %v2986
    %v2988 = vcombine.low %v2963, %v2971
    %v2989 = vcombine.high %v2963, %v2971
    %v2991 = vunpack.c.l.s4 1934713408
    %v2992 = vunpack.c.0.s8 %v2991
    %v2993 = vlaneseq
    %v2994 = vshrl.u32 %v2993, 7
    %v2995 = vsub.s32 %v2992, %v2994
    %v2996 = vrot.slane %v2988, %v2995
    %v2998 = vunpack.c.l.s4 1934713408
    %v2999 = vunpack.c.0.s8 %v2998
    %v3000 = vlaneseq
    %v3001 = vshrl.u32 %v3000, 7
    %v3002 = vsub.s32 %v2999, %v3001
    %v3003 = vrot.slane %v2989, %v3002
    %v3004 = vcombine.low %v2979, %v2987
    %v3005 = vcombine.high %v2979, %v2987
    %v3007 = vunpack.c.l.s4 1934713408
    %v3008 = vunpack.c.0.s8 %v3007
    %v3009 = vlaneseq
    %v3010 = vshrl.u32 %v3009, 7
    %v3011 = vsub.s32 %v3008, %v3010
    %v3012 = vrot.slane %v3004, %v3011
    %v3014 = vunpack.c.l.s4 1934713408
    %v3015 = vunpack.c.0.s8 %v3014
    %v3016 = vlaneseq
    %v3017 = vshrl.u32 %v3016, 7
    %v3018 = vsub.s32 %v3015, %v3017
    %v3019 = vrot.slane %v3005, %v3018
    %v3020 = vcombine.low %v2996, %v3012
    %v3021 = vcombine.high %v2996, %v3012
    %v3022 = vcombine.low %v3003, %v3019
    %v3023 = vcombine.high %v3003, %v3019
    %v3024 = vcombine.low %v2836, %v2838
    %v3026 = vunpack.c.l.s4 1983009808
    %v3027 = vunpack.c.0.s8 %v3026
    %v3028 = vlaneseq
    %v3029 = vshrl.u32 %v3028, 7
    %v3030 = vsub.s32 %v3027, %v3029
    %v3031 = vrot.slane %v3024, %v3030
    %v3032 = vcombine.low %v2837, %v2839
    %v3034 = vunpack.c.l.s4 1983009808
    %v3035 = vunpack.c.0.s8 %v3034
    %v3036 = vlaneseq
    %v3037 = vshrl.u32 %v3036, 7
    %v3038 = vsub.s32 %v3035, %v3037
    %v3039 = vrot.slane %v3032, %v3038
    %v3040 = vcombine.low %v2840, %v2842
    %v3042 = vunpack.c.l.s4 1983009808
    %v3043 = vunpack.c.0.s8 %v3042
    %v3044 = vlaneseq
    %v3045 = vshrl.u32 %v3044, 7
    %v3046 = vsub.s32 %v3043, %v3045
    %v3047 = vrot.slane %v3040, %v3046
    %v3048 = vcombine.low %v2841, %v2843
    %v3050 = vunpack.c.l.s4 1983009808
    %v3051 = vunpack.c.0.s8 %v3050
    %v3052 = vlaneseq
    %v3053 = vshrl.u32 %v3052, 7
    %v3054 = vsub.s32 %v3051, %v3053
    %v3055 = vrot.slane %v3048, %v3054
    %v3056 = vcombine.low %v3031, %v3039
    %v3057 = vcombine.high %v3031, %v3039
    %v3059 = vunpack.c.l.s4 1934713408
    %v3060 = vunpack.c.0.s8 %v3059
    %v3061 = vlaneseq
    %v3062 = vshrl.u32 %v3061, 7
    %v3063 = vsub.s32 %v3060, %v3062
    %v3064 = vrot.slane %v3056, %v3063
    %v3066 = vunpack.c.l.s4 1934713408
    %v3067 = vunpack.c.0.s8 %v3066
    %v3068 = vlaneseq
    %v3069 = vshrl.u32 %v3068, 7
    %v3070 = vsub.s32 %v3067, %v3069
    %v3071 = vrot.slane %v3057, %v3070
    %v3072 = vcombine.low %v3047, %v3055
    %v3073 = vcombine.high %v3047, %v3055
    %v3075 = vunpack.c.l.s4 1934713408
    %v3076 = vunpack.c.0.s8 %v3075
    %v3077 = vlaneseq
    %v3078 = vshrl.u32 %v3077, 7
    %v3079 = vsub.s32 %v3076, %v3078
    %v3080 = vrot.slane %v3072, %v3079
    %v3082 = vunpack.c.l.s4 1934713408
    %v3083 = vunpack.c.0.s8 %v3082
    %v3084 = vlaneseq
    %v3085 = vshrl.u32 %v3084, 7
    %v3086 = vsub.s32 %v3083, %v3085
    %v3087 = vrot.slane %v3073, %v3086
    %v3088 = vcombine.low %v3064, %v3080
    %v3089 = vcombine.high %v3064, %v3080
    %v3090 = vcombine.low %v3071, %v3087
    %v3091 = vcombine.high %v3071, %v3087
    %v3092 = vcombine.low %v2844, %v2846
    %v3094 = vunpack.c.l.s4 1983009808
    %v3095 = vunpack.c.0.s8 %v3094
    %v3096 = vlaneseq
    %v3097 = vshrl.u32 %v3096, 7
    %v3098 = vsub.s32 %v3095, %v3097
    %v3099 = vrot.slane %v3092, %v3098
    %v3100 = vcombine.low %v2845, %v2847
    %v3102 = vunpack.c.l.s4 1983009808
    %v3103 = vunpack.c.0.s8 %v3102
    %v3104 = vlaneseq
    %v3105 = vshrl.u32 %v3104, 7
    %v3106 = vsub.s32 %v3103, %v3105
    %v3107 = vrot.slane %v3100, %v3106
    %v3108 = vcombine.low %v2848, %v2850
    %v3110 = vunpack.c.l.s4 1983009808
    %v3111 = vunpack.c.0.s8 %v3110
    %v3112 = vlaneseq
    %v3113 = vshrl.u32 %v3112, 7
    %v3114 = vsub.s32 %v3111, %v3113
    %v3115 = vrot.slane %v3108, %v3114
    %v3116 = vcombine.low %v2849, %v2851
    %v3118 = vunpack.c.l.s4 1983009808
    %v3119 = vunpack.c.0.s8 %v3118
    %v3120 = vlaneseq
    %v3121 = vshrl.u32 %v3120, 7
    %v3122 = vsub.s32 %v3119, %v3121
    %v3123 = vrot.slane %v3116, %v3122
    %v3124 = vcombine.low %v3099, %v3107
    %v3125 = vcombine.high %v3099, %v3107
    %v3127 = vunpack.c.l.s4 1934713408
    %v3128 = vunpack.c.0.s8 %v3127
    %v3129 = vlaneseq
    %v3130 = vshrl.u32 %v3129, 7
    %v3131 = vsub.s32 %v3128, %v3130
    %v3132 = vrot.slane %v3124, %v3131
    %v3134 = vunpack.c.l.s4 1934713408
    %v3135 = vunpack.c.0.s8 %v3134
    %v3136 = vlaneseq
    %v3137 = vshrl.u32 %v3136, 7
    %v3138 = vsub.s32 %v3135, %v3137
    %v3139 = vrot.slane %v3125, %v3138
    %v3140 = vcombine.low %v3115, %v3123
    %v3141 = vcombine.high %v3115, %v3123
    %v3143 = vunpack.c.l.s4 1934713408
    %v3144 = vunpack.c.0.s8 %v3143
    %v3145 = vlaneseq
    %v3146 = vshrl.u32 %v3145, 7
    %v3147 = vsub.s32 %v3144, %v3146
    %v3148 = vrot.slane %v3140, %v3147
    %v3150 = vunpack.c.l.s4 1934713408
    %v3151 = vunpack.c.0.s8 %v3150
    %v3152 = vlaneseq
    %v3153 = vshrl.u32 %v3152, 7
    %v3154 = vsub.s32 %v3151, %v3153
    %v3155 = vrot.slane %v3141, %v3154
    %v3156 = vcombine.low %v3132, %v3148
    %v3157 = vcombine.high %v3132, %v3148
    %v3158 = vcombine.low %v3139, %v3155
    %v3159 = vcombine.high %v3139, %v3155
    %v3160 = vcombine.low %v2852, %v2854
    %v3162 = vunpack.c.l.s4 1983009808
    %v3163 = vunpack.c.0.s8 %v3162
    %v3164 = vlaneseq
    %v3165 = vshrl.u32 %v3164, 7
    %v3166 = vsub.s32 %v3163, %v3165
    %v3167 = vrot.slane %v3160, %v3166
    %v3168 = vcombine.low %v2853, %v2855
    %v3170 = vunpack.c.l.s4 1983009808
    %v3171 = vunpack.c.0.s8 %v3170
    %v3172 = vlaneseq
    %v3173 = vshrl.u32 %v3172, 7
    %v3174 = vsub.s32 %v3171, %v3173
    %v3175 = vrot.slane %v3168, %v3174
    %v3176 = vcombine.low %v2856, %v2858
    %v3178 = vunpack.c.l.s4 1983009808
    %v3179 = vunpack.c.0.s8 %v3178
    %v3180 = vlaneseq
    %v3181 = vshrl.u32 %v3180, 7
    %v3182 = vsub.s32 %v3179, %v3181
    %v3183 = vrot.slane %v3176, %v3182
    %v3184 = vcombine.low %v2857, %v2859
    %v3186 = vunpack.c.l.s4 1983009808
    %v3187 = vunpack.c.0.s8 %v3186
    %v3188 = vlaneseq
    %v3189 = vshrl.u32 %v3188, 7
    %v3190 = vsub.s32 %v3187, %v3189
    %v3191 = vrot.slane %v3184, %v3190
    %v3192 = vcombine.low %v3167, %v3175
    %v3193 = vcombine.high %v3167, %v3175
    %v3195 = vunpack.c.l.s4 1934713408
    %v3196 = vunpack.c.0.s8 %v3195
    %v3197 = vlaneseq
    %v3198 = vshrl.u32 %v3197, 7
    %v3199 = vsub.s32 %v3196, %v3198
    %v3200 = vrot.slane %v3192, %v3199
    %v3202 = vunpack.c.l.s4 1934713408
    %v3203 = vunpack.c.0.s8 %v3202
    %v3204 = vlaneseq
    %v3205 = vshrl.u32 %v3204, 7
    %v3206 = vsub.s32 %v3203, %v3205
    %v3207 = vrot.slane %v3193, %v3206
    %v3208 = vcombine.low %v3183, %v3191
    %v3209 = vcombine.high %v3183, %v3191
    %v3211 = vunpack.c.l.s4 1934713408
    %v3212 = vunpack.c.0.s8 %v3211
    %v3213 = vlaneseq
    %v3214 = vshrl.u32 %v3213, 7
    %v3215 = vsub.s32 %v3212, %v3214
    %v3216 = vrot.slane %v3208, %v3215
    %v3218 = vunpack.c.l.s4 1934713408
    %v3219 = vunpack.c.0.s8 %v3218
    %v3220 = vlaneseq
    %v3221 = vshrl.u32 %v3220, 7
    %v3222 = vsub.s32 %v3219, %v3221
    %v3223 = vrot.slane %v3209, %v3222
    %v3224 = vcombine.low %v3200, %v3216
    %v3225 = vcombine.high %v3200, %v3216
    %v3226 = vcombine.low %v3207, %v3223
    %v3227 = vcombine.high %v3207, %v3223
    %v3228 = vcombine.low %v2860, %v2862
    %v3230 = vunpack.c.l.s4 1983009808
    %v3231 = vunpack.c.0.s8 %v3230
    %v3232 = vlaneseq
    %v3233 = vshrl.u32 %v3232, 7
    %v3234 = vsub.s32 %v3231, %v3233
    %v3235 = vrot.slane %v3228, %v3234
    %v3236 = vcombine.low %v2861, %v2863
    %v3238 = vunpack.c.l.s4 1983009808
    %v3239 = vunpack.c.0.s8 %v3238
    %v3240 = vlaneseq
    %v3241 = vshrl.u32 %v3240, 7
    %v3242 = vsub.s32 %v3239, %v3241
    %v3243 = vrot.slane %v3236, %v3242
    %v3244 = vcombine.low %v2864, %v2866
    %v3246 = vunpack.c.l.s4 1983009808
    %v3247 = vunpack.c.0.s8 %v3246
    %v3248 = vlaneseq
    %v3249 = vshrl.u32 %v3248, 7
    %v3250 = vsub.s32 %v3247, %v3249
    %v3251 = vrot.slane %v3244, %v3250
    %v3252 = vcombine.low %v2865, %v2867
    %v3254 = vunpack.c.l.s4 1983009808
    %v3255 = vunpack.c.0.s8 %v3254
    %v3256 = vlaneseq
    %v3257 = vshrl.u32 %v3256, 7
    %v3258 = vsub.s32 %v3255, %v3257
    %v3259 = vrot.slane %v3252, %v3258
    %v3260 = vcombine.low %v3235, %v3243
    %v3261 = vcombine.high %v3235, %v3243
    %v3263 = vunpack.c.l.s4 1934713408
    %v3264 = vunpack.c.0.s8 %v3263
    %v3265 = vlaneseq
    %v3266 = vshrl.u32 %v3265, 7
    %v3267 = vsub.s32 %v3264, %v3266
    %v3268 = vrot.slane %v3260, %v3267
    %v3270 = vunpack.c.l.s4 1934713408
    %v3271 = vunpack.c.0.s8 %v3270
    %v3272 = vlaneseq
    %v3273 = vshrl.u32 %v3272, 7
    %v3274 = vsub.s32 %v3271, %v3273
    %v3275 = vrot.slane %v3261, %v3274
    %v3276 = vcombine.low %v3251, %v3259
    %v3277 = vcombine.high %v3251, %v3259
    %v3279 = vunpack.c.l.s4 1934713408
    %v3280 = vunpack.c.0.s8 %v3279
    %v3281 = vlaneseq
    %v3282 = vshrl.u32 %v3281, 7
    %v3283 = vsub.s32 %v3280, %v3282
    %v3284 = vrot.slane %v3276, %v3283
    %v3286 = vunpack.c.l.s4 1934713408
    %v3287 = vunpack.c.0.s8 %v3286
    %v3288 = vlaneseq
    %v3289 = vshrl.u32 %v3288, 7
    %v3290 = vsub.s32 %v3287, %v3289
    %v3291 = vrot.slane %v3277, %v3290
    %v3292 = vcombine.low %v3268, %v3284
    %v3293 = vcombine.high %v3268, %v3284
    %v3294 = vcombine.low %v3275, %v3291
    %v3295 = vcombine.high %v3275, %v3291
    %v3296 = vcombine.low %v2868, %v2870
    %v3298 = vunpack.c.l.s4 1983009808
    %v3299 = vunpack.c.0.s8 %v3298
    %v3300 = vlaneseq
    %v3301 = vshrl.u32 %v3300, 7
    %v3302 = vsub.s32 %v3299, %v3301
    %v3303 = vrot.slane %v3296, %v3302
    %v3304 = vcombine.low %v2869, %v2871
    %v3306 = vunpack.c.l.s4 1983009808
    %v3307 = vunpack.c.0.s8 %v3306
    %v3308 = vlaneseq
    %v3309 = vshrl.u32 %v3308, 7
    %v3310 = vsub.s32 %v3307, %v3309
    %v3311 = vrot.slane %v3304, %v3310
    %v3312 = vcombine.low %v2872, %v2874
    %v3314 = vunpack.c.l.s4 1983009808
    %v3315 = vunpack.c.0.s8 %v3314
    %v3316 = vlaneseq
    %v3317 = vshrl.u32 %v3316, 7
    %v3318 = vsub.s32 %v3315, %v3317
    %v3319 = vrot.slane %v3312, %v3318
    %v3320 = vcombine.low %v2873, %v2875
    %v3322 = vunpack.c.l.s4 1983009808
    %v3323 = vunpack.c.0.s8 %v3322
    %v3324 = vlaneseq
    %v3325 = vshrl.u32 %v3324, 7
    %v3326 = vsub.s32 %v3323, %v3325
    %v3327 = vrot.slane %v3320, %v3326
    %v3328 = vcombine.low %v3303, %v3311
    %v3329 = vcombine.high %v3303, %v3311
    %v3331 = vunpack.c.l.s4 1934713408
    %v3332 = vunpack.c.0.s8 %v3331
    %v3333 = vlaneseq
    %v3334 = vshrl.u32 %v3333, 7
    %v3335 = vsub.s32 %v3332, %v3334
    %v3336 = vrot.slane %v3328, %v3335
    %v3338 = vunpack.c.l.s4 1934713408
    %v3339 = vunpack.c.0.s8 %v3338
    %v3340 = vlaneseq
    %v3341 = vshrl.u32 %v3340, 7
    %v3342 = vsub.s32 %v3339, %v3341
    %v3343 = vrot.slane %v3329, %v3342
    %v3344 = vcombine.low %v3319, %v3327
    %v3345 = vcombine.high %v3319, %v3327
    %v3347 = vunpack.c.l.s4 1934713408
    %v3348 = vunpack.c.0.s8 %v3347
    %v3349 = vlaneseq
    %v3350 = vshrl.u32 %v3349, 7
    %v3351 = vsub.s32 %v3348, %v3350
    %v3352 = vrot.slane %v3344, %v3351
    %v3354 = vunpack.c.l.s4 1934713408
    %v3355 = vunpack.c.0.s8 %v3354
    %v3356 = vlaneseq
    %v3357 = vshrl.u32 %v3356, 7
    %v3358 = vsub.s32 %v3355, %v3357
    %v3359 = vrot.slane %v3345, %v3358
    %v3360 = vcombine.low %v3336, %v3352
    %v3361 = vcombine.high %v3336, %v3352
    %v3362 = vcombine.low %v3343, %v3359
    %v3363 = vcombine.high %v3343, %v3359
    %v3364 = vcombine.low %v2876, %v2878
    %v3366 = vunpack.c.l.s4 1983009808
    %v3367 = vunpack.c.0.s8 %v3366
    %v3368 = vlaneseq
    %v3369 = vshrl.u32 %v3368, 7
    %v3370 = vsub.s32 %v3367, %v3369
    %v3371 = vrot.slane %v3364, %v3370
    %v3372 = vcombine.low %v2877, %v2879
    %v3374 = vunpack.c.l.s4 1983009808
    %v3375 = vunpack.c.0.s8 %v3374
    %v3376 = vlaneseq
    %v3377 = vshrl.u32 %v3376, 7
    %v3378 = vsub.s32 %v3375, %v3377
    %v3379 = vrot.slane %v3372, %v3378
    %v3380 = vcombine.low %v2880, %v2882
    %v3382 = vunpack.c.l.s4 1983009808
    %v3383 = vunpack.c.0.s8 %v3382
    %v3384 = vlaneseq
    %v3385 = vshrl.u32 %v3384, 7
    %v3386 = vsub.s32 %v3383, %v3385
    %v3387 = vrot.slane %v3380, %v3386
    %v3388 = vcombine.low %v2881, %v2883
    %v3390 = vunpack.c.l.s4 1983009808
    %v3391 = vunpack.c.0.s8 %v3390
    %v3392 = vlaneseq
    %v3393 = vshrl.u32 %v3392, 7
    %v3394 = vsub.s32 %v3391, %v3393
    %v3395 = vrot.slane %v3388, %v3394
    %v3396 = vcombine.low %v3371, %v3379
    %v3397 = vcombine.high %v3371, %v3379
    %v3399 = vunpack.c.l.s4 1934713408
    %v3400 = vunpack.c.0.s8 %v3399
    %v3401 = vlaneseq
    %v3402 = vshrl.u32 %v3401, 7
    %v3403 = vsub.s32 %v3400, %v3402
    %v3404 = vrot.slane %v3396, %v3403
    %v3406 = vunpack.c.l.s4 1934713408
    %v3407 = vunpack.c.0.s8 %v3406
    %v3408 = vlaneseq
    %v3409 = vshrl.u32 %v3408, 7
    %v3410 = vsub.s32 %v3407, %v3409
    %v3411 = vrot.slane %v3397, %v3410
    %v3412 = vcombine.low %v3387, %v3395
    %v3413 = vcombine.high %v3387, %v3395
    %v3415 = vunpack.c.l.s4 1934713408
    %v3416 = vunpack.c.0.s8 %v3415
    %v3417 = vlaneseq
    %v3418 = vshrl.u32 %v3417, 7
    %v3419 = vsub.s32 %v3416, %v3418
    %v3420 = vrot.slane %v3412, %v3419
    %v3422 = vunpack.c.l.s4 1934713408
    %v3423 = vunpack.c.0.s8 %v3422
    %v3424 = vlaneseq
    %v3425 = vshrl.u32 %v3424, 7
    %v3426 = vsub.s32 %v3423, %v3425
    %v3427 = vrot.slane %v3413, %v3426
    %v3428 = vcombine.low %v3404, %v3420
    %v3429 = vcombine.high %v3404, %v3420
    %v3430 = vcombine.low %v3411, %v3427
    %v3431 = vcombine.high %v3411, %v3427
    %v3432 = vcombine.low %v2884, %v2886
    %v3434 = vunpack.c.l.s4 1983009808
    %v3435 = vunpack.c.0.s8 %v3434
    %v3436 = vlaneseq
    %v3437 = vshrl.u32 %v3436, 7
    %v3438 = vsub.s32 %v3435, %v3437
    %v3439 = vrot.slane %v3432, %v3438
    %v3440 = vcombine.low %v2885, %v2887
    %v3442 = vunpack.c.l.s4 1983009808
    %v3443 = vunpack.c.0.s8 %v3442
    %v3444 = vlaneseq
    %v3445 = vshrl.u32 %v3444, 7
    %v3446 = vsub.s32 %v3443, %v3445
    %v3447 = vrot.slane %v3440, %v3446
    %v3448 = vcombine.low %v2888, %v2890
    %v3450 = vunpack.c.l.s4 1983009808
    %v3451 = vunpack.c.0.s8 %v3450
    %v3452 = vlaneseq
    %v3453 = vshrl.u32 %v3452, 7
    %v3454 = vsub.s32 %v3451, %v3453
    %v3455 = vrot.slane %v3448, %v3454
    %v3456 = vcombine.low %v2889, %v2891
    %v3458 = vunpack.c.l.s4 1983009808
    %v3459 = vunpack.c.0.s8 %v3458
    %v3460 = vlaneseq
    %v3461 = vshrl.u32 %v3460, 7
    %v3462 = vsub.s32 %v3459, %v3461
    %v3463 = vrot.slane %v3456, %v3462
    %v3464 = vcombine.low %v3439, %v3447
    %v3465 = vcombine.high %v3439, %v3447
    %v3467 = vunpack.c.l.s4 1934713408
    %v3468 = vunpack.c.0.s8 %v3467
    %v3469 = vlaneseq
    %v3470 = vshrl.u32 %v3469, 7
    %v3471 = vsub.s32 %v3468, %v3470
    %v3472 = vrot.slane %v3464, %v3471
    %v3474 = vunpack.c.l.s4 1934713408
    %v3475 = vunpack.c.0.s8 %v3474
    %v3476 = vlaneseq
    %v3477 = vshrl.u32 %v3476, 7
    %v3478 = vsub.s32 %v3475, %v3477
    %v3479 = vrot.slane %v3465, %v3478
    %v3480 = vcombine.low %v3455, %v3463
    %v3481 = vcombine.high %v3455, %v3463
    %v3483 = vunpack.c.l.s4 1934713408
    %v3484 = vunpack.c.0.s8 %v3483
    %v3485 = vlaneseq
    %v3486 = vshrl.u32 %v3485, 7
    %v3487 = vsub.s32 %v3484, %v3486
    %v3488 = vrot.slane %v3480, %v3487
    %v3490 = vunpack.c.l.s4 1934713408
    %v3491 = vunpack.c.0.s8 %v3490
    %v3492 = vlaneseq
    %v3493 = vshrl.u32 %v3492, 7
    %v3494 = vsub.s32 %v3491, %v3493
    %v3495 = vrot.slane %v3481, %v3494
    %v3496 = vcombine.low %v3472, %v3488
    %v3497 = vcombine.high %v3472, %v3488
    %v3498 = vcombine.low %v3479, %v3495
    %v3499 = vcombine.high %v3479, %v3495
    %v3500 = vcombine.low %v2892, %v2894
    %v3502 = vunpack.c.l.s4 1983009808
    %v3503 = vunpack.c.0.s8 %v3502
    %v3504 = vlaneseq
    %v3505 = vshrl.u32 %v3504, 7
    %v3506 = vsub.s32 %v3503, %v3505
    %v3507 = vrot.slane %v3500, %v3506
    %v3508 = vcombine.low %v2893, %v2895
    %v3510 = vunpack.c.l.s4 1983009808
    %v3511 = vunpack.c.0.s8 %v3510
    %v3512 = vlaneseq
    %v3513 = vshrl.u32 %v3512, 7
    %v3514 = vsub.s32 %v3511, %v3513
    %v3515 = vrot.slane %v3508, %v3514
    %v3516 = vcombine.low %v2896, %v2898
    %v3518 = vunpack.c.l.s4 1983009808
    %v3519 = vunpack.c.0.s8 %v3518
    %v3520 = vlaneseq
    %v3521 = vshrl.u32 %v3520, 7
    %v3522 = vsub.s32 %v3519, %v3521
    %v3523 = vrot.slane %v3516, %v3522
    %v3524 = vcombine.low %v2897, %v2899
    %v3526 = vunpack.c.l.s4 1983009808
    %v3527 = vunpack.c.0.s8 %v3526
    %v3528 = vlaneseq
    %v3529 = vshrl.u32 %v3528, 7
    %v3530 = vsub.s32 %v3527, %v3529
    %v3531 = vrot.slane %v3524, %v3530
    %v3532 = vcombine.low %v3507, %v3515
    %v3533 = vcombine.high %v3507, %v3515
    %v3535 = vunpack.c.l.s4 1934713408
    %v3536 = vunpack.c.0.s8 %v3535
    %v3537 = vlaneseq
    %v3538 = vshrl.u32 %v3537, 7
    %v3539 = vsub.s32 %v3536, %v3538
    %v3540 = vrot.slane %v3532, %v3539
    %v3542 = vunpack.c.l.s4 1934713408
    %v3543 = vunpack.c.0.s8 %v3542
    %v3544 = vlaneseq
    %v3545 = vshrl.u32 %v3544, 7
    %v3546 = vsub.s32 %v3543, %v3545
    %v3547 = vrot.slane %v3533, %v3546
    %v3548 = vcombine.low %v3523, %v3531
    %v3549 = vcombine.high %v3523, %v3531
    %v3551 = vunpack.c.l.s4 1934713408
    %v3552 = vunpack.c.0.s8 %v3551
    %v3553 = vlaneseq
    %v3554 = vshrl.u32 %v3553, 7
    %v3555 = vsub.s32 %v3552, %v3554
    %v3556 = vrot.slane %v3548, %v3555
    %v3558 = vunpack.c.l.s4 1934713408
    %v3559 = vunpack.c.0.s8 %v3558
    %v3560 = vlaneseq
    %v3561 = vshrl.u32 %v3560, 7
    %v3562 = vsub.s32 %v3559, %v3561
    %v3563 = vrot.slane %v3549, %v3562
    %v3564 = vcombine.low %v3540, %v3556
    %v3565 = vcombine.high %v3540, %v3556
    %v3566 = vcombine.low %v3547, %v3563
    %v3567 = vcombine.high %v3547, %v3563
    %v3568 = vcombine.low %v2900, %v2902
    %v3570 = vunpack.c.l.s4 1983009808
    %v3571 = vunpack.c.0.s8 %v3570
    %v3572 = vlaneseq
    %v3573 = vshrl.u32 %v3572, 7
    %v3574 = vsub.s32 %v3571, %v3573
    %v3575 = vrot.slane %v3568, %v3574
    %v3576 = vcombine.low %v2901, %v2903
    %v3578 = vunpack.c.l.s4 1983009808
    %v3579 = vunpack.c.0.s8 %v3578
    %v3580 = vlaneseq
    %v3581 = vshrl.u32 %v3580, 7
    %v3582 = vsub.s32 %v3579, %v3581
    %v3583 = vrot.slane %v3576, %v3582
    %v3584 = vcombine.low %v2904, %v2906
    %v3586 = vunpack.c.l.s4 1983009808
    %v3587 = vunpack.c.0.s8 %v3586
    %v3588 = vlaneseq
    %v3589 = vshrl.u32 %v3588, 7
    %v3590 = vsub.s32 %v3587, %v3589
    %v3591 = vrot.slane %v3584, %v3590
    %v3592 = vcombine.low %v2905, %v2907
    %v3594 = vunpack.c.l.s4 1983009808
    %v3595 = vunpack.c.0.s8 %v3594
    %v3596 = vlaneseq
    %v3597 = vshrl.u32 %v3596, 7
    %v3598 = vsub.s32 %v3595, %v3597
    %v3599 = vrot.slane %v3592, %v3598
    %v3600 = vcombine.low %v3575, %v3583
    %v3601 = vcombine.high %v3575, %v3583
    %v3603 = vunpack.c.l.s4 1934713408
    %v3604 = vunpack.c.0.s8 %v3603
    %v3605 = vlaneseq
    %v3606 = vshrl.u32 %v3605, 7
    %v3607 = vsub.s32 %v3604, %v3606
    %v3608 = vrot.slane %v3600, %v3607
    %v3610 = vunpack.c.l.s4 1934713408
    %v3611 = vunpack.c.0.s8 %v3610
    %v3612 = vlaneseq
    %v3613 = vshrl.u32 %v3612, 7
    %v3614 = vsub.s32 %v3611, %v3613
    %v3615 = vrot.slane %v3601, %v3614
    %v3616 = vcombine.low %v3591, %v3599
    %v3617 = vcombine.high %v3591, %v3599
    %v3619 = vunpack.c.l.s4 1934713408
    %v3620 = vunpack.c.0.s8 %v3619
    %v3621 = vlaneseq
    %v3622 = vshrl.u32 %v3621, 7
    %v3623 = vsub.s32 %v3620, %v3622
    %v3624 = vrot.slane %v3616, %v3623
    %v3626 = vunpack.c.l.s4 1934713408
    %v3627 = vunpack.c.0.s8 %v3626
    %v3628 = vlaneseq
    %v3629 = vshrl.u32 %v3628, 7
    %v3630 = vsub.s32 %v3627, %v3629
    %v3631 = vrot.slane %v3617, %v3630
    %v3632 = vcombine.low %v3608, %v3624
    %v3633 = vcombine.high %v3608, %v3624
    %v3634 = vcombine.low %v3615, %v3631
    %v3635 = vcombine.high %v3615, %v3631
    %v3636 = vcombine.low %v2908, %v2910
    %v3638 = vunpack.c.l.s4 1983009808
    %v3639 = vunpack.c.0.s8 %v3638
    %v3640 = vlaneseq
    %v3641 = vshrl.u32 %v3640, 7
    %v3642 = vsub.s32 %v3639, %v3641
    %v3643 = vrot.slane %v3636, %v3642
    %v3644 = vcombine.low %v2909, %v2911
    %v3646 = vunpack.c.l.s4 1983009808
    %v3647 = vunpack.c.0.s8 %v3646
    %v3648 = vlaneseq
    %v3649 = vshrl.u32 %v3648, 7
    %v3650 = vsub.s32 %v3647, %v3649
    %v3651 = vrot.slane %v3644, %v3650
    %v3652 = vcombine.low %v2912, %v2914
    %v3654 = vunpack.c.l.s4 1983009808
    %v3655 = vunpack.c.0.s8 %v3654
    %v3656 = vlaneseq
    %v3657 = vshrl.u32 %v3656, 7
    %v3658 = vsub.s32 %v3655, %v3657
    %v3659 = vrot.slane %v3652, %v3658
    %v3660 = vcombine.low %v2913, %v2915
    %v3662 = vunpack.c.l.s4 1983009808
    %v3663 = vunpack.c.0.s8 %v3662
    %v3664 = vlaneseq
    %v3665 = vshrl.u32 %v3664, 7
    %v3666 = vsub.s32 %v3663, %v3665
    %v3667 = vrot.slane %v3660, %v3666
    %v3668 = vcombine.low %v3643, %v3651
    %v3669 = vcombine.high %v3643, %v3651
    %v3671 = vunpack.c.l.s4 1934713408
    %v3672 = vunpack.c.0.s8 %v3671
    %v3673 = vlaneseq
    %v3674 = vshrl.u32 %v3673, 7
    %v3675 = vsub.s32 %v3672, %v3674
    %v3676 = vrot.slane %v3668, %v3675
    %v3678 = vunpack.c.l.s4 1934713408
    %v3679 = vunpack.c.0.s8 %v3678
    %v3680 = vlaneseq
    %v3681 = vshrl.u32 %v3680, 7
    %v3682 = vsub.s32 %v3679, %v3681
    %v3683 = vrot.slane %v3669, %v3682
    %v3684 = vcombine.low %v3659, %v3667
    %v3685 = vcombine.high %v3659, %v3667
    %v3687 = vunpack.c.l.s4 1934713408
    %v3688 = vunpack.c.0.s8 %v3687
    %v3689 = vlaneseq
    %v3690 = vshrl.u32 %v3689, 7
    %v3691 = vsub.s32 %v3688, %v3690
    %v3692 = vrot.slane %v3684, %v3691
    %v3694 = vunpack.c.l.s4 1934713408
    %v3695 = vunpack.c.0.s8 %v3694
    %v3696 = vlaneseq
    %v3697 = vshrl.u32 %v3696, 7
    %v3698 = vsub.s32 %v3695, %v3697
    %v3699 = vrot.slane %v3685, %v3698
    %v3700 = vcombine.low %v3676, %v3692
    %v3701 = vcombine.high %v3676, %v3692
    %v3702 = vcombine.low %v3683, %v3699
    %v3703 = vcombine.high %v3683, %v3699
    %v3704 = vcombine.low %v2916, %v2918
    %v3706 = vunpack.c.l.s4 1983009808
    %v3707 = vunpack.c.0.s8 %v3706
    %v3708 = vlaneseq
    %v3709 = vshrl.u32 %v3708, 7
    %v3710 = vsub.s32 %v3707, %v3709
    %v3711 = vrot.slane %v3704, %v3710
    %v3712 = vcombine.low %v2917, %v2919
    %v3714 = vunpack.c.l.s4 1983009808
    %v3715 = vunpack.c.0.s8 %v3714
    %v3716 = vlaneseq
    %v3717 = vshrl.u32 %v3716, 7
    %v3718 = vsub.s32 %v3715, %v3717
    %v3719 = vrot.slane %v3712, %v3718
    %v3720 = vcombine.low %v2920, %v2922
    %v3722 = vunpack.c.l.s4 1983009808
    %v3723 = vunpack.c.0.s8 %v3722
    %v3724 = vlaneseq
    %v3725 = vshrl.u32 %v3724, 7
    %v3726 = vsub.s32 %v3723, %v3725
    %v3727 = vrot.slane %v3720, %v3726
    %v3728 = vcombine.low %v2921, %v2923
    %v3730 = vunpack.c.l.s4 1983009808
    %v3731 = vunpack.c.0.s8 %v3730
    %v3732 = vlaneseq
    %v3733 = vshrl.u32 %v3732, 7
    %v3734 = vsub.s32 %v3731, %v3733
    %v3735 = vrot.slane %v3728, %v3734
    %v3736 = vcombine.low %v3711, %v3719
    %v3737 = vcombine.high %v3711, %v3719
    %v3739 = vunpack.c.l.s4 1934713408
    %v3740 = vunpack.c.0.s8 %v3739
    %v3741 = vlaneseq
    %v3742 = vshrl.u32 %v3741, 7
    %v3743 = vsub.s32 %v3740, %v3742
    %v3744 = vrot.slane %v3736, %v3743
    %v3746 = vunpack.c.l.s4 1934713408
    %v3747 = vunpack.c.0.s8 %v3746
    %v3748 = vlaneseq
    %v3749 = vshrl.u32 %v3748, 7
    %v3750 = vsub.s32 %v3747, %v3749
    %v3751 = vrot.slane %v3737, %v3750
    %v3752 = vcombine.low %v3727, %v3735
    %v3753 = vcombine.high %v3727, %v3735
    %v3755 = vunpack.c.l.s4 1934713408
    %v3756 = vunpack.c.0.s8 %v3755
    %v3757 = vlaneseq
    %v3758 = vshrl.u32 %v3757, 7
    %v3759 = vsub.s32 %v3756, %v3758
    %v3760 = vrot.slane %v3752, %v3759
    %v3762 = vunpack.c.l.s4 1934713408
    %v3763 = vunpack.c.0.s8 %v3762
    %v3764 = vlaneseq
    %v3765 = vshrl.u32 %v3764, 7
    %v3766 = vsub.s32 %v3763, %v3765
    %v3767 = vrot.slane %v3753, %v3766
    %v3768 = vcombine.low %v3744, %v3760
    %v3769 = vcombine.high %v3744, %v3760
    %v3770 = vcombine.low %v3751, %v3767
    %v3771 = vcombine.high %v3751, %v3767
    %v3772 = vcombine.low %v2924, %v2926
    %v3774 = vunpack.c.l.s4 1983009808
    %v3775 = vunpack.c.0.s8 %v3774
    %v3776 = vlaneseq
    %v3777 = vshrl.u32 %v3776, 7
    %v3778 = vsub.s32 %v3775, %v3777
    %v3779 = vrot.slane %v3772, %v3778
    %v3780 = vcombine.low %v2925, %v2927
    %v3782 = vunpack.c.l.s4 1983009808
    %v3783 = vunpack.c.0.s8 %v3782
    %v3784 = vlaneseq
    %v3785 = vshrl.u32 %v3784, 7
    %v3786 = vsub.s32 %v3783, %v3785
    %v3787 = vrot.slane %v3780, %v3786
    %v3788 = vcombine.low %v2928, %v2930
    %v3790 = vunpack.c.l.s4 1983009808
    %v3791 = vunpack.c.0.s8 %v3790
    %v3792 = vlaneseq
    %v3793 = vshrl.u32 %v3792, 7
    %v3794 = vsub.s32 %v3791, %v3793
    %v3795 = vrot.slane %v3788, %v3794
    %v3796 = vcombine.low %v2929, %v2931
    %v3798 = vunpack.c.l.s4 1983009808
    %v3799 = vunpack.c.0.s8 %v3798
    %v3800 = vlaneseq
    %v3801 = vshrl.u32 %v3800, 7
    %v3802 = vsub.s32 %v3799, %v3801
    %v3803 = vrot.slane %v3796, %v3802
    %v3804 = vcombine.low %v3779, %v3787
    %v3805 = vcombine.high %v3779, %v3787
    %v3807 = vunpack.c.l.s4 1934713408
    %v3808 = vunpack.c.0.s8 %v3807
    %v3809 = vlaneseq
    %v3810 = vshrl.u32 %v3809, 7
    %v3811 = vsub.s32 %v3808, %v3810
    %v3812 = vrot.slane %v3804, %v3811
    %v3814 = vunpack.c.l.s4 1934713408
    %v3815 = vunpack.c.0.s8 %v3814
    %v3816 = vlaneseq
    %v3817 = vshrl.u32 %v3816, 7
    %v3818 = vsub.s32 %v3815, %v3817
    %v3819 = vrot.slane %v3805, %v3818
    %v3820 = vcombine.low %v3795, %v3803
    %v3821 = vcombine.high %v3795, %v3803
    %v3823 = vunpack.c.l.s4 1934713408
    %v3824 = vunpack.c.0.s8 %v3823
    %v3825 = vlaneseq
    %v3826 = vshrl.u32 %v3825, 7
    %v3827 = vsub.s32 %v3824, %v3826
    %v3828 = vrot.slane %v3820, %v3827
    %v3830 = vunpack.c.l.s4 1934713408
    %v3831 = vunpack.c.0.s8 %v3830
    %v3832 = vlaneseq
    %v3833 = vshrl.u32 %v3832, 7
    %v3834 = vsub.s32 %v3831, %v3833
    %v3835 = vrot.slane %v3821, %v3834
    %v3836 = vcombine.low %v3812, %v3828
    %v3837 = vcombine.high %v3812, %v3828
    %v3838 = vcombine.low %v3819, %v3835
    %v3839 = vcombine.high %v3819, %v3835
    %v3840 = vcombine.low %v2932, %v2934
    %v3842 = vunpack.c.l.s4 1983009808
    %v3843 = vunpack.c.0.s8 %v3842
    %v3844 = vlaneseq
    %v3845 = vshrl.u32 %v3844, 7
    %v3846 = vsub.s32 %v3843, %v3845
    %v3847 = vrot.slane %v3840, %v3846
    %v3848 = vcombine.low %v2933, %v2935
    %v3850 = vunpack.c.l.s4 1983009808
    %v3851 = vunpack.c.0.s8 %v3850
    %v3852 = vlaneseq
    %v3853 = vshrl.u32 %v3852, 7
    %v3854 = vsub.s32 %v3851, %v3853
    %v3855 = vrot.slane %v3848, %v3854
    %v3856 = vcombine.low %v2936, %v2938
    %v3858 = vunpack.c.l.s4 1983009808
    %v3859 = vunpack.c.0.s8 %v3858
    %v3860 = vlaneseq
    %v3861 = vshrl.u32 %v3860, 7
    %v3862 = vsub.s32 %v3859, %v3861
    %v3863 = vrot.slane %v3856, %v3862
    %v3864 = vcombine.low %v2937, %v2939
    %v3866 = vunpack.c.l.s4 1983009808
    %v3867 = vunpack.c.0.s8 %v3866
    %v3868 = vlaneseq
    %v3869 = vshrl.u32 %v3868, 7
    %v3870 = vsub.s32 %v3867, %v3869
    %v3871 = vrot.slane %v3864, %v3870
    %v3872 = vcombine.low %v3847, %v3855
    %v3873 = vcombine.high %v3847, %v3855
    %v3875 = vunpack.c.l.s4 1934713408
    %v3876 = vunpack.c.0.s8 %v3875
    %v3877 = vlaneseq
    %v3878 = vshrl.u32 %v3877, 7
    %v3879 = vsub.s32 %v3876, %v3878
    %v3880 = vrot.slane %v3872, %v3879
    %v3882 = vunpack.c.l.s4 1934713408
    %v3883 = vunpack.c.0.s8 %v3882
    %v3884 = vlaneseq
    %v3885 = vshrl.u32 %v3884, 7
    %v3886 = vsub.s32 %v3883, %v3885
    %v3887 = vrot.slane %v3873, %v3886
    %v3888 = vcombine.low %v3863, %v3871
    %v3889 = vcombine.high %v3863, %v3871
    %v3891 = vunpack.c.l.s4 1934713408
    %v3892 = vunpack.c.0.s8 %v3891
    %v3893 = vlaneseq
    %v3894 = vshrl.u32 %v3893, 7
    %v3895 = vsub.s32 %v3892, %v3894
    %v3896 = vrot.slane %v3888, %v3895
    %v3898 = vunpack.c.l.s4 1934713408
    %v3899 = vunpack.c.0.s8 %v3898
    %v3900 = vlaneseq
    %v3901 = vshrl.u32 %v3900, 7
    %v3902 = vsub.s32 %v3899, %v3901
    %v3903 = vrot.slane %v3889, %v3902
    %v3904 = vcombine.low %v3880, %v3896
    %v3905 = vcombine.high %v3880, %v3896
    %v3906 = vcombine.low %v3887, %v3903
    %v3907 = vcombine.high %v3887, %v3903
    %v3908 = vcombine.low %v2940, %v2942
    %v3910 = vunpack.c.l.s4 1983009808
    %v3911 = vunpack.c.0.s8 %v3910
    %v3912 = vlaneseq
    %v3913 = vshrl.u32 %v3912, 7
    %v3914 = vsub.s32 %v3911, %v3913
    %v3915 = vrot.slane %v3908, %v3914
    %v3916 = vcombine.low %v2941, %v2943
    %v3918 = vunpack.c.l.s4 1983009808
    %v3919 = vunpack.c.0.s8 %v3918
    %v3920 = vlaneseq
    %v3921 = vshrl.u32 %v3920, 7
    %v3922 = vsub.s32 %v3919, %v3921
    %v3923 = vrot.slane %v3916, %v3922
    %v3924 = vcombine.low %v2944, %v2946
    %v3926 = vunpack.c.l.s4 1983009808
    %v3927 = vunpack.c.0.s8 %v3926
    %v3928 = vlaneseq
    %v3929 = vshrl.u32 %v3928, 7
    %v3930 = vsub.s32 %v3927, %v3929
    %v3931 = vrot.slane %v3924, %v3930
    %v3932 = vcombine.low %v2945, %v2947
    %v3934 = vunpack.c.l.s4 1983009808
    %v3935 = vunpack.c.0.s8 %v3934
    %v3936 = vlaneseq
    %v3937 = vshrl.u32 %v3936, 7
    %v3938 = vsub.s32 %v3935, %v3937
    %v3939 = vrot.slane %v3932, %v3938
    %v3940 = vcombine.low %v3915, %v3923
    %v3941 = vcombine.high %v3915, %v3923
    %v3943 = vunpack.c.l.s4 1934713408
    %v3944 = vunpack.c.0.s8 %v3943
    %v3945 = vlaneseq
    %v3946 = vshrl.u32 %v3945, 7
    %v3947 = vsub.s32 %v3944, %v3946
    %v3948 = vrot.slane %v3940, %v3947
    %v3950 = vunpack.c.l.s4 1934713408
    %v3951 = vunpack.c.0.s8 %v3950
    %v3952 = vlaneseq
    %v3953 = vshrl.u32 %v3952, 7
    %v3954 = vsub.s32 %v3951, %v3953
    %v3955 = vrot.slane %v3941, %v3954
    %v3956 = vcombine.low %v3931, %v3939
    %v3957 = vcombine.high %v3931, %v3939
    %v3959 = vunpack.c.l.s4 1934713408
    %v3960 = vunpack.c.0.s8 %v3959
    %v3961 = vlaneseq
    %v3962 = vshrl.u32 %v3961, 7
    %v3963 = vsub.s32 %v3960, %v3962
    %v3964 = vrot.slane %v3956, %v3963
    %v3966 = vunpack.c.l.s4 1934713408
    %v3967 = vunpack.c.0.s8 %v3966
    %v3968 = vlaneseq
    %v3969 = vshrl.u32 %v3968, 7
    %v3970 = vsub.s32 %v3967, %v3969
    %v3971 = vrot.slane %v3957, %v3970
    %v3972 = vcombine.low %v3948, %v3964
    %v3973 = vcombine.high %v3948, %v3964
    %v3974 = vcombine.low %v3955, %v3971
    %v3975 = vcombine.high %v3955, %v3971
    %v3976 = vcombine.low %v2948, %v2950
    %v3978 = vunpack.c.l.s4 1983009808
    %v3979 = vunpack.c.0.s8 %v3978
    %v3980 = vlaneseq
    %v3981 = vshrl.u32 %v3980, 7
    %v3982 = vsub.s32 %v3979, %v3981
    %v3983 = vrot.slane %v3976, %v3982
    %v3984 = vcombine.low %v2949, %v2951
    %v3986 = vunpack.c.l.s4 1983009808
    %v3987 = vunpack.c.0.s8 %v3986
    %v3988 = vlaneseq
    %v3989 = vshrl.u32 %v3988, 7
    %v3990 = vsub.s32 %v3987, %v3989
    %v3991 = vrot.slane %v3984, %v3990
    %v3992 = vcombine.low %v2952, %v2954
    %v3994 = vunpack.c.l.s4 1983009808
    %v3995 = vunpack.c.0.s8 %v3994
    %v3996 = vlaneseq
    %v3997 = vshrl.u32 %v3996, 7
    %v3998 = vsub.s32 %v3995, %v3997
    %v3999 = vrot.slane %v3992, %v3998
    %v4000 = vcombine.low %v2953, %v2955
    %v4002 = vunpack.c.l.s4 1983009808
    %v4003 = vunpack.c.0.s8 %v4002
    %v4004 = vlaneseq
    %v4005 = vshrl.u32 %v4004, 7
    %v4006 = vsub.s32 %v4003, %v4005
    %v4007 = vrot.slane %v4000, %v4006
    %v4008 = vcombine.low %v3983, %v3991
    %v4009 = vcombine.high %v3983, %v3991
    %v4011 = vunpack.c.l.s4 1934713408
    %v4012 = vunpack.c.0.s8 %v4011
    %v4013 = vlaneseq
    %v4014 = vshrl.u32 %v4013, 7
    %v4015 = vsub.s32 %v4012, %v4014
    %v4016 = vrot.slane %v4008, %v4015
    %v4018 = vunpack.c.l.s4 1934713408
    %v4019 = vunpack.c.0.s8 %v4018
    %v4020 = vlaneseq
    %v4021 = vshrl.u32 %v4020, 7
    %v4022 = vsub.s32 %v4019, %v4021
    %v4023 = vrot.slane %v4009, %v4022
    %v4024 = vcombine.low %v3999, %v4007
    %v4025 = vcombine.high %v3999, %v4007
    %v4027 = vunpack.c.l.s4 1934713408
    %v4028 = vunpack.c.0.s8 %v4027
    %v4029 = vlaneseq
    %v4030 = vshrl.u32 %v4029, 7
    %v4031 = vsub.s32 %v4028, %v4030
    %v4032 = vrot.slane %v4024, %v4031
    %v4034 = vunpack.c.l.s4 1934713408
    %v4035 = vunpack.c.0.s8 %v4034
    %v4036 = vlaneseq
    %v4037 = vshrl.u32 %v4036, 7
    %v4038 = vsub.s32 %v4035, %v4037
    %v4039 = vrot.slane %v4025, %v4038
    %v4040 = vcombine.low %v4016, %v4032
    %v4041 = vcombine.high %v4016, %v4032
    %v4042 = vcombine.low %v4023, %v4039
    %v4043 = vcombine.high %v4023, %v4039
    %4060 = vrot.lane.b32.xlu0 %v3021, 32
    %v4061 = vpop.permute.xlu0 %4060
    %4062 = vrot.lane.b32.xlu0 %v3089, 32
    %v4063 = vpop.permute.xlu0 %4062
    %4064 = vrot.lane.b32.xlu0 %v3157, 32
    %v4065 = vpop.permute.xlu0 %4064
    %4066 = vrot.lane.b32.xlu0 %v3225, 32
    %v4067 = vpop.permute.xlu0 %4066
    %4068 = vrot.lane.b32.xlu0 %v3293, 32
    %v4069 = vpop.permute.xlu0 %4068
    %4070 = vrot.lane.b32.xlu0 %v3361, 32
    %v4071 = vpop.permute.xlu0 %4070
    %4072 = vrot.lane.b32.xlu0 %v3429, 32
    %v4073 = vpop.permute.xlu0 %4072
    %4074 = vrot.lane.b32.xlu0 %v3497, 32
    %v4075 = vpop.permute.xlu0 %4074
    %4076 = vrot.lane.b32.xlu0 %v3565, 32
    %v4077 = vpop.permute.xlu0 %4076
    %4078 = vrot.lane.b32.xlu0 %v3633, 32
    %v4079 = vpop.permute.xlu0 %4078
    %4080 = vrot.lane.b32.xlu0 %v3701, 32
    %v4081 = vpop.permute.xlu0 %4080
    %4082 = vrot.lane.b32.xlu0 %v3769, 32
    %v4083 = vpop.permute.xlu0 %4082
    %4084 = vrot.lane.b32.xlu0 %v3837, 32
    %v4085 = vpop.permute.xlu0 %4084
    %4086 = vrot.lane.b32.xlu0 %v3905, 32
    %v4087 = vpop.permute.xlu0 %4086
    %4088 = vrot.lane.b32.xlu0 %v3973, 32
    %v4089 = vpop.permute.xlu0 %4088
    %4090 = vrot.lane.b32.xlu0 %v4041, 32
    %v4091 = vpop.permute.xlu0 %4090
    %4124 = vrot.lane.b32.xlu0 %v3022, 64
    %v4125 = vpop.permute.xlu0 %4124
    %4126 = vrot.lane.b32.xlu0 %v3090, 64
    %v4127 = vpop.permute.xlu0 %4126
    %4128 = vrot.lane.b32.xlu0 %v3158, 64
    %v4129 = vpop.permute.xlu0 %4128
    %4130 = vrot.lane.b32.xlu0 %v3226, 64
    %v4131 = vpop.permute.xlu0 %4130
    %4132 = vrot.lane.b32.xlu0 %v3294, 64
    %v4133 = vpop.permute.xlu0 %4132
    %4134 = vrot.lane.b32.xlu0 %v3362, 64
    %v4135 = vpop.permute.xlu0 %4134
    %4136 = vrot.lane.b32.xlu0 %v3430, 64
    %v4137 = vpop.permute.xlu0 %4136
    %4138 = vrot.lane.b32.xlu0 %v3498, 64
    %v4139 = vpop.permute.xlu0 %4138
    %4140 = vrot.lane.b32.xlu0 %v3566, 64
    %v4141 = vpop.permute.xlu0 %4140
    %4142 = vrot.lane.b32.xlu0 %v3634, 64
    %v4143 = vpop.permute.xlu0 %4142
    %4144 = vrot.lane.b32.xlu0 %v3702, 64
    %v4145 = vpop.permute.xlu0 %4144
    %4146 = vrot.lane.b32.xlu0 %v3770, 64
    %v4147 = vpop.permute.xlu0 %4146
    %4148 = vrot.lane.b32.xlu0 %v3838, 64
    %v4149 = vpop.permute.xlu0 %4148
    %4150 = vrot.lane.b32.xlu0 %v3906, 64
    %v4151 = vpop.permute.xlu0 %4150
    %4152 = vrot.lane.b32.xlu0 %v3974, 64
    %v4153 = vpop.permute.xlu0 %4152
    %4154 = vrot.lane.b32.xlu0 %v4042, 64
    %v4155 = vpop.permute.xlu0 %4154
    %4188 = vrot.lane.b32.xlu0 %v3023, 96
    %v4189 = vpop.permute.xlu0 %4188
    %4190 = vrot.lane.b32.xlu0 %v3091, 96
    %v4191 = vpop.permute.xlu0 %4190
    %4192 = vrot.lane.b32.xlu0 %v3159, 96
    %v4193 = vpop.permute.xlu0 %4192
    %4194 = vrot.lane.b32.xlu0 %v3227, 96
    %v4195 = vpop.permute.xlu0 %4194
    %4196 = vrot.lane.b32.xlu0 %v3295, 96
    %v4197 = vpop.permute.xlu0 %4196
    %4198 = vrot.lane.b32.xlu0 %v3363, 96
    %v4199 = vpop.permute.xlu0 %4198
    %4200 = vrot.lane.b32.xlu0 %v3431, 96
    %v4201 = vpop.permute.xlu0 %4200
    %4202 = vrot.lane.b32.xlu0 %v3499, 96
    %v4203 = vpop.permute.xlu0 %4202
    %4204 = vrot.lane.b32.xlu0 %v3567, 96
    %v4205 = vpop.permute.xlu0 %4204
    %4206 = vrot.lane.b32.xlu0 %v3635, 96
    %v4207 = vpop.permute.xlu0 %4206
    %4208 = vrot.lane.b32.xlu0 %v3703, 96
    %v4209 = vpop.permute.xlu0 %4208
    %4210 = vrot.lane.b32.xlu0 %v3771, 96
    %v4211 = vpop.permute.xlu0 %4210
    %4212 = vrot.lane.b32.xlu0 %v3839, 96
    %v4213 = vpop.permute.xlu0 %4212
    %4214 = vrot.lane.b32.xlu0 %v3907, 96
    %v4215 = vpop.permute.xlu0 %4214
    %4216 = vrot.lane.b32.xlu0 %v3975, 96
    %v4217 = vpop.permute.xlu0 %4216
    %4218 = vrot.lane.b32.xlu0 %v4043, 96
    %v4219 = vpop.permute.xlu0 %4218
    %vm4236 = vcmask 261120
    %v4237 = vsel %vm4236, %v3020, %v4061
    %v4238 = vsel %vm4236, %v3088, %v4063
    %v4239 = vsel %vm4236, %v3156, %v4065
    %v4240 = vsel %vm4236, %v3224, %v4067
    %v4241 = vsel %vm4236, %v3292, %v4069
    %v4242 = vsel %vm4236, %v3360, %v4071
    %v4243 = vsel %vm4236, %v3428, %v4073
    %v4244 = vsel %vm4236, %v3496, %v4075
    %v4245 = vsel %vm4236, %v3564, %v4077
    %v4246 = vsel %vm4236, %v3632, %v4079
    %v4247 = vsel %vm4236, %v3700, %v4081
    %v4248 = vsel %vm4236, %v3768, %v4083
    %v4249 = vsel %vm4236, %v3836, %v4085
    %v4250 = vsel %vm4236, %v3904, %v4087
    %v4251 = vsel %vm4236, %v3972, %v4089
    %v4252 = vsel %vm4236, %v4040, %v4091
    %vm4253 = vcmask 523264
    %v4254 = vsel %vm4253, %v4237, %v4125
    %v4255 = vsel %vm4253, %v4238, %v4127
    %v4256 = vsel %vm4253, %v4239, %v4129
    %v4257 = vsel %vm4253, %v4240, %v4131
    %v4258 = vsel %vm4253, %v4241, %v4133
    %v4259 = vsel %vm4253, %v4242, %v4135
    %v4260 = vsel %vm4253, %v4243, %v4137
    %v4261 = vsel %vm4253, %v4244, %v4139
    %v4262 = vsel %vm4253, %v4245, %v4141
    %v4263 = vsel %vm4253, %v4246, %v4143
    %v4264 = vsel %vm4253, %v4247, %v4145
    %v4265 = vsel %vm4253, %v4248, %v4147
    %v4266 = vsel %vm4253, %v4249, %v4149
    %v4267 = vsel %vm4253, %v4250, %v4151
    %v4268 = vsel %vm4253, %v4251, %v4153
    %v4269 = vsel %vm4253, %v4252, %v4155
    %vm4270 = vcmask 785408
    %v4271 = vsel %vm4270, %v4254, %v4189
    %v4272 = vsel %vm4270, %v4255, %v4191
    %v4273 = vsel %vm4270, %v4256, %v4193
    %v4274 = vsel %vm4270, %v4257, %v4195
    %v4275 = vsel %vm4270, %v4258, %v4197
    %v4276 = vsel %vm4270, %v4259, %v4199
    %v4277 = vsel %vm4270, %v4260, %v4201
    %v4278 = vsel %vm4270, %v4261, %v4203
    %v4279 = vsel %vm4270, %v4262, %v4205
    %v4280 = vsel %vm4270, %v4263, %v4207
    %v4281 = vsel %vm4270, %v4264, %v4209
    %v4282 = vsel %vm4270, %v4265, %v4211
    %v4283 = vsel %vm4270, %v4266, %v4213
    %v4284 = vsel %vm4270, %v4267, %v4215
    %v4285 = vsel %vm4270, %v4268, %v4217
    %v4286 = vsel %vm4270, %v4269, %v4219
    %v4287 = vld [vmem:[%s1] sm:$0x1]
    %v4289 = vlaneseq
    %v4290 = vshrl.u32 %v4289, 7
    %v4291 = vsub.s32 0, %v4290
    %v4292 = vrot.slane %v4287, %v4291
    %v4294 = vmul.f32 %v4271, %v4292
    %v4295 = vmul.f32 %v4272, %v4292
    %v4296 = vmul.f32 %v4273, %v4292
    %v4297 = vmul.f32 %v4274, %v4292
    %v4298 = vmul.f32 %v4275, %v4292
    %v4299 = vmul.f32 %v4276, %v4292
    %v4300 = vmul.f32 %v4277, %v4292
    %v4301 = vmul.f32 %v4278, %v4292
    %v4302 = vmul.f32 %v4279, %v4292
    %v4303 = vmul.f32 %v4280, %v4292
    %v4304 = vmul.f32 %v4281, %v4292
    %v4305 = vmul.f32 %v4282, %v4292
    %v4306 = vmul.f32 %v4283, %v4292
    %v4307 = vmul.f32 %v4284, %v4292
    %v4308 = vmul.f32 %v4285, %v4292
    %v4309 = vmul.f32 %v4286, %v4292
    %4310 = vst [vmem:[#allocation5] sm:$0xff] %v4294
    %4311 = vst [vmem:[#allocation5 + $0x8] sm:$0xff] %v4295
    %4312 = vst [vmem:[#allocation5 + $0x10] sm:$0xff] %v4296
    %4313 = vst [vmem:[#allocation5 + $0x18] sm:$0xff] %v4297
    %4314 = vst [vmem:[#allocation5 + $0x20] sm:$0xff] %v4298
    %4315 = vst [vmem:[#allocation5 + $0x28] sm:$0xff] %v4299
    %4316 = vst [vmem:[#allocation5 + $0x30] sm:$0xff] %v4300
    %4317 = vst [vmem:[#allocation5 + $0x38] sm:$0xff] %v4301
    %4318 = vst [vmem:[#allocation5 + $0x40] sm:$0xff] %v4302
    %4319 = vst [vmem:[#allocation5 + $0x48] sm:$0xff] %v4303
    %4320 = vst [vmem:[#allocation5 + $0x50] sm:$0xff] %v4304
    %4321 = vst [vmem:[#allocation5 + $0x58] sm:$0xff] %v4305
    %4322 = vst [vmem:[#allocation5 + $0x60] sm:$0xff] %v4306
    %4323 = vst [vmem:[#allocation5 + $0x68] sm:$0xff] %v4307
    %4324 = vst [vmem:[#allocation5 + $0x70] sm:$0xff] %v4308
    %4325 = vst [vmem:[#allocation5 + $0x78] sm:$0xff] %v4309
    // Predicated region
    $region14: #{tpu_custom_call.1} parent=1 // pred_check
      _
    $region15: #{tpu_custom_call.1} parent=1 // pred_check_branch
      %4327 = sbr.rel (0) target = $region17
    $region16: #{tpu_custom_call.1} parent=1 // pred_region
      %s4329 = ssub.s32 2048, 2048
      %4330 = vsyncadd [#allocation4], %s4329
      %s4331 = sshll.u32 [#allocation5], 4
      %s4332 = int_to_ptr.vmem [resolvable:$true] %s4331
      %4337 = dma.vmem_to_hbm [thread:$0]  %s4332, 2048, %s2, [#allocation4], 128, 128, 8
    $region17: #{tpu_custom_call.1} parent=1 // pred_fallthru
      _
    // Predicated region
    $region18: #{tpu_custom_call.1} parent=1 // pred_check
      _
    $region19: #{tpu_custom_call.1} parent=1 // pred_check_branch
      %4339 = sbr.rel (0) target = $region21
    $region20: #{tpu_custom_call.1} parent=1 // pred_region
      %4340 = dma.done [#allocation4], 2048
    $region21: #{tpu_custom_call.1} parent=1 // pred_fallthru
      _
    %4341 = vsyncpa [#allocation3], 1
    %4342 = vsyncpa [#allocation4], 1

</llo_original>
